<compile_context>
chip_gen: v7x
topology: tpu7x:2x2x1
jax: 0.10.0
libtpu: 0.0.40
codegen_flags: <defaults>
</compile_context>

<pallas_src>
import functools
import math
from dataclasses import dataclass

import jax
import jax.numpy as jnp
from jax.experimental import pallas as pl
from jax.experimental.pallas import tpu as pltpu


# ------------------------------ small helpers --------------------------------

def gelu(x):
    """Exact (erf-based) gelu, matching the PyTorch module's `gelu`."""
    return x * 0.5 * (1.0 + jax.lax.erf(x / math.sqrt(2.0)))


def _normal(key, shape, std):
    return std * jax.random.normal(key, shape, dtype=jnp.float32)


# ----------------------------- Pallas kernels --------------------------------

def _ln(x, w, b, eps):
    """TF-style layernorm over the last dim (eps inside the sqrt)."""
    mean = jnp.mean(x, axis=-1, keepdims=True)
    xc = x - mean
    var = jnp.mean(xc * xc, axis=-1, keepdims=True)
    return (xc * jax.lax.rsqrt(var + eps)) * w + b


def _act(x, activation):
    if activation is None:
        return x
    if activation == "relu":
        return jnp.maximum(x, 0.0)
    # TODO(synk): only ReLU is fused in-kernel; other get_activation() choices
    # (gelu/swish/...) would be applied in plain jnp between the two matmuls.
    raise NotImplementedError(activation)


def _layernorm_kernel(x_ref, w_ref, b_ref, o_ref, *, eps):
    o_ref[...] = _ln(x_ref[...], w_ref[...], b_ref[...], eps).astype(o_ref.dtype)


def _linear_kernel(x_ref, w_ref, b_ref, o_ref, *, activation):
    y = jnp.dot(x_ref[...], w_ref[...], preferred_element_type=jnp.float32)
    y = y + b_ref[...]
    o_ref[...] = _act(y, activation).astype(o_ref.dtype)


def _attention_kernel(q_ref, k_ref, v_ref, bias_ref, ctx_ref, p_ref, *, scale):
    # q: (BH, T, hd)   k, v: (BH, S_pad, hd)   bias: (1, 1, S_pad) additive mask
    q = q_ref[...]
    k = k_ref[...]
    v = v_ref[...]
    s = jnp.einsum("btd,bsd->bts", q, k,
                   preferred_element_type=jnp.float32) * scale + bias_ref[...]
    m = jnp.max(s, axis=-1, keepdims=True)
    e = jnp.exp(s - m)
    denom = jnp.sum(e, axis=-1, keepdims=True)
    p = e / denom
    ctx = jnp.einsum("bts,bsd->btd", p.astype(v.dtype), v,
                     preferred_element_type=jnp.float32)
    ctx_ref[...] = ctx.astype(ctx_ref.dtype)
    p_ref[...] = p.astype(p_ref.dtype)


def _meta_adapter_kernel(*refs, use_pre_ln, use_post_ln, activation, ln_eps):
    """Fused MetaAdapterController.forward on (M, E) activations.

    out = [postLN]( act( [preLN](x) @ Wd + bd ) @ Wu + bu ) + x
    """
    o_ref = refs[-1]
    params = refs[:-1]
    x = params[0][...]
    i = 1
    z = x
    if use_pre_ln:
        z = _ln(z, params[i][...], params[i + 1][...], ln_eps)
        i += 2
    wd, bd, wu, bu = (params[i][...], params[i + 1][...],
                      params[i + 2][...], params[i + 3][...])
    i += 4
    h = _act(jnp.dot(z, wd, preferred_element_type=jnp.float32) + bd, activation)
    y = jnp.dot(h, wu, preferred_element_type=jnp.float32) + bu
    if use_post_ln:
        y = _ln(y, params[i][...], params[i + 1][...], ln_eps)
        i += 2
    o_ref[...] = (y + x).astype(o_ref.dtype)


# ----------------------------- kernel wrappers --------------------------------

def pallas_layer_norm(x2d, weight, bias, eps):
    m, d = x2d.shape
    return pl.pallas_call(
        functools.partial(_layernorm_kernel, eps=eps),
        out_shape=jax.ShapeDtypeStruct((m, d), jnp.float32),
    )(x2d, weight.reshape(1, d), bias.reshape(1, d))


def pallas_linear(x2d, w, b, activation=None, block_m=128):
    """y = act(x @ w + b).  x: (M, K), w: (K, N), b: (N,)."""
    m, k = x2d.shape
    n = w.shape[1]
    tile_m = m if m <= block_m else block_m
    pad = (-m) % tile_m
    xp = jnp.pad(x2d, ((0, pad), (0, 0))) if pad else x2d
    mp = xp.shape[0]
    out = pl.pallas_call(
        functools.partial(_linear_kernel, activation=activation),
        out_shape=jax.ShapeDtypeStruct((mp, n), jnp.float32),
        grid=(mp // tile_m,),
        in_specs=[
            pl.BlockSpec((tile_m, k), lambda i: (i, 0)),
            pl.BlockSpec((k, n), lambda i: (0, 0)),
            pl.BlockSpec((1, n), lambda i: (0, 0)),
        ],
        out_specs=pl.BlockSpec((tile_m, n), lambda i: (i, 0)),
        compiler_params=pltpu.CompilerParams(
            dimension_semantics=("parallel",)),
    )(xp, w, b.reshape(1, n))
    return out[:m] if pad else out


def pallas_attention(qh, kh, vh, scale):
    """qh: (BH, T, hd), kh/vh: (BH, S, hd) -> ctx (BH, T, hd), probs (BH, T, S)."""
    bh, t, hd = qh.shape
    s = kh.shape[1]
    s_pad = max(8, ((s + 7) // 8) * 8)      # keep the key axis 8-aligned
    kpad = s_pad - s
    if kpad:
        kh = jnp.pad(kh, ((0, 0), (0, kpad), (0, 0)))
        vh = jnp.pad(vh, ((0, 0), (0, kpad), (0, 0)))
    bias = jnp.where(jnp.arange(s_pad) < s, 0.0, -1e30).astype(jnp.float32)
    bias = bias.reshape(1, 1, s_pad)
    ctx, probs = pl.pallas_call(
        functools.partial(_attention_kernel, scale=scale),
        out_shape=(jax.ShapeDtypeStruct((bh, t, hd), jnp.float32),
                   jax.ShapeDtypeStruct((bh, t, s_pad), jnp.float32)),
    )(qh, kh, vh, bias)
    return ctx, probs[:, :, :s]


def pallas_meta_adapter(x2d, adapter, activation, ln_eps=1e-5):
    """Fused MetaAdapterController forward on (M, E) activations."""
    m, d = x2d.shape
    args = [x2d]
    if adapter["pre_ln"] is not None:
        w, b = adapter["pre_ln"]
        args += [w.reshape(1, d), b.reshape(1, d)]
    args += [adapter["w_down"], adapter["b_down"].reshape(1, -1),
             adapter["w_up"], adapter["b_up"].reshape(1, d)]
    if adapter["post_ln"] is not None:
        w, b = adapter["post_ln"]
        args += [w.reshape(1, d), b.reshape(1, d)]
    return pl.pallas_call(
        functools.partial(_meta_adapter_kernel,
                          use_pre_ln=adapter["pre_ln"] is not None,
                          use_post_ln=adapter["post_ln"] is not None,
                          activation=activation, ln_eps=ln_eps),
        out_shape=jax.ShapeDtypeStruct((m, d), jnp.float32),
    )(*args)


# --------------------------- module configuration -----------------------------

@dataclass
class AdapterConfig:
    input_dim: int
    reduction_factor: int
    hidden_dim: int
    non_linearity: str
    add_layer_norm_before_adapter: bool
    add_layer_norm_after_adapter: bool
    conditional_layer_norm: bool
    train_task_embeddings: bool
    task_embedding_dim: int
    projected_task_embedding_dim: int
    device: object = None


# ------------------------------ TransformerLayer ------------------------------

class TransformerLayerPallas:
    """JAX/Pallas port of the PyTorch TransformerLayer (ESM block + adapters)."""

    def __init__(self, embed_dim, ffn_embed_dim, attention_heads, config,
                 key, add_bias_kv=True, train_adapter=True):
        assert embed_dim % attention_heads == 0
        self.embed_dim = embed_dim
        self.ffn_embed_dim = ffn_embed_dim
        self.heads = attention_heads
        self.head_dim = embed_dim // attention_heads
        self.scaling = self.head_dim ** -0.5
        self.add_bias_kv = add_bias_kv
        self.config = config
        self.train_adapter = train_adapter

        ks = list(jax.random.split(key, 24))
        pop = ks.pop
        e, f = embed_dim, ffn_embed_dim
        std_e = 1.0 / math.sqrt(e)
        std_f = 1.0 / math.sqrt(f)

        # MultiheadAttention (q/k/v fused into one (E, 3E) weight) + out proj.
        self.w_qkv = jnp.concatenate(
            [_normal(pop(), (e, e), std_e) for _ in range(3)], axis=1)
        self.b_qkv = jnp.zeros((3 * e,), jnp.float32)
        self.w_out = _normal(pop(), (e, e), std_e)
        self.b_out = jnp.zeros((e,), jnp.float32)
        self.bias_k = _normal(pop(), (e,), 0.1) if add_bias_kv else None
        self.bias_v = _normal(pop(), (e,), 0.1) if add_bias_kv else None

        # ESM1LayerNorm parameters (eps=1e-12, inside the sqrt).
        self.attn_ln_w = jnp.ones((e,), jnp.float32)
        self.attn_ln_b = jnp.zeros((e,), jnp.float32)
        self.final_ln_w = jnp.ones((e,), jnp.float32)
        self.final_ln_b = jnp.zeros((e,), jnp.float32)

        # FFN.
        self.w_fc1 = _normal(pop(), (e, f), std_e)
        self.b_fc1 = jnp.zeros((f,), jnp.float32)
        self.w_fc2 = _normal(pop(), (f, e), std_f)
        self.b_fc2 = jnp.zeros((e,), jnp.float32)

        # MetaAdapterController hyper-networks (linear_layer: std=0.01, bias=0).
        if train_adapter:
            cfg = config
            self.down_size = e // cfg.reduction_factor
            t = (cfg.projected_task_embedding_dim if cfg.train_task_embeddings
                 else cfg.task_embedding_dim)
            d = self.down_size
            # meta_up_sampler: AdapterHyperNet(config, input_dim=e, output_dim=d)
            self.up_w_gen = _normal(pop(), (t, e * d), 0.01)
            self.up_w_gen_b = jnp.zeros((e * d,), jnp.float32)
            self.up_b_gen = _normal(pop(), (t, e), 0.01)
            self.up_b_gen_b = jnp.zeros((e,), jnp.float32)
            # meta_down_sampler: AdapterHyperNet(config, input_dim=d, output_dim=e)
            self.down_w_gen = _normal(pop(), (t, d * e), 0.01)
            self.down_w_gen_b = jnp.zeros((d * e,), jnp.float32)
            self.down_b_gen = _normal(pop(), (t, d), 0.01)
            self.down_b_gen_b = jnp.zeros((d,), jnp.float32)
            # LayerNormHyperNet (conditional LN) / plain LN parameters.
            if cfg.add_layer_norm_before_adapter:
                if cfg.conditional_layer_norm:
                    self.pre_ln_w_gen = _normal(pop(), (t, e), 0.01)
                    self.pre_ln_w_gen_b = jnp.zeros((e,), jnp.float32)
                    self.pre_ln_b_gen = _normal(pop(), (t, e), 0.01)
                    self.pre_ln_b_gen_b = jnp.zeros((e,), jnp.float32)
                else:
                    self.pre_ln_w = jnp.ones((e,), jnp.float32)
                    self.pre_ln_b = jnp.zeros((e,), jnp.float32)
            if cfg.add_layer_norm_after_adapter:
                if cfg.conditional_layer_norm:
                    self.post_ln_w_gen = _normal(pop(), (t, e), 0.01)
                    self.post_ln_w_gen_b = jnp.zeros((e,), jnp.float32)
                    self.post_ln_b_gen = _normal(pop(), (t, e), 0.01)
                    self.post_ln_b_gen_b = jnp.zeros((e,), jnp.float32)
                else:
                    self.post_ln_w = jnp.ones((e,), jnp.float32)
                    self.post_ln_b = jnp.zeros((e,), jnp.float32)

    # -- hypernets (AdapterHyperNet / LayerNormHyperNet forward) ---------------
    def _generate_adapter_params(self, task_embedding):
        """Tiny (1 x task_dim) matvecs; evaluated once per forward in plain jnp
        (off the MXU / pallas dispatch path, per the perf review) and reused by
        both adapter applications in this layer."""
        cfg = self.config
        te = task_embedding.reshape(-1)
        e, d = self.embed_dim, self.down_size
        weight_up = (te @ self.up_w_gen + self.up_w_gen_b).reshape(e, d)
        bias_up = te @ self.up_b_gen + self.up_b_gen_b
        weight_down = (te @ self.down_w_gen + self.down_w_gen_b).reshape(d, e)
        bias_down = te @ self.down_b_gen + self.down_b_gen_b
        adapter = {
            # y = x @ W + b layout in the kernels (transpose of F.linear weight).
            "w_down": weight_down.T,   # (e, d)
            "b_down": bias_down,       # (d,)
            "w_up": weight_up.T,       # (d, e)
            "b_up": bias_up,           # (e,)
            "pre_ln": None,
            "post_ln": None,
        }
        if cfg.add_layer_norm_before_adapter:
            if cfg.conditional_layer_norm:
                adapter["pre_ln"] = (te @ self.pre_ln_w_gen + self.pre_ln_w_gen_b,
                                     te @ self.pre_ln_b_gen + self.pre_ln_b_gen_b)
            else:
                adapter["pre_ln"] = (self.pre_ln_w, self.pre_ln_b)
        if cfg.add_layer_norm_after_adapter:
            if cfg.conditional_layer_norm:
                adapter["post_ln"] = (te @ self.post_ln_w_gen + self.post_ln_w_gen_b,
                                      te @ self.post_ln_b_gen + self.post_ln_b_gen_b)
            else:
                adapter["post_ln"] = (self.post_ln_w, self.post_ln_b)
        return adapter

    # -- MultiheadAttention (add_bias_kv=True, no rotary) ----------------------
    def _self_attention(self, x_ln):
        t, b, e = x_ln.shape
        h, hd = self.heads, self.head_dim
        x2 = x_ln.reshape(t * b, e)
        qkv = pallas_linear(x2, self.w_qkv, self.b_qkv)      # (M, 3E) fused proj
        q, k, v = jnp.split(qkv.reshape(t, b, 3 * e), 3, axis=-1)
        if self.add_bias_kv:
            k = jnp.concatenate(
                [k, jnp.broadcast_to(self.bias_k, (1, b, e))], axis=0)
            v = jnp.concatenate(
                [v, jnp.broadcast_to(self.bias_v, (1, b, e))], axis=0)
        s = k.shape[0]

        def to_heads(y):   # (S, B, E) -> (B*H, S, hd)   (layout plumbing only)
            return y.reshape(y.shape[0], b, h, hd).transpose(1, 2, 0, 3).reshape(
                b * h, y.shape[0], hd)

        ctx, probs = pallas_attention(to_heads(q), to_heads(k), to_heads(v),
                                      self.scaling)
        ctx = ctx.reshape(b, h, t, hd).transpose(2, 0, 1, 3).reshape(t * b, e)
        out = pallas_linear(ctx, self.w_out, self.b_out).reshape(t, b, e)
        # need_weights=True, need_head_weights=False -> average over heads.
        attn = probs.reshape(b, h, t, s).mean(axis=1)
        return out, attn

    # -- TransformerLayer.forward ----------------------------------------------
    def forward(self, x, self_attn_mask=None, self_attn_padding_mask=None,
                need_head_weights=False, task=None, task_embedding=None):
        # TODO(synk): self_attn_mask / self_attn_padding_mask / need_head_weights
        # are not plumbed into the attention kernel (demo passes None / False).
        t, b, e = x.shape
        m = t * b
        adapter = (self._generate_adapter_params(task_embedding)
                   if self.train_adapter else None)
        act = self.config.non_linearity.lower() if self.train_adapter else None

        residual = x
        x_ln = pallas_layer_norm(x.reshape(m, e), self.attn_ln_w,
                                 self.attn_ln_b, eps=1e-12).reshape(t, b, e)
        attn_out, attn = self._self_attention(x_ln)
        adapter_residual_attn = attn_out
        if self.train_adapter:
            xa = pallas_meta_adapter(attn_out.reshape(m, e), adapter,
                                     act).reshape(t, b, e)
        else:
            xa = attn_out
        x = adapter_residual_attn + xa
        x = residual + x

        residual = x
        x2 = pallas_layer_norm(x.reshape(m, e), self.final_ln_w,
                               self.final_ln_b, eps=1e-12)
        hmid = pallas_linear(x2, self.w_fc1, self.b_fc1)
        # TODO(synk): erf-based gelu applied in plain jnp between the two fc
        # pallas_calls (exact erf; in-kernel Mosaic erf lowering not relied on).
        hmid = gelu(hmid)
        y = pallas_linear(hmid, self.w_fc2, self.b_fc2)
        adapter_residual_ffn = y.reshape(t, b, e)
        if self.train_adapter:
            ya = pallas_meta_adapter(y, adapter, act).reshape(t, b, e)
        else:
            ya = adapter_residual_ffn
        x = adapter_residual_ffn + ya
        x = residual + x
        return x, attn


# ------------------------------ pure-JAX reference ----------------------------

def reference_forward(layer, x, task_embedding):
    """Pure-JAX (no Pallas) reference of the same forward pass."""
    t, b, e = x.shape
    h, hd = layer.heads, layer.head_dim

    def ln(y, w, bi, eps):
        mean = y.mean(-1, keepdims=True)
        yc = y - mean
        var = (yc * yc).mean(-1, keepdims=True)
        return yc / jnp.sqrt(var + eps) * w + bi

    adapter = layer._generate_adapter_params(task_embedding)
    act_fn = lambda z: jnp.maximum(z, 0.0)

    def run_adapter(inputs2d):
        z = inputs2d
        if adapter["pre_ln"] is not None:
            z = ln(z, adapter["pre_ln"][0], adapter["pre_ln"][1], 1e-5)
        mid = act_fn(z @ adapter["w_down"] + adapter["b_down"])
        y = mid @ adapter["w_up"] + adapter["b_up"]
        if adapter["post_ln"] is not None:
            y = ln(y, adapter["post_ln"][0], adapter["post_ln"][1], 1e-5)
        return y + inputs2d

    residual = x
    x_ln = ln(x, layer.attn_ln_w, layer.attn_ln_b, 1e-12)
    qkv = x_ln.reshape(t * b, e) @ layer.w_qkv + layer.b_qkv
    q, k, v = jnp.split(qkv.reshape(t, b, 3 * e), 3, axis=-1)
    k = jnp.concatenate([k, jnp.broadcast_to(layer.bias_k, (1, b, e))], axis=0)
    v = jnp.concatenate([v, jnp.broadcast_to(layer.bias_v, (1, b, e))], axis=0)
    s = k.shape[0]
    qh = q.reshape(t, b, h, hd).transpose(1, 2, 0, 3) * layer.scaling
    kh = k.reshape(s, b, h, hd).transpose(1, 2, 0, 3)
    vh = v.reshape(s, b, h, hd).transpose(1, 2, 0, 3)
    scores = jnp.einsum("bhtd,bhsd->bhts", qh, kh)
    probs = jax.nn.softmax(scores, axis=-1)
    ctx = jnp.einsum("bhts,bhsd->bhtd", probs, vh)
    ctx = ctx.transpose(2, 0, 1, 3).reshape(t * b, e)
    attn_out = (ctx @ layer.w_out + layer.b_out).reshape(t, b, e)
    attn = probs.mean(axis=1)

    adapter_residual_attn = attn_out
    xa = run_adapter(attn_out.reshape(t * b, e)).reshape(t, b, e)
    x1 = adapter_residual_attn + xa
    x1 = residual + x1

    residual = x1
    x2 = ln(x1, layer.final_ln_w, layer.final_ln_b, 1e-12)
    mid = gelu(x2.reshape(t * b, e) @ layer.w_fc1 + layer.b_fc1)
    y = mid @ layer.w_fc2 + layer.b_fc2
    adapter_residual_ffn = y.reshape(t, b, e)
    ya = run_adapter(y).reshape(t, b, e)
    out = adapter_residual_ffn + ya
    out = residual + out
    return out, attn


# ----------------------------------- main -------------------------------------

if __name__ == "__main__":
    T, B = 8, 2
    EMBED, FFN, HEADS = 32, 64, 4

    config = AdapterConfig(
        input_dim=EMBED,
        reduction_factor=4,
        hidden_dim=16,
        non_linearity="relu",
        add_layer_norm_before_adapter=True,
        add_layer_norm_after_adapter=True,
        conditional_layer_norm=True,
        train_task_embeddings=False,
        task_embedding_dim=16,
        projected_task_embedding_dim=16,
    )

    root = jax.random.PRNGKey(0)
    k_params, k_x, k_task = jax.random.split(root, 3)
    layer = TransformerLayerPallas(EMBED, FFN, HEADS, config, k_params)

    x = jax.random.normal(k_x, (T, B, EMBED), dtype=jnp.float32)
    task_embedding = jax.random.normal(
        k_task, (config.task_embedding_dim,), dtype=jnp.float32)

    fwd = jax.jit(lambda xx, te: layer.forward(xx, task_embedding=te))
    out, attn = fwd(x, task_embedding)
    out, attn = jax.block_until_ready((out, attn))

    assert out.shape == (T, B, EMBED) and out.dtype == jnp.float32
    assert attn.shape == (B, T, T + 1)              # +1 key from add_bias_kv
    assert bool(jnp.all(jnp.isfinite(out))) and bool(jnp.all(jnp.isfinite(attn)))

    # Pure-JAX reference check (tolerance allows for MXU vs XLA matmul
    # precision-path differences; structural bugs would be orders larger).
    ref_out, ref_attn = reference_forward(layer, x, task_embedding)
    assert bool(jnp.allclose(out, ref_out, rtol=3e-2, atol=3e-2)), float(
        jnp.max(jnp.abs(out - ref_out)))
    assert bool(jnp.allclose(attn, ref_attn, rtol=3e-2, atol=3e-2)), float(
        jnp.max(jnp.abs(attn - ref_attn)))

    print("KERNEL_OK")
</pallas_src>

<mosaic_0001>
module attributes {stable_mosaic.version = 11 : i64} {
  func.func @_layernorm_kernel(%arg0: memref<16x32xf32, #tpu.memory_space<vmem>>, %arg1: memref<1x32xf32, #tpu.memory_space<vmem>>, %arg2: memref<1x32xf32, #tpu.memory_space<vmem>>, %arg3: memref<16x32xf32, #tpu.memory_space<vmem>>) attributes {dimension_semantics = [], scalar_prefetch = 0 : i64, scratch_operands = 0 : i64, tpu.core_type = #tpu.core_type<tc>} {
    %c0 = arith.constant 0 : index
    %c0_0 = arith.constant 0 : index
    %0 = vector.load %arg0[%c0, %c0_0] : memref<16x32xf32, #tpu.memory_space<vmem>>, vector<16x32xf32>
    %c0_1 = arith.constant 0 : index
    %c0_2 = arith.constant 0 : index
    %1 = vector.load %arg1[%c0_1, %c0_2] : memref<1x32xf32, #tpu.memory_space<vmem>>, vector<1x32xf32>
    %c0_3 = arith.constant 0 : index
    %c0_4 = arith.constant 0 : index
    %2 = vector.load %arg2[%c0_3, %c0_4] : memref<1x32xf32, #tpu.memory_space<vmem>>, vector<1x32xf32>
    %cst = arith.constant dense<0.000000e+00> : vector<16xf32>
    %3 = vector.multi_reduction <add>, %0, %cst [1] : vector<16x32xf32> to vector<16xf32>
    %4 = vector.shape_cast %3 : vector<16xf32> to vector<16x1xf32>
    %cst_5 = arith.constant 3.200000e+01 : f32
    %5 = vector.broadcast %cst_5 : f32 to vector<16x1xf32>
    %6 = arith.divf %4, %5 : vector<16x1xf32>
    %7 = vector.broadcast %6 : vector<16x1xf32> to vector<16x32xf32>
    %8 = arith.subf %0, %7 : vector<16x32xf32>
    %9 = arith.mulf %8, %8 : vector<16x32xf32>
    %cst_6 = arith.constant dense<0.000000e+00> : vector<16xf32>
    %10 = vector.multi_reduction <add>, %9, %cst_6 [1] : vector<16x32xf32> to vector<16xf32>
    %11 = vector.shape_cast %10 : vector<16xf32> to vector<16x1xf32>
    %cst_7 = arith.constant 3.200000e+01 : f32
    %12 = vector.broadcast %cst_7 : f32 to vector<16x1xf32>
    %13 = arith.divf %11, %12 : vector<16x1xf32>
    %cst_8 = arith.constant 9.99999996E-13 : f32
    %14 = vector.broadcast %cst_8 : f32 to vector<16x1xf32>
    %15 = arith.addf %13, %14 : vector<16x1xf32>
    %16 = math.rsqrt %15 : vector<16x1xf32>
    %17 = vector.broadcast %16 : vector<16x1xf32> to vector<16x32xf32>
    %18 = arith.mulf %8, %17 : vector<16x32xf32>
    %19 = vector.broadcast %1 : vector<1x32xf32> to vector<16x32xf32>
    %20 = arith.mulf %18, %19 : vector<16x32xf32>
    %21 = vector.broadcast %2 : vector<1x32xf32> to vector<16x32xf32>
    %22 = arith.addf %20, %21 : vector<16x32xf32>
    %c0_9 = arith.constant 0 : index
    %c0_10 = arith.constant 0 : index
    %23 = vector.load %arg3[%c0_9, %c0_10] : memref<16x32xf32, #tpu.memory_space<vmem>>, vector<16x32xf32>
    tpu.vector_store %arg3[%c0_9, %c0_10], %22 {strides = array<i32>} : memref<16x32xf32, #tpu.memory_space<vmem>>, vector<16x32xf32>,
    return
  }
}

module attributes {stable_mosaic.version = 11 : i64} {
  func.func @_linear_kernel(%arg0: i32, %arg1: memref<16x32xf32, #tpu.memory_space<vmem>>, %arg2: memref<32x96xf32, #tpu.memory_space<vmem>>, %arg3: memref<1x96xf32, #tpu.memory_space<vmem>>, %arg4: memref<16x96xf32, #tpu.memory_space<vmem>>) attributes {dimension_semantics = [#tpu.dimension_semantics<parallel>], iteration_bounds = array<i64: 1>, scalar_prefetch = 0 : i64, scratch_operands = 0 : i64, tpu.core_type = #tpu.core_type<tc>, window_params = [{transform_indices = @transform_0, window_bounds = array<i64: 16, 32>}, {pipeline_mode = #tpu.pipeline_mode<synchronous>, transform_indices = @transform_1, window_bounds = array<i64: 32, 96>}, {pipeline_mode = #tpu.pipeline_mode<synchronous>, transform_indices = @transform_2, window_bounds = array<i64: 1, 96>}, {transform_indices = @transform_3, window_bounds = array<i64: 16, 96>}]} {
    %c0 = arith.constant 0 : index
    %c0_0 = arith.constant 0 : index
    %0 = vector.load %arg1[%c0, %c0_0] : memref<16x32xf32, #tpu.memory_space<vmem>>, vector<16x32xf32>
    %c0_1 = arith.constant 0 : index
    %c0_2 = arith.constant 0 : index
    %1 = vector.load %arg2[%c0_1, %c0_2] : memref<32x96xf32, #tpu.memory_space<vmem>>, vector<32x96xf32>
    %cst = arith.constant dense<0.000000e+00> : vector<16x96xf32>
    %2 = tpu.matmul %0, %1, %cst {dimension_numbers = #tpu.dot_dimension_numbers<[1], [0], [0], [1], [0, 0, 1, 1], [], []>} : vector<16x32xf32>, vector<32x96xf32>, vector<16x96xf32> -> vector<16x96xf32>
    %c0_3 = arith.constant 0 : index
    %c0_4 = arith.constant 0 : index
    %3 = vector.load %arg3[%c0_3, %c0_4] : memref<1x96xf32, #tpu.memory_space<vmem>>, vector<1x96xf32>
    %4 = vector.broadcast %3 : vector<1x96xf32> to vector<16x96xf32>
    %5 = arith.addf %2, %4 : vector<16x96xf32>
    %c0_5 = arith.constant 0 : index
    %c0_6 = arith.constant 0 : index
    %6 = vector.load %arg4[%c0_5, %c0_6] : memref<16x96xf32, #tpu.memory_space<vmem>>, vector<16x96xf32>
    tpu.vector_store %arg4[%c0_5, %c0_6], %5 {strides = array<i32>} : memref<16x96xf32, #tpu.memory_space<vmem>>, vector<16x96xf32>,
    return
  }
  func.func @transform_0(%arg0: i32) -> (i32, i32) {
    %c0_i32 = arith.constant 0 : i32
    %c0_i32_0 = arith.constant 0 : i32
    return %arg0, %c0_i32 : i32, i32
  }
  func.func @transform_1(%arg0: i32) -> (i32, i32) {
    %c0_i32 = arith.constant 0 : i32
    %c0_i32_0 = arith.constant 0 : i32
    %c0_i32_1 = arith.constant 0 : i32
    return %c0_i32, %c0_i32_0 : i32, i32
  }
  func.func @transform_2(%arg0: i32) -> (i32, i32) {
    %c0_i32 = arith.constant 0 : i32
    %c0_i32_0 = arith.constant 0 : i32
    %c0_i32_1 = arith.constant 0 : i32
    return %c0_i32, %c0_i32_0 : i32, i32
  }
  func.func @transform_3(%arg0: i32) -> (i32, i32) {
    %c0_i32 = arith.constant 0 : i32
    %c0_i32_0 = arith.constant 0 : i32
    return %arg0, %c0_i32 : i32, i32
  }
}

module attributes {stable_mosaic.version = 11 : i64} {
  func.func @_attention_kernel(%arg0: memref<8x8x8xf32, #tpu.memory_space<vmem>>, %arg1: memref<8x16x8xf32, #tpu.memory_space<vmem>>, %arg2: memref<8x16x8xf32, #tpu.memory_space<vmem>>, %arg3: memref<1x1x16xf32, #tpu.memory_space<vmem>>, %arg4: memref<8x8x8xf32, #tpu.memory_space<vmem>>, %arg5: memref<8x8x16xf32, #tpu.memory_space<vmem>>) attributes {dimension_semantics = [], scalar_prefetch = 0 : i64, scratch_operands = 0 : i64, tpu.core_type = #tpu.core_type<tc>} {
    %c0 = arith.constant 0 : index
    %c0_0 = arith.constant 0 : index
    %c0_1 = arith.constant 0 : index
    %0 = vector.load %arg0[%c0, %c0_0, %c0_1] : memref<8x8x8xf32, #tpu.memory_space<vmem>>, vector<8x8x8xf32>
    %c0_2 = arith.constant 0 : index
    %c0_3 = arith.constant 0 : index
    %c0_4 = arith.constant 0 : index
    %1 = vector.load %arg1[%c0_2, %c0_3, %c0_4] : memref<8x16x8xf32, #tpu.memory_space<vmem>>, vector<8x16x8xf32>
    %c0_5 = arith.constant 0 : index
    %c0_6 = arith.constant 0 : index
    %c0_7 = arith.constant 0 : index
    %2 = vector.load %arg2[%c0_5, %c0_6, %c0_7] : memref<8x16x8xf32, #tpu.memory_space<vmem>>, vector<8x16x8xf32>
    "tpu.trace_start"() <{level = 10 : i32, message = "btd,bsd->bts"}> : () -> ()
    %cst = arith.constant dense<0.000000e+00> : vector<8x8x16xf32>
    %3 = tpu.matmul %0, %1, %cst {dimension_numbers = #tpu.dot_dimension_numbers<[2], [2], [1], [1], [0, 0, 0, 1, 1, 1], [0], [0]>} : vector<8x8x8xf32>, vector<8x16x8xf32>, vector<8x8x16xf32> -> vector<8x8x16xf32>
    "tpu.trace_stop"() : () -> ()
    %cst_8 = arith.constant 0.353553385 : f32
    %4 = vector.broadcast %cst_8 : f32 to vector<8x8x16xf32>
    %5 = arith.mulf %3, %4 : vector<8x8x16xf32>
    %c0_9 = arith.constant 0 : index
    %c0_10 = arith.constant 0 : index
    %c0_11 = arith.constant 0 : index
    %6 = vector.load %arg3[%c0_9, %c0_10, %c0_11] : memref<1x1x16xf32, #tpu.memory_space<vmem>>, vector<1x1x16xf32>
    %7 = vector.broadcast %6 : vector<1x1x16xf32> to vector<8x8x16xf32>
    %8 = arith.addf %5, %7 : vector<8x8x16xf32>
    %cst_12 = arith.constant dense<0xFF800000> : vector<8x8xf32>
    %9 = vector.multi_reduction <maximumf>, %8, %cst_12 [2] : vector<8x8x16xf32> to vector<8x8xf32>
    %10 = vector.shape_cast %9 : vector<8x8xf32> to vector<8x8x1xf32>
    %11 = vector.broadcast %10 : vector<8x8x1xf32> to vector<8x8x16xf32>
    %12 = arith.subf %8, %11 : vector<8x8x16xf32>
    %13 = math.exp %12 : vector<8x8x16xf32>
    %cst_13 = arith.constant dense<0.000000e+00> : vector<8x8xf32>
    %14 = vector.multi_reduction <add>, %13, %cst_13 [2] : vector<8x8x16xf32> to vector<8x8xf32>
    %15 = vector.shape_cast %14 : vector<8x8xf32> to vector<8x8x1xf32>
    %16 = vector.broadcast %15 : vector<8x8x1xf32> to vector<8x8x16xf32>
    %17 = arith.divf %13, %16 : vector<8x8x16xf32>
    "tpu.trace_start"() <{level = 10 : i32, message = "bts,bsd->btd"}> : () -> ()
    %cst_14 = arith.constant dense<0.000000e+00> : vector<8x8x8xf32>
    %18 = tpu.matmul %17, %2, %cst_14 {dimension_numbers = #tpu.dot_dimension_numbers<[2], [1], [1], [2], [0, 0, 0, 1, 1, 2], [0], [0]>} : vector<8x8x16xf32>, vector<8x16x8xf32>, vector<8x8x8xf32> -> vector<8x8x8xf32>
    "tpu.trace_stop"() : () -> ()
    %c0_15 = arith.constant 0 : index
    %c0_16 = arith.constant 0 : index
    %c0_17 = arith.constant 0 : index
    %19 = vector.load %arg4[%c0_15, %c0_16, %c0_17] : memref<8x8x8xf32, #tpu.memory_space<vmem>>, vector<8x8x8xf32>
    tpu.vector_store %arg4[%c0_15, %c0_16, %c0_17], %18 {strides = array<i32>} : memref<8x8x8xf32, #tpu.memory_space<vmem>>, vector<8x8x8xf32>,
    %c0_18 = arith.constant 0 : index
    %c0_19 = arith.constant 0 : index
    %c0_20 = arith.constant 0 : index
    %20 = vector.load %arg5[%c0_18, %c0_19, %c0_20] : memref<8x8x16xf32, #tpu.memory_space<vmem>>, vector<8x8x16xf32>
    tpu.vector_store %arg5[%c0_18, %c0_19, %c0_20], %17 {strides = array<i32>} : memref<8x8x16xf32, #tpu.memory_space<vmem>>, vector<8x8x16xf32>,
    return
  }
}

module attributes {stable_mosaic.version = 11 : i64} {
  func.func @_linear_kernel(%arg0: i32, %arg1: memref<16x32xf32, #tpu.memory_space<vmem>>, %arg2: memref<32x32xf32, #tpu.memory_space<vmem>>, %arg3: memref<1x32xf32, #tpu.memory_space<vmem>>, %arg4: memref<16x32xf32, #tpu.memory_space<vmem>>) attributes {dimension_semantics = [#tpu.dimension_semantics<parallel>], iteration_bounds = array<i64: 1>, scalar_prefetch = 0 : i64, scratch_operands = 0 : i64, tpu.core_type = #tpu.core_type<tc>, window_params = [{transform_indices = @transform_0, window_bounds = array<i64: 16, 32>}, {pipeline_mode = #tpu.pipeline_mode<synchronous>, transform_indices = @transform_1, window_bounds = array<i64: 32, 32>}, {pipeline_mode = #tpu.pipeline_mode<synchronous>, transform_indices = @transform_2, window_bounds = array<i64: 1, 32>}, {transform_indices = @transform_3, window_bounds = array<i64: 16, 32>}]} {
    %c0 = arith.constant 0 : index
    %c0_0 = arith.constant 0 : index
    %0 = vector.load %arg1[%c0, %c0_0] : memref<16x32xf32, #tpu.memory_space<vmem>>, vector<16x32xf32>
    %c0_1 = arith.constant 0 : index
    %c0_2 = arith.constant 0 : index
    %1 = vector.load %arg2[%c0_1, %c0_2] : memref<32x32xf32, #tpu.memory_space<vmem>>, vector<32x32xf32>
    %cst = arith.constant dense<0.000000e+00> : vector<16x32xf32>
    %2 = tpu.matmul %0, %1, %cst {dimension_numbers = #tpu.dot_dimension_numbers<[1], [0], [0], [1], [0, 0, 1, 1], [], []>} : vector<16x32xf32>, vector<32x32xf32>, vector<16x32xf32> -> vector<16x32xf32>
    %c0_3 = arith.constant 0 : index
    %c0_4 = arith.constant 0 : index
    %3 = vector.load %arg3[%c0_3, %c0_4] : memref<1x32xf32, #tpu.memory_space<vmem>>, vector<1x32xf32>
    %4 = vector.broadcast %3 : vector<1x32xf32> to vector<16x32xf32>
    %5 = arith.addf %2, %4 : vector<16x32xf32>
    %c0_5 = arith.constant 0 : index
    %c0_6 = arith.constant 0 : index
    %6 = vector.load %arg4[%c0_5, %c0_6] : memref<16x32xf32, #tpu.memory_space<vmem>>, vector<16x32xf32>
    tpu.vector_store %arg4[%c0_5, %c0_6], %5 {strides = array<i32>} : memref<16x32xf32, #tpu.memory_space<vmem>>, vector<16x32xf32>,
    return
  }
  func.func @transform_0(%arg0: i32) -> (i32, i32) {
    %c0_i32 = arith.constant 0 : i32
    %c0_i32_0 = arith.constant 0 : i32
    return %arg0, %c0_i32 : i32, i32
  }
  func.func @transform_1(%arg0: i32) -> (i32, i32) {
    %c0_i32 = arith.constant 0 : i32
    %c0_i32_0 = arith.constant 0 : i32
    %c0_i32_1 = arith.constant 0 : i32
    return %c0_i32, %c0_i32_0 : i32, i32
  }
  func.func @transform_2(%arg0: i32) -> (i32, i32) {
    %c0_i32 = arith.constant 0 : i32
    %c0_i32_0 = arith.constant 0 : i32
    %c0_i32_1 = arith.constant 0 : i32
    return %c0_i32, %c0_i32_0 : i32, i32
  }
  func.func @transform_3(%arg0: i32) -> (i32, i32) {
    %c0_i32 = arith.constant 0 : i32
    %c0_i32_0 = arith.constant 0 : i32
    return %arg0, %c0_i32 : i32, i32
  }
}

module attributes {stable_mosaic.version = 11 : i64} {
  func.func @_meta_adapter_kernel(%arg0: memref<16x32xf32, #tpu.memory_space<vmem>>, %arg1: memref<1x32xf32, #tpu.memory_space<vmem>>, %arg2: memref<1x32xf32, #tpu.memory_space<vmem>>, %arg3: memref<32x8xf32, #tpu.memory_space<vmem>>, %arg4: memref<1x8xf32, #tpu.memory_space<vmem>>, %arg5: memref<8x32xf32, #tpu.memory_space<vmem>>, %arg6: memref<1x32xf32, #tpu.memory_space<vmem>>, %arg7: memref<1x32xf32, #tpu.memory_space<vmem>>, %arg8: memref<1x32xf32, #tpu.memory_space<vmem>>, %arg9: memref<16x32xf32, #tpu.memory_space<vmem>>) attributes {dimension_semantics = [], scalar_prefetch = 0 : i64, scratch_operands = 0 : i64, tpu.core_type = #tpu.core_type<tc>} {
    %c0 = arith.constant 0 : index
    %c0_0 = arith.constant 0 : index
    %0 = vector.load %arg0[%c0, %c0_0] : memref<16x32xf32, #tpu.memory_space<vmem>>, vector<16x32xf32>
    %c0_1 = arith.constant 0 : index
    %c0_2 = arith.constant 0 : index
    %1 = vector.load %arg1[%c0_1, %c0_2] : memref<1x32xf32, #tpu.memory_space<vmem>>, vector<1x32xf32>
    %c0_3 = arith.constant 0 : index
    %c0_4 = arith.constant 0 : index
    %2 = vector.load %arg2[%c0_3, %c0_4] : memref<1x32xf32, #tpu.memory_space<vmem>>, vector<1x32xf32>
    %cst = arith.constant dense<0.000000e+00> : vector<16xf32>
    %3 = vector.multi_reduction <add>, %0, %cst [1] : vector<16x32xf32> to vector<16xf32>
    %4 = vector.shape_cast %3 : vector<16xf32> to vector<16x1xf32>
    %cst_5 = arith.constant 3.200000e+01 : f32
    %5 = vector.broadcast %cst_5 : f32 to vector<16x1xf32>
    %6 = arith.divf %4, %5 : vector<16x1xf32>
    %7 = vector.broadcast %6 : vector<16x1xf32> to vector<16x32xf32>
    %8 = arith.subf %0, %7 : vector<16x32xf32>
    %9 = arith.mulf %8, %8 : vector<16x32xf32>
    %cst_6 = arith.constant dense<0.000000e+00> : vector<16xf32>
    %10 = vector.multi_reduction <add>, %9, %cst_6 [1] : vector<16x32xf32> to vector<16xf32>
    %11 = vector.shape_cast %10 : vector<16xf32> to vector<16x1xf32>
    %cst_7 = arith.constant 3.200000e+01 : f32
    %12 = vector.broadcast %cst_7 : f32 to vector<16x1xf32>
    %13 = arith.divf %11, %12 : vector<16x1xf32>
    %cst_8 = arith.constant 9.99999974E-6 : f32
    %14 = vector.broadcast %cst_8 : f32 to vector<16x1xf32>
    %15 = arith.addf %13, %14 : vector<16x1xf32>
    %16 = math.rsqrt %15 : vector<16x1xf32>
    %17 = vector.broadcast %16 : vector<16x1xf32> to vector<16x32xf32>
    %18 = arith.mulf %8, %17 : vector<16x32xf32>
    %19 = vector.broadcast %1 : vector<1x32xf32> to vector<16x32xf32>
    %20 = arith.mulf %18, %19 : vector<16x32xf32>
    %21 = vector.broadcast %2 : vector<1x32xf32> to vector<16x32xf32>
    %22 = arith.addf %20, %21 : vector<16x32xf32>
    %c0_9 = arith.constant 0 : index
    %c0_10 = arith.constant 0 : index
    %23 = vector.load %arg3[%c0_9, %c0_10] : memref<32x8xf32, #tpu.memory_space<vmem>>, vector<32x8xf32>
    %c0_11 = arith.constant 0 : index
    %c0_12 = arith.constant 0 : index
    %24 = vector.load %arg4[%c0_11, %c0_12] : memref<1x8xf32, #tpu.memory_space<vmem>>, vector<1x8xf32>
    %c0_13 = arith.constant 0 : index
    %c0_14 = arith.constant 0 : index
    %25 = vector.load %arg5[%c0_13, %c0_14] : memref<8x32xf32, #tpu.memory_space<vmem>>, vector<8x32xf32>
    %c0_15 = arith.constant 0 : index
    %c0_16 = arith.constant 0 : index
    %26 = vector.load %arg6[%c0_15, %c0_16] : memref<1x32xf32, #tpu.memory_space<vmem>>, vector<1x32xf32>
    %cst_17 = arith.constant dense<0.000000e+00> : vector<16x8xf32>
    %27 = tpu.matmul %22, %23, %cst_17 {dimension_numbers = #tpu.dot_dimension_numbers<[1], [0], [0], [1], [0, 0, 1, 1], [], []>} : vector<16x32xf32>, vector<32x8xf32>, vector<16x8xf32> -> vector<16x8xf32>
    %28 = vector.broadcast %24 : vector<1x8xf32> to vector<16x8xf32>
    %29 = arith.addf %27, %28 : vector<16x8xf32>
    %cst_18 = arith.constant 0.000000e+00 : f32
    %30 = vector.broadcast %cst_18 : f32 to vector<16x8xf32>
    %31 = arith.maximumf %29, %30 : vector<16x8xf32>
    %cst_19 = arith.constant dense<0.000000e+00> : vector<16x32xf32>
    %32 = tpu.matmul %31, %25, %cst_19 {dimension_numbers = #tpu.dot_dimension_numbers<[1], [0], [0], [1], [0, 0, 1, 1], [], []>} : vector<16x8xf32>, vector<8x32xf32>, vector<16x32xf32> -> vector<16x32xf32>
    %33 = vector.broadcast %26 : vector<1x32xf32> to vector<16x32xf32>
    %34 = arith.addf %32, %33 : vector<16x32xf32>
    %c0_20 = arith.constant 0 : index
    %c0_21 = arith.constant 0 : index
    %35 = vector.load %arg7[%c0_20, %c0_21] : memref<1x32xf32, #tpu.memory_space<vmem>>, vector<1x32xf32>
    %c0_22 = arith.constant 0 : index
    %c0_23 = arith.constant 0 : index
    %36 = vector.load %arg8[%c0_22, %c0_23] : memref<1x32xf32, #tpu.memory_space<vmem>>, vector<1x32xf32>
    %cst_24 = arith.constant dense<0.000000e+00> : vector<16xf32>
    %37 = vector.multi_reduction <add>, %34, %cst_24 [1] : vector<16x32xf32> to vector<16xf32>
    %38 = vector.shape_cast %37 : vector<16xf32> to vector<16x1xf32>
    %cst_25 = arith.constant 3.200000e+01 : f32
    %39 = vector.broadcast %cst_25 : f32 to vector<16x1xf32>
    %40 = arith.divf %38, %39 : vector<16x1xf32>
    %41 = vector.broadcast %40 : vector<16x1xf32> to vector<16x32xf32>
    %42 = arith.subf %34, %41 : vector<16x32xf32>
    %43 = arith.mulf %42, %42 : vector<16x32xf32>
    %cst_26 = arith.constant dense<0.000000e+00> : vector<16xf32>
    %44 = vector.multi_reduction <add>, %43, %cst_26 [1] : vector<16x32xf32> to vector<16xf32>
    %45 = vector.shape_cast %44 : vector<16xf32> to vector<16x1xf32>
    %cst_27 = arith.constant 3.200000e+01 : f32
    %46 = vector.broadcast %cst_27 : f32 to vector<16x1xf32>
    %47 = arith.divf %45, %46 : vector<16x1xf32>
    %cst_28 = arith.constant 9.99999974E-6 : f32
    %48 = vector.broadcast %cst_28 : f32 to vector<16x1xf32>
    %49 = arith.addf %47, %48 : vector<16x1xf32>
    %50 = math.rsqrt %49 : vector<16x1xf32>
    %51 = vector.broadcast %50 : vector<16x1xf32> to vector<16x32xf32>
    %52 = arith.mulf %42, %51 : vector<16x32xf32>
    %53 = vector.broadcast %35 : vector<1x32xf32> to vector<16x32xf32>
    %54 = arith.mulf %52, %53 : vector<16x32xf32>
    %55 = vector.broadcast %36 : vector<1x32xf32> to vector<16x32xf32>
    %56 = arith.addf %54, %55 : vector<16x32xf32>
    %57 = arith.addf %56, %0 : vector<16x32xf32>
    %c0_29 = arith.constant 0 : index
    %c0_30 = arith.constant 0 : index
    %58 = vector.load %arg9[%c0_29, %c0_30] : memref<16x32xf32, #tpu.memory_space<vmem>>, vector<16x32xf32>
    tpu.vector_store %arg9[%c0_29, %c0_30], %57 {strides = array<i32>} : memref<16x32xf32, #tpu.memory_space<vmem>>, vector<16x32xf32>,
    return
  }
}

module attributes {stable_mosaic.version = 11 : i64} {
  func.func @_layernorm_kernel(%arg0: memref<16x32xf32, #tpu.memory_space<vmem>>, %arg1: memref<1x32xf32, #tpu.memory_space<vmem>>, %arg2: memref<1x32xf32, #tpu.memory_space<vmem>>, %arg3: memref<16x32xf32, #tpu.memory_space<vmem>>) attributes {dimension_semantics = [], scalar_prefetch = 0 : i64, scratch_operands = 0 : i64, tpu.core_type = #tpu.core_type<tc>} {
    %c0 = arith.constant 0 : index
    %c0_0 = arith.constant 0 : index
    %0 = vector.load %arg0[%c0, %c0_0] : memref<16x32xf32, #tpu.memory_space<vmem>>, vector<16x32xf32>
    %c0_1 = arith.constant 0 : index
    %c0_2 = arith.constant 0 : index
    %1 = vector.load %arg1[%c0_1, %c0_2] : memref<1x32xf32, #tpu.memory_space<vmem>>, vector<1x32xf32>
    %c0_3 = arith.constant 0 : index
    %c0_4 = arith.constant 0 : index
    %2 = vector.load %arg2[%c0_3, %c0_4] : memref<1x32xf32, #tpu.memory_space<vmem>>, vector<1x32xf32>
    %cst = arith.constant dense<0.000000e+00> : vector<16xf32>
    %3 = vector.multi_reduction <add>, %0, %cst [1] : vector<16x32xf32> to vector<16xf32>
    %4 = vector.shape_cast %3 : vector<16xf32> to vector<16x1xf32>
    %cst_5 = arith.constant 3.200000e+01 : f32
    %5 = vector.broadcast %cst_5 : f32 to vector<16x1xf32>
    %6 = arith.divf %4, %5 : vector<16x1xf32>
    %7 = vector.broadcast %6 : vector<16x1xf32> to vector<16x32xf32>
    %8 = arith.subf %0, %7 : vector<16x32xf32>
    %9 = arith.mulf %8, %8 : vector<16x32xf32>
    %cst_6 = arith.constant dense<0.000000e+00> : vector<16xf32>
    %10 = vector.multi_reduction <add>, %9, %cst_6 [1] : vector<16x32xf32> to vector<16xf32>
    %11 = vector.shape_cast %10 : vector<16xf32> to vector<16x1xf32>
    %cst_7 = arith.constant 3.200000e+01 : f32
    %12 = vector.broadcast %cst_7 : f32 to vector<16x1xf32>
    %13 = arith.divf %11, %12 : vector<16x1xf32>
    %cst_8 = arith.constant 9.99999996E-13 : f32
    %14 = vector.broadcast %cst_8 : f32 to vector<16x1xf32>
    %15 = arith.addf %13, %14 : vector<16x1xf32>
    %16 = math.rsqrt %15 : vector<16x1xf32>
    %17 = vector.broadcast %16 : vector<16x1xf32> to vector<16x32xf32>
    %18 = arith.mulf %8, %17 : vector<16x32xf32>
    %19 = vector.broadcast %1 : vector<1x32xf32> to vector<16x32xf32>
    %20 = arith.mulf %18, %19 : vector<16x32xf32>
    %21 = vector.broadcast %2 : vector<1x32xf32> to vector<16x32xf32>
    %22 = arith.addf %20, %21 : vector<16x32xf32>
    %c0_9 = arith.constant 0 : index
    %c0_10 = arith.constant 0 : index
    %23 = vector.load %arg3[%c0_9, %c0_10] : memref<16x32xf32, #tpu.memory_space<vmem>>, vector<16x32xf32>
    tpu.vector_store %arg3[%c0_9, %c0_10], %22 {strides = array<i32>} : memref<16x32xf32, #tpu.memory_space<vmem>>, vector<16x32xf32>,
    return
  }
}

module attributes {stable_mosaic.version = 11 : i64} {
  func.func @_linear_kernel(%arg0: i32, %arg1: memref<16x32xf32, #tpu.memory_space<vmem>>, %arg2: memref<32x64xf32, #tpu.memory_space<vmem>>, %arg3: memref<1x64xf32, #tpu.memory_space<vmem>>, %arg4: memref<16x64xf32, #tpu.memory_space<vmem>>) attributes {dimension_semantics = [#tpu.dimension_semantics<parallel>], iteration_bounds = array<i64: 1>, scalar_prefetch = 0 : i64, scratch_operands = 0 : i64, tpu.core_type = #tpu.core_type<tc>, window_params = [{transform_indices = @transform_0, window_bounds = array<i64: 16, 32>}, {pipeline_mode = #tpu.pipeline_mode<synchronous>, transform_indices = @transform_1, window_bounds = array<i64: 32, 64>}, {pipeline_mode = #tpu.pipeline_mode<synchronous>, transform_indices = @transform_2, window_bounds = array<i64: 1, 64>}, {transform_indices = @transform_3, window_bounds = array<i64: 16, 64>}]} {
    %c0 = arith.constant 0 : index
    %c0_0 = arith.constant 0 : index
    %0 = vector.load %arg1[%c0, %c0_0] : memref<16x32xf32, #tpu.memory_space<vmem>>, vector<16x32xf32>
    %c0_1 = arith.constant 0 : index
    %c0_2 = arith.constant 0 : index
    %1 = vector.load %arg2[%c0_1, %c0_2] : memref<32x64xf32, #tpu.memory_space<vmem>>, vector<32x64xf32>
    %cst = arith.constant dense<0.000000e+00> : vector<16x64xf32>
    %2 = tpu.matmul %0, %1, %cst {dimension_numbers = #tpu.dot_dimension_numbers<[1], [0], [0], [1], [0, 0, 1, 1], [], []>} : vector<16x32xf32>, vector<32x64xf32>, vector<16x64xf32> -> vector<16x64xf32>
    %c0_3 = arith.constant 0 : index
    %c0_4 = arith.constant 0 : index
    %3 = vector.load %arg3[%c0_3, %c0_4] : memref<1x64xf32, #tpu.memory_space<vmem>>, vector<1x64xf32>
    %4 = vector.broadcast %3 : vector<1x64xf32> to vector<16x64xf32>
    %5 = arith.addf %2, %4 : vector<16x64xf32>
    %c0_5 = arith.constant 0 : index
    %c0_6 = arith.constant 0 : index
    %6 = vector.load %arg4[%c0_5, %c0_6] : memref<16x64xf32, #tpu.memory_space<vmem>>, vector<16x64xf32>
    tpu.vector_store %arg4[%c0_5, %c0_6], %5 {strides = array<i32>} : memref<16x64xf32, #tpu.memory_space<vmem>>, vector<16x64xf32>,
    return
  }
  func.func @transform_0(%arg0: i32) -> (i32, i32) {
    %c0_i32 = arith.constant 0 : i32
    %c0_i32_0 = arith.constant 0 : i32
    return %arg0, %c0_i32 : i32, i32
  }
  func.func @transform_1(%arg0: i32) -> (i32, i32) {
    %c0_i32 = arith.constant 0 : i32
    %c0_i32_0 = arith.constant 0 : i32
    %c0_i32_1 = arith.constant 0 : i32
    return %c0_i32, %c0_i32_0 : i32, i32
  }
  func.func @transform_2(%arg0: i32) -> (i32, i32) {
    %c0_i32 = arith.constant 0 : i32
    %c0_i32_0 = arith.constant 0 : i32
    %c0_i32_1 = arith.constant 0 : i32
    return %c0_i32, %c0_i32_0 : i32, i32
  }
  func.func @transform_3(%arg0: i32) -> (i32, i32) {
    %c0_i32 = arith.constant 0 : i32
    %c0_i32_0 = arith.constant 0 : i32
    return %arg0, %c0_i32 : i32, i32
  }
}

module attributes {stable_mosaic.version = 11 : i64} {
  func.func @_linear_kernel(%arg0: i32, %arg1: memref<16x64xf32, #tpu.memory_space<vmem>>, %arg2: memref<64x32xf32, #tpu.memory_space<vmem>>, %arg3: memref<1x32xf32, #tpu.memory_space<vmem>>, %arg4: memref<16x32xf32, #tpu.memory_space<vmem>>) attributes {dimension_semantics = [#tpu.dimension_semantics<parallel>], iteration_bounds = array<i64: 1>, scalar_prefetch = 0 : i64, scratch_operands = 0 : i64, tpu.core_type = #tpu.core_type<tc>, window_params = [{transform_indices = @transform_0, window_bounds = array<i64: 16, 64>}, {pipeline_mode = #tpu.pipeline_mode<synchronous>, transform_indices = @transform_1, window_bounds = array<i64: 64, 32>}, {pipeline_mode = #tpu.pipeline_mode<synchronous>, transform_indices = @transform_2, window_bounds = array<i64: 1, 32>}, {transform_indices = @transform_3, window_bounds = array<i64: 16, 32>}]} {
    %c0 = arith.constant 0 : index
    %c0_0 = arith.constant 0 : index
    %0 = vector.load %arg1[%c0, %c0_0] : memref<16x64xf32, #tpu.memory_space<vmem>>, vector<16x64xf32>
    %c0_1 = arith.constant 0 : index
    %c0_2 = arith.constant 0 : index
    %1 = vector.load %arg2[%c0_1, %c0_2] : memref<64x32xf32, #tpu.memory_space<vmem>>, vector<64x32xf32>
    %cst = arith.constant dense<0.000000e+00> : vector<16x32xf32>
    %2 = tpu.matmul %0, %1, %cst {dimension_numbers = #tpu.dot_dimension_numbers<[1], [0], [0], [1], [0, 0, 1, 1], [], []>} : vector<16x64xf32>, vector<64x32xf32>, vector<16x32xf32> -> vector<16x32xf32>
    %c0_3 = arith.constant 0 : index
    %c0_4 = arith.constant 0 : index
    %3 = vector.load %arg3[%c0_3, %c0_4] : memref<1x32xf32, #tpu.memory_space<vmem>>, vector<1x32xf32>
    %4 = vector.broadcast %3 : vector<1x32xf32> to vector<16x32xf32>
    %5 = arith.addf %2, %4 : vector<16x32xf32>
    %c0_5 = arith.constant 0 : index
    %c0_6 = arith.constant 0 : index
    %6 = vector.load %arg4[%c0_5, %c0_6] : memref<16x32xf32, #tpu.memory_space<vmem>>, vector<16x32xf32>
    tpu.vector_store %arg4[%c0_5, %c0_6], %5 {strides = array<i32>} : memref<16x32xf32, #tpu.memory_space<vmem>>, vector<16x32xf32>,
    return
  }
  func.func @transform_0(%arg0: i32) -> (i32, i32) {
    %c0_i32 = arith.constant 0 : i32
    %c0_i32_0 = arith.constant 0 : i32
    return %arg0, %c0_i32 : i32, i32
  }
  func.func @transform_1(%arg0: i32) -> (i32, i32) {
    %c0_i32 = arith.constant 0 : i32
    %c0_i32_0 = arith.constant 0 : i32
    %c0_i32_1 = arith.constant 0 : i32
    return %c0_i32, %c0_i32_0 : i32, i32
  }
  func.func @transform_2(%arg0: i32) -> (i32, i32) {
    %c0_i32 = arith.constant 0 : i32
    %c0_i32_0 = arith.constant 0 : i32
    %c0_i32_1 = arith.constant 0 : i32
    return %c0_i32, %c0_i32_0 : i32, i32
  }
  func.func @transform_3(%arg0: i32) -> (i32, i32) {
    %c0_i32 = arith.constant 0 : i32
    %c0_i32_0 = arith.constant 0 : i32
    return %arg0, %c0_i32 : i32, i32
  }
}

</mosaic_0001>

<llo_original>
// kernel: _lambda_.10
$region0: #{_lambda_.10}
  #allocation0 [shape = 'u32[]', space=smem, size = 0x4, offset = 0x4, fixed_abs, tag = 'smem constant byte address 0x4 - core index']
  #allocation1 [shape = 'u32[144,128]{1,0:T(1,128)}', space=vmem, size = 0x12000, scoped, tag = 'internal scratch']
  %s0 = inlined_call_operand.vmem [shape: f32[16,32], index: 0, kind: input, shape index: {}]
  %s1 = inlined_call_operand.vmem [shape: f32[32,96], index: 1, kind: input, shape index: {}]
  %s2 = inlined_call_operand.vmem [shape: f32[1,96], index: 2, kind: input, shape index: {}]
  %s3 = inlined_call_operand.vmem [shape: f32[16,96], index: 3, kind: output, shape index: {}]
  %s4 = sld [smem:[#allocation0]]
  $region22: #{_lambda_.10} parent=0
    _
  %s6 = ssub.s32 1, %s4
  %s7 = scalar_select 0, %s6, %s4
  // Predicated region
  $region2: #{_lambda_.10} parent=0 // pred_check
    _
  $region3: #{_lambda_.10} parent=0 // pred_check_branch
    %9 = sbr.rel (0) target = $region5
  $region4: #{_lambda_.10} parent=0 // pred_region
    _
  $region5: #{_lambda_.10} parent=0 // pred_fallthru
    _
  // Predicated region
  $region6: #{_lambda_.10} parent=0 // pred_check
    _
  $region7: #{_lambda_.10} parent=0 // pred_check_branch
    %11 = sbr.rel (0) target = $region9
  $region8: #{_lambda_.10} parent=0 // pred_region
    _
  $region9: #{_lambda_.10} parent=0 // pred_fallthru
    _
  // Predicated region
  $region10: #{_lambda_.10} parent=0 // pred_check
    _
  $region11: #{_lambda_.10} parent=0 // pred_check_branch
    %13 = sbr.rel (0) target = $region13
  $region12: #{_lambda_.10} parent=0 // pred_region
    _
  $region13: #{_lambda_.10} parent=0 // pred_fallthru
    _
  %v14 = vld [vmem:[%s0] sm:$0xff]
  %v15 = vld [vmem:[%s0 + $0x8] sm:$0xff]
  %v16 = vld [vmem:[%s1] sm:$0xff]
  %v17 = vld [vmem:[%s1 + $0x8] sm:$0xff]
  %v18 = vld [vmem:[%s1 + $0x10] sm:$0xff]
  %v19 = vld [vmem:[%s1 + $0x18] sm:$0xff]
  %v20 = vld [vmem:[%s2] sm:$0x1]
  %v22 = vlaneseq
  %v23 = vshrl.u32 %v22, 7
  %v24 = vsub.s32 0, %v23
  %v25 = vrot.slane %v20, %v24
  %vm27 = vcmask 261120
  %v29 = vsel %vm27, %v14, 0
  %v32 = vsel %vm27, %v15, 0
  %34 = vmatprep.subr.mxu0 0.0
  %35 = vmatpush1.msra.mxu0 %v16
  %36 = vmatprep.subr.mxu0 0.0
  %37 = vmatpush1.msra.mxu0 %v17
  %38 = vmatprep.subr.mxu0 0.0
  %39 = vmatpush1.msra.mxu0 %v18
  %40 = vmatprep.subr.mxu0 0.0
  %41 = vmatpush1.msra.mxu0 %v19
  %42 = vmatprep.subr.mxu0 0.0
  %43 = vmatpush1.msra.mxu0 0.0
  %44 = vmatprep.subr.mxu0 0.0
  %45 = vmatpush1.msra.mxu0 0.0
  %46 = vmatprep.subr.mxu0 0.0
  %47 = vmatpush1.msra.mxu0 0.0
  %48 = vmatprep.subr.mxu0 0.0
  %49 = vmatpush1.msra.mxu0 0.0
  %50 = vmatprep.subr.mxu0 0.0
  %51 = vmatpush1.msra.mxu0 0.0
  %52 = vmatprep.subr.mxu0 0.0
  %53 = vmatpush1.msra.mxu0 0.0
  %54 = vmatprep.subr.mxu0 0.0
  %55 = vmatpush1.msra.mxu0 0.0
  %56 = vmatprep.subr.mxu0 0.0
  %57 = vmatpush1.msra.mxu0 0.0
  %58 = vmatprep.subr.mxu0 0.0
  %59 = vmatpush1.msra.mxu0 0.0
  %60 = vmatprep.subr.mxu0 0.0
  %61 = vmatpush1.msra.mxu0 0.0
  %62 = vmatprep.subr.mxu0 0.0
  %63 = vmatpush1.msra.mxu0 0.0
  %64 = vmatprep.subr.mxu0 0.0
  %65 = vmatpush1.msra.mxu0 0.0
  %66 = vmatprep.subr.mxu0 0.0
  %67 = vmatpush1.msra.mxu0 0.0
  %68 = vmatprep.subr.mxu0 0.0
  %69 = vmatpush1.msra.mxu0 0.0
  %70 = vmatprep.subr.mxu0 0.0
  %71 = vmatpush1.msra.mxu0 0.0
  %72 = vmatprep.subr.mxu0 0.0
  %73 = vmatpush1.msra.mxu0 0.0
  %74 = vmatprep.subr.mxu0 0.0
  %75 = vmatpush1.msra.mxu0 0.0
  %76 = vmatprep.subr.mxu0 0.0
  %77 = vmatpush1.msra.mxu0 0.0
  %78 = vmatprep.subr.mxu0 0.0
  %79 = vmatpush1.msra.mxu0 0.0
  %80 = vmatprep.subr.mxu0 0.0
  %81 = vmatpush1.msra.mxu0 0.0
  %82 = vmatprep.subr.mxu0 0.0
  %83 = vmatpush1.msra.mxu0 0.0
  %84 = vmatprep.subr.mxu0 0.0
  %85 = vmatpush1.msra.mxu0 0.0
  %86 = vmatprep.subr.mxu0 0.0
  %87 = vmatpush1.msra.mxu0 0.0
  %88 = vmatprep.subr.mxu0 0.0
  %89 = vmatpush1.msra.mxu0 0.0
  %90 = vmatprep.subr.mxu0 0.0
  %91 = vmatpush1.msra.mxu0 0.0
  %92 = vmatprep.subr.mxu0 0.0
  %93 = vmatpush1.msra.mxu0 0.0
  %94 = vmatprep.subr.mxu0 0.0
  %95 = vmatpush1.msra.mxu0 0.0
  %96 = vmatprep.subr.mxu0 0.0
  %97 = vmatpush1.msra.mxu0 0.0
  %98 = vmatprep.mubr.f32.mxu0 0.0
  %99 = vmatmul.mubr.f32.gmra.mrb[0].mxu0 %v29
  %v100 = vpop.f32.mrb[0].mxu0
  %v101 = vadd.f32 %v25, %v100
  %v102 = vpop.f32.mrb[0].mxu0
  %103 = vmatprep.mubr.f32.mxu0 0.0
  %104 = vmatmul.mubr.f32.gmra.mrb[0].mxu0 %v32
  %v105 = vpop.f32.mrb[0].mxu0
  %v106 = vadd.f32 %v25, %v105
  %v107 = vpop.f32.mrb[0].mxu0
  %108 = vdwg.mxu0
  %vm109 = vcmask 785408
  %110 = vst.msk [vmem:[%s3] sm:$0xff] %vm109, %v101
  %111 = vst.msk [vmem:[%s3 + $0x8] sm:$0xff] %vm109, %v106
  // Predicated region
  $region14: #{_lambda_.10} parent=0 // pred_check
    _
  $region15: #{_lambda_.10} parent=0 // pred_check_branch
    %113 = sbr.rel (0) target = $region17
  $region16: #{_lambda_.10} parent=0 // pred_region
    _
  $region17: #{_lambda_.10} parent=0 // pred_fallthru
    _
  // Predicated region
  $region18: #{_lambda_.10} parent=0 // pred_check
    _
  $region19: #{_lambda_.10} parent=0 // pred_check_branch
    %115 = sbr.rel (0) target = $region21
  $region20: #{_lambda_.10} parent=0 // pred_region
    _
  $region21: #{_lambda_.10} parent=0 // pred_fallthru
    _

// kernel: _lambda_.9
$region0: #{_lambda_.9}
  #allocation0 [shape = 'u32[]', space=smem, size = 0x4, offset = 0x4, fixed_abs, tag = 'smem constant byte address 0x4 - core index']
  #allocation1 [shape = 'u32[144,128]{1,0:T(1,128)}', space=vmem, size = 0x12000, scoped, tag = 'internal scratch']
  %s0 = inlined_call_operand.hbm [shape: f32[16,32], index: 0, kind: input, shape index: {}]
  %s1 = inlined_call_operand.vmem [shape: f32[1,32], index: 1, kind: input, shape index: {}]
  %s2 = inlined_call_operand.vmem [shape: f32[1,32], index: 2, kind: input, shape index: {}]
  %s3 = inlined_call_operand.vmem [shape: f32[16,32], index: 3, kind: output, shape index: {}]
  %s4 = sld [smem:[#allocation0]]
  $region26: #{_lambda_.9} parent=0
    _
  %s6 = ssub.s32 1, %s4
  %s7 = scalar_select 0, %s6, %s4
  $region1: #{_lambda_.9} parent=0
    #allocation2 [shape = 'u8[8192]{0}', space=vmem, size = 0x2000, scoped, tag = 'input window, operand 0, single buffered']
    #allocation3 [shape = 's32[1]{0}', space=sflag, size = 0x4, scoped, tag = 'scoped memory for _lambda_.9']
    %8 = vsyncpa [#allocation3], 0
    // Predicated region
    $region2: #{_lambda_.9} parent=1 // pred_check
      _
    $region3: #{_lambda_.9} parent=1 // pred_check_branch
      %10 = sbr.rel (0) target = $region5
    $region4: #{_lambda_.9} parent=1 // pred_region
      %s12 = ssub.s32 256, 256
      %13 = vsyncadd [#allocation3], %s12
      %s14 = sshll.u32 [#allocation2], 4
      %s15 = int_to_ptr.vmem [resolvable:$true] %s14
      %20 = dma.hbm_to_vmem [thread:$0]  %s0, 256, %s15, [#allocation3], 128, 128, 8
    $region5: #{_lambda_.9} parent=1 // pred_fallthru
      _
    // Predicated region
    $region6: #{_lambda_.9} parent=1 // pred_check
      _
    $region7: #{_lambda_.9} parent=1 // pred_check_branch
      %22 = sbr.rel (0) target = $region9
    $region8: #{_lambda_.9} parent=1 // pred_region
      _
    $region9: #{_lambda_.9} parent=1 // pred_fallthru
      _
    // Predicated region
    $region10: #{_lambda_.9} parent=1 // pred_check
      _
    $region11: #{_lambda_.9} parent=1 // pred_check_branch
      %24 = sbr.rel (0) target = $region13
    $region12: #{_lambda_.9} parent=1 // pred_region
      _
    $region13: #{_lambda_.9} parent=1 // pred_fallthru
      _
    // Predicated region
    $region14: #{_lambda_.9} parent=1 // pred_check
      _
    $region15: #{_lambda_.9} parent=1 // pred_check_branch
      %26 = sbr.rel (0) target = $region17
    $region16: #{_lambda_.9} parent=1 // pred_region
      %27 = dma.done [#allocation3], 256
    $region17: #{_lambda_.9} parent=1 // pred_fallthru
      _
    %v28 = vld [vmem:[#allocation2] sm:$0xff]
    %v29 = vld [vmem:[#allocation2 + $0x8] sm:$0xff]
    %v30 = vld [vmem:[%s1] sm:$0x1]
    %v31 = vld [vmem:[%s2] sm:$0x1]
    %vm32 = vcmask 261120
    %v33 = vsel %vm32, %v28, 0.0
    %34 = vadd.xlane.f32.xlu0 %v33
    %v35 = vpop.xlane.xlu0 %34
    %v36 = vsel %vm32, %v29, 0.0
    %37 = vadd.xlane.f32.xlu0 %v36
    %v38 = vpop.xlane.xlu0 %37
    %v39 = vrcp.pop 32.0
    %v40 = vmul.f32 %v35, %v39
    %v41 = vmul.f32 %v38, %v39
    %v42 = vsub.f32 %v28, %v40
    %v43 = vsub.f32 %v29, %v41
    %v44 = vmul.f32 %v42, %v42
    %v45 = vmul.f32 %v43, %v43
    %v46 = vsel %vm32, %v44, 0.0
    %47 = vadd.xlane.f32.xlu0 %v46
    %v48 = vpop.xlane.xlu0 %47
    %v49 = vsel %vm32, %v45, 0.0
    %50 = vadd.xlane.f32.xlu0 %v49
    %v51 = vpop.xlane.xlu0 %50
    %v52 = vmul.f32 %v48, %v39
    %v53 = vmul.f32 %v51, %v39
    %v54 = vadd.f32 %v52, 1e-12
    %v55 = vadd.f32 %v53, 1e-12
    %v56 = vrsqrt.pop %v54
    %v57 = vrsqrt.pop %v55
    %v58 = vmul.f32 %v42, %v56
    %v59 = vmul.f32 %v43, %v57
    %v61 = vlaneseq
    %v62 = vshrl.u32 %v61, 7
    %v63 = vsub.s32 0, %v62
    %v64 = vrot.slane %v30, %v63
    %v66 = vmul.f32 %v58, %v64
    %v67 = vmul.f32 %v59, %v64
    %v69 = vlaneseq
    %v70 = vshrl.u32 %v69, 7
    %v71 = vsub.s32 0, %v70
    %v72 = vrot.slane %v31, %v71
    %v74 = vadd.f32 %v66, %v72
    %v75 = vadd.f32 %v67, %v72
    %76 = vst.msk [vmem:[%s3] sm:$0xff] %vm32, %v74
    %77 = vst.msk [vmem:[%s3 + $0x8] sm:$0xff] %vm32, %v75
    // Predicated region
    $region18: #{_lambda_.9} parent=1 // pred_check
      _
    $region19: #{_lambda_.9} parent=1 // pred_check_branch
      %79 = sbr.rel (0) target = $region21
    $region20: #{_lambda_.9} parent=1 // pred_region
      _
    $region21: #{_lambda_.9} parent=1 // pred_fallthru
      _
    // Predicated region
    $region22: #{_lambda_.9} parent=1 // pred_check
      _
    $region23: #{_lambda_.9} parent=1 // pred_check_branch
      %81 = sbr.rel (0) target = $region25
    $region24: #{_lambda_.9} parent=1 // pred_region
      _
    $region25: #{_lambda_.9} parent=1 // pred_fallthru
      _
    %82 = vsyncpa [#allocation3], 1

// kernel: _lambda_.12
$region0: #{_lambda_.12}
  #allocation0 [shape = 'u32[]', space=smem, size = 0x4, offset = 0x4, fixed_abs, tag = 'smem constant byte address 0x4 - core index']
  #allocation1 [shape = 'u32[144,128]{1,0:T(1,128)}', space=vmem, size = 0x12000, scoped, tag = 'internal scratch']
  %s0 = inlined_call_operand.vmem [shape: f32[16,32], index: 0, kind: input, shape index: {}]
  %s1 = inlined_call_operand.vmem [shape: f32[32,32], index: 1, kind: input, shape index: {}]
  %s2 = inlined_call_operand.vmem [shape: f32[1,32], index: 2, kind: input, shape index: {}]
  %s3 = inlined_call_operand.vmem [shape: f32[16,32], index: 3, kind: output, shape index: {}]
  %s4 = sld [smem:[#allocation0]]
  $region22: #{_lambda_.12} parent=0
    _
  %s6 = ssub.s32 1, %s4
  %s7 = scalar_select 0, %s6, %s4
  // Predicated region
  $region2: #{_lambda_.12} parent=0 // pred_check
    _
  $region3: #{_lambda_.12} parent=0 // pred_check_branch
    %9 = sbr.rel (0) target = $region5
  $region4: #{_lambda_.12} parent=0 // pred_region
    _
  $region5: #{_lambda_.12} parent=0 // pred_fallthru
    _
  // Predicated region
  $region6: #{_lambda_.12} parent=0 // pred_check
    _
  $region7: #{_lambda_.12} parent=0 // pred_check_branch
    %11 = sbr.rel (0) target = $region9
  $region8: #{_lambda_.12} parent=0 // pred_region
    _
  $region9: #{_lambda_.12} parent=0 // pred_fallthru
    _
  // Predicated region
  $region10: #{_lambda_.12} parent=0 // pred_check
    _
  $region11: #{_lambda_.12} parent=0 // pred_check_branch
    %13 = sbr.rel (0) target = $region13
  $region12: #{_lambda_.12} parent=0 // pred_region
    _
  $region13: #{_lambda_.12} parent=0 // pred_fallthru
    _
  %v14 = vld [vmem:[%s0] sm:$0xff]
  %v15 = vld [vmem:[%s0 + $0x8] sm:$0xff]
  %v16 = vld [vmem:[%s1] sm:$0xff]
  %v17 = vld [vmem:[%s1 + $0x8] sm:$0xff]
  %v18 = vld [vmem:[%s1 + $0x10] sm:$0xff]
  %v19 = vld [vmem:[%s1 + $0x18] sm:$0xff]
  %v20 = vld [vmem:[%s2] sm:$0x1]
  %v22 = vlaneseq
  %v23 = vshrl.u32 %v22, 7
  %v24 = vsub.s32 0, %v23
  %v25 = vrot.slane %v20, %v24
  %vm27 = vcmask 261120
  %v29 = vsel %vm27, %v14, 0
  %v32 = vsel %vm27, %v15, 0
  %34 = vmatprep.subr.mxu0 0.0
  %35 = vmatpush1.msra.mxu0 %v16
  %36 = vmatprep.subr.mxu0 0.0
  %37 = vmatpush1.msra.mxu0 %v17
  %38 = vmatprep.subr.mxu0 0.0
  %39 = vmatpush1.msra.mxu0 %v18
  %40 = vmatprep.subr.mxu0 0.0
  %41 = vmatpush1.msra.mxu0 %v19
  %42 = vmatprep.subr.mxu0 0.0
  %43 = vmatpush1.msra.mxu0 0.0
  %44 = vmatprep.subr.mxu0 0.0
  %45 = vmatpush1.msra.mxu0 0.0
  %46 = vmatprep.subr.mxu0 0.0
  %47 = vmatpush1.msra.mxu0 0.0
  %48 = vmatprep.subr.mxu0 0.0
  %49 = vmatpush1.msra.mxu0 0.0
  %50 = vmatprep.subr.mxu0 0.0
  %51 = vmatpush1.msra.mxu0 0.0
  %52 = vmatprep.subr.mxu0 0.0
  %53 = vmatpush1.msra.mxu0 0.0
  %54 = vmatprep.subr.mxu0 0.0
  %55 = vmatpush1.msra.mxu0 0.0
  %56 = vmatprep.subr.mxu0 0.0
  %57 = vmatpush1.msra.mxu0 0.0
  %58 = vmatprep.subr.mxu0 0.0
  %59 = vmatpush1.msra.mxu0 0.0
  %60 = vmatprep.subr.mxu0 0.0
  %61 = vmatpush1.msra.mxu0 0.0
  %62 = vmatprep.subr.mxu0 0.0
  %63 = vmatpush1.msra.mxu0 0.0
  %64 = vmatprep.subr.mxu0 0.0
  %65 = vmatpush1.msra.mxu0 0.0
  %66 = vmatprep.subr.mxu0 0.0
  %67 = vmatpush1.msra.mxu0 0.0
  %68 = vmatprep.subr.mxu0 0.0
  %69 = vmatpush1.msra.mxu0 0.0
  %70 = vmatprep.subr.mxu0 0.0
  %71 = vmatpush1.msra.mxu0 0.0
  %72 = vmatprep.subr.mxu0 0.0
  %73 = vmatpush1.msra.mxu0 0.0
  %74 = vmatprep.subr.mxu0 0.0
  %75 = vmatpush1.msra.mxu0 0.0
  %76 = vmatprep.subr.mxu0 0.0
  %77 = vmatpush1.msra.mxu0 0.0
  %78 = vmatprep.subr.mxu0 0.0
  %79 = vmatpush1.msra.mxu0 0.0
  %80 = vmatprep.subr.mxu0 0.0
  %81 = vmatpush1.msra.mxu0 0.0
  %82 = vmatprep.subr.mxu0 0.0
  %83 = vmatpush1.msra.mxu0 0.0
  %84 = vmatprep.subr.mxu0 0.0
  %85 = vmatpush1.msra.mxu0 0.0
  %86 = vmatprep.subr.mxu0 0.0
  %87 = vmatpush1.msra.mxu0 0.0
  %88 = vmatprep.subr.mxu0 0.0
  %89 = vmatpush1.msra.mxu0 0.0
  %90 = vmatprep.subr.mxu0 0.0
  %91 = vmatpush1.msra.mxu0 0.0
  %92 = vmatprep.subr.mxu0 0.0
  %93 = vmatpush1.msra.mxu0 0.0
  %94 = vmatprep.subr.mxu0 0.0
  %95 = vmatpush1.msra.mxu0 0.0
  %96 = vmatprep.subr.mxu0 0.0
  %97 = vmatpush1.msra.mxu0 0.0
  %98 = vmatprep.mubr.f32.mxu0 0.0
  %99 = vmatmul.mubr.f32.gmra.mrb[0].mxu0 %v29
  %v100 = vpop.f32.mrb[0].mxu0
  %v101 = vadd.f32 %v25, %v100
  %v102 = vpop.f32.mrb[0].mxu0
  %103 = vmatprep.mubr.f32.mxu0 0.0
  %104 = vmatmul.mubr.f32.gmra.mrb[0].mxu0 %v32
  %v105 = vpop.f32.mrb[0].mxu0
  %v106 = vadd.f32 %v25, %v105
  %v107 = vpop.f32.mrb[0].mxu0
  %108 = vdwg.mxu0
  %109 = vst.msk [vmem:[%s3] sm:$0xff] %vm27, %v101
  %110 = vst.msk [vmem:[%s3 + $0x8] sm:$0xff] %vm27, %v106
  // Predicated region
  $region14: #{_lambda_.12} parent=0 // pred_check
    _
  $region15: #{_lambda_.12} parent=0 // pred_check_branch
    %112 = sbr.rel (0) target = $region17
  $region16: #{_lambda_.12} parent=0 // pred_region
    _
  $region17: #{_lambda_.12} parent=0 // pred_fallthru
    _
  // Predicated region
  $region18: #{_lambda_.12} parent=0 // pred_check
    _
  $region19: #{_lambda_.12} parent=0 // pred_check_branch
    %114 = sbr.rel (0) target = $region21
  $region20: #{_lambda_.12} parent=0 // pred_region
    _
  $region21: #{_lambda_.12} parent=0 // pred_fallthru
    _

// kernel: _lambda_.14
$region0: #{_lambda_.14}
  #allocation0 [shape = 'u32[]', space=smem, size = 0x4, offset = 0x4, fixed_abs, tag = 'smem constant byte address 0x4 - core index']
  #allocation1 [shape = 'u32[144,128]{1,0:T(1,128)}', space=vmem, size = 0x12000, scoped, tag = 'internal scratch']
  %s0 = inlined_call_operand.vmem [shape: f32[16,32], index: 0, kind: input, shape index: {}]
  %s1 = inlined_call_operand.vmem [shape: f32[1,32], index: 1, kind: input, shape index: {}]
  %s2 = inlined_call_operand.vmem [shape: f32[1,32], index: 2, kind: input, shape index: {}]
  %s3 = inlined_call_operand.vmem [shape: f32[16,32], index: 3, kind: output, shape index: {}]
  %s4 = sld [smem:[#allocation0]]
  $region22: #{_lambda_.14} parent=0
    _
  %s6 = ssub.s32 1, %s4
  %s7 = scalar_select 0, %s6, %s4
  // Predicated region
  $region2: #{_lambda_.14} parent=0 // pred_check
    _
  $region3: #{_lambda_.14} parent=0 // pred_check_branch
    %9 = sbr.rel (0) target = $region5
  $region4: #{_lambda_.14} parent=0 // pred_region
    _
  $region5: #{_lambda_.14} parent=0 // pred_fallthru
    _
  // Predicated region
  $region6: #{_lambda_.14} parent=0 // pred_check
    _
  $region7: #{_lambda_.14} parent=0 // pred_check_branch
    %11 = sbr.rel (0) target = $region9
  $region8: #{_lambda_.14} parent=0 // pred_region
    _
  $region9: #{_lambda_.14} parent=0 // pred_fallthru
    _
  // Predicated region
  $region10: #{_lambda_.14} parent=0 // pred_check
    _
  $region11: #{_lambda_.14} parent=0 // pred_check_branch
    %13 = sbr.rel (0) target = $region13
  $region12: #{_lambda_.14} parent=0 // pred_region
    _
  $region13: #{_lambda_.14} parent=0 // pred_fallthru
    _
  %v14 = vld [vmem:[%s0] sm:$0xff]
  %v15 = vld [vmem:[%s0 + $0x8] sm:$0xff]
  %v16 = vld [vmem:[%s1] sm:$0x1]
  %v17 = vld [vmem:[%s2] sm:$0x1]
  %vm18 = vcmask 261120
  %v19 = vsel %vm18, %v14, 0.0
  %20 = vadd.xlane.f32.xlu0 %v19
  %v21 = vpop.xlane.xlu0 %20
  %v22 = vsel %vm18, %v15, 0.0
  %23 = vadd.xlane.f32.xlu0 %v22
  %v24 = vpop.xlane.xlu0 %23
  %v25 = vrcp.pop 32.0
  %v26 = vmul.f32 %v21, %v25
  %v27 = vmul.f32 %v24, %v25
  %v28 = vsub.f32 %v14, %v26
  %v29 = vsub.f32 %v15, %v27
  %v30 = vmul.f32 %v28, %v28
  %v31 = vmul.f32 %v29, %v29
  %v32 = vsel %vm18, %v30, 0.0
  %33 = vadd.xlane.f32.xlu0 %v32
  %v34 = vpop.xlane.xlu0 %33
  %v35 = vsel %vm18, %v31, 0.0
  %36 = vadd.xlane.f32.xlu0 %v35
  %v37 = vpop.xlane.xlu0 %36
  %v38 = vmul.f32 %v34, %v25
  %v39 = vmul.f32 %v37, %v25
  %v40 = vadd.f32 %v38, 1e-12
  %v41 = vadd.f32 %v39, 1e-12
  %v42 = vrsqrt.pop %v40
  %v43 = vrsqrt.pop %v41
  %v44 = vmul.f32 %v28, %v42
  %v45 = vmul.f32 %v29, %v43
  %v47 = vlaneseq
  %v48 = vshrl.u32 %v47, 7
  %v49 = vsub.s32 0, %v48
  %v50 = vrot.slane %v16, %v49
  %v52 = vmul.f32 %v44, %v50
  %v53 = vmul.f32 %v45, %v50
  %v55 = vlaneseq
  %v56 = vshrl.u32 %v55, 7
  %v57 = vsub.s32 0, %v56
  %v58 = vrot.slane %v17, %v57
  %v60 = vadd.f32 %v52, %v58
  %v61 = vadd.f32 %v53, %v58
  %62 = vst.msk [vmem:[%s3] sm:$0xff] %vm18, %v60
  %63 = vst.msk [vmem:[%s3 + $0x8] sm:$0xff] %vm18, %v61
  // Predicated region
  $region14: #{_lambda_.14} parent=0 // pred_check
    _
  $region15: #{_lambda_.14} parent=0 // pred_check_branch
    %65 = sbr.rel (0) target = $region17
  $region16: #{_lambda_.14} parent=0 // pred_region
    _
  $region17: #{_lambda_.14} parent=0 // pred_fallthru
    _
  // Predicated region
  $region18: #{_lambda_.14} parent=0 // pred_check
    _
  $region19: #{_lambda_.14} parent=0 // pred_check_branch
    %67 = sbr.rel (0) target = $region21
  $region20: #{_lambda_.14} parent=0 // pred_region
    _
  $region21: #{_lambda_.14} parent=0 // pred_fallthru
    _

// kernel: _lambda_.13
$region0: #{_lambda_.13}
  #allocation0 [shape = 'u32[]', space=smem, size = 0x4, offset = 0x4, fixed_abs, tag = 'smem constant byte address 0x4 - core index']
  #allocation1 [shape = 'u32[144,128]{1,0:T(1,128)}', space=vmem, size = 0x12000, scoped, tag = 'internal scratch']
  %s0 = inlined_call_operand.vmem [shape: f32[16,32], index: 0, kind: input, shape index: {}]
  %s1 = inlined_call_operand.vmem [shape: f32[1,32], index: 1, kind: input, shape index: {}]
  %s2 = inlined_call_operand.vmem [shape: f32[1,32], index: 2, kind: input, shape index: {}]
  %s3 = inlined_call_operand.vmem [shape: f32[32,8], index: 3, kind: input, shape index: {}]
  %s4 = inlined_call_operand.vmem [shape: f32[1,8], index: 4, kind: input, shape index: {}]
  %s5 = inlined_call_operand.vmem [shape: f32[8,32], index: 5, kind: input, shape index: {}]
  %s6 = inlined_call_operand.vmem [shape: f32[1,32], index: 6, kind: input, shape index: {}]
  %s7 = inlined_call_operand.vmem [shape: f32[1,32], index: 7, kind: input, shape index: {}]
  %s8 = inlined_call_operand.vmem [shape: f32[1,32], index: 8, kind: input, shape index: {}]
  %s9 = inlined_call_operand.vmem [shape: f32[16,32], index: 9, kind: output, shape index: {}]
  %s10 = sld [smem:[#allocation0]]
  $region46: #{_lambda_.13} parent=0
    _
  %s12 = ssub.s32 1, %s10
  %s13 = scalar_select 0, %s12, %s10
  // Predicated region
  $region2: #{_lambda_.13} parent=0 // pred_check
    _
  $region3: #{_lambda_.13} parent=0 // pred_check_branch
    %15 = sbr.rel (0) target = $region5
  $region4: #{_lambda_.13} parent=0 // pred_region
    _
  $region5: #{_lambda_.13} parent=0 // pred_fallthru
    _
  // Predicated region
  $region6: #{_lambda_.13} parent=0 // pred_check
    _
  $region7: #{_lambda_.13} parent=0 // pred_check_branch
    %17 = sbr.rel (0) target = $region9
  $region8: #{_lambda_.13} parent=0 // pred_region
    _
  $region9: #{_lambda_.13} parent=0 // pred_fallthru
    _
  // Predicated region
  $region10: #{_lambda_.13} parent=0 // pred_check
    _
  $region11: #{_lambda_.13} parent=0 // pred_check_branch
    %19 = sbr.rel (0) target = $region13
  $region12: #{_lambda_.13} parent=0 // pred_region
    _
  $region13: #{_lambda_.13} parent=0 // pred_fallthru
    _
  // Predicated region
  $region14: #{_lambda_.13} parent=0 // pred_check
    _
  $region15: #{_lambda_.13} parent=0 // pred_check_branch
    %21 = sbr.rel (0) target = $region17
  $region16: #{_lambda_.13} parent=0 // pred_region
    _
  $region17: #{_lambda_.13} parent=0 // pred_fallthru
    _
  // Predicated region
  $region18: #{_lambda_.13} parent=0 // pred_check
    _
  $region19: #{_lambda_.13} parent=0 // pred_check_branch
    %23 = sbr.rel (0) target = $region21
  $region20: #{_lambda_.13} parent=0 // pred_region
    _
  $region21: #{_lambda_.13} parent=0 // pred_fallthru
    _
  // Predicated region
  $region22: #{_lambda_.13} parent=0 // pred_check
    _
  $region23: #{_lambda_.13} parent=0 // pred_check_branch
    %25 = sbr.rel (0) target = $region25
  $region24: #{_lambda_.13} parent=0 // pred_region
    _
  $region25: #{_lambda_.13} parent=0 // pred_fallthru
    _
  // Predicated region
  $region26: #{_lambda_.13} parent=0 // pred_check
    _
  $region27: #{_lambda_.13} parent=0 // pred_check_branch
    %27 = sbr.rel (0) target = $region29
  $region28: #{_lambda_.13} parent=0 // pred_region
    _
  $region29: #{_lambda_.13} parent=0 // pred_fallthru
    _
  // Predicated region
  $region30: #{_lambda_.13} parent=0 // pred_check
    _
  $region31: #{_lambda_.13} parent=0 // pred_check_branch
    %29 = sbr.rel (0) target = $region33
  $region32: #{_lambda_.13} parent=0 // pred_region
    _
  $region33: #{_lambda_.13} parent=0 // pred_fallthru
    _
  // Predicated region
  $region34: #{_lambda_.13} parent=0 // pred_check
    _
  $region35: #{_lambda_.13} parent=0 // pred_check_branch
    %31 = sbr.rel (0) target = $region37
  $region36: #{_lambda_.13} parent=0 // pred_region
    _
  $region37: #{_lambda_.13} parent=0 // pred_fallthru
    _
  %v32 = vld [vmem:[%s0] sm:$0xff]
  %v33 = vld [vmem:[%s0 + $0x8] sm:$0xff]
  %v34 = vld [vmem:[%s1] sm:$0x1]
  %v35 = vld [vmem:[%s2] sm:$0x1]
  %vm36 = vcmask 261120
  %v37 = vsel %vm36, %v32, 0.0
  %38 = vadd.xlane.f32.xlu0 %v37
  %v39 = vpop.xlane.xlu0 %38
  %v40 = vsel %vm36, %v33, 0.0
  %41 = vadd.xlane.f32.xlu0 %v40
  %v42 = vpop.xlane.xlu0 %41
  %v43 = vrcp.pop 32.0
  %v44 = vmul.f32 %v39, %v43
  %v45 = vmul.f32 %v42, %v43
  %v46 = vsub.f32 %v32, %v44
  %v47 = vsub.f32 %v33, %v45
  %v48 = vmul.f32 %v46, %v46
  %v49 = vmul.f32 %v47, %v47
  %v50 = vsel %vm36, %v48, 0.0
  %51 = vadd.xlane.f32.xlu0 %v50
  %v52 = vpop.xlane.xlu0 %51
  %v53 = vsel %vm36, %v49, 0.0
  %54 = vadd.xlane.f32.xlu0 %v53
  %v55 = vpop.xlane.xlu0 %54
  %v56 = vmul.f32 %v52, %v43
  %v57 = vmul.f32 %v55, %v43
  %v58 = vadd.f32 %v56, 1e-05
  %v59 = vadd.f32 %v57, 1e-05
  %v60 = vrsqrt.pop %v58
  %v61 = vrsqrt.pop %v59
  %v62 = vmul.f32 %v46, %v60
  %v63 = vmul.f32 %v47, %v61
  %v65 = vlaneseq
  %v66 = vshrl.u32 %v65, 7
  %v67 = vsub.s32 0, %v66
  %v68 = vrot.slane %v34, %v67
  %v70 = vmul.f32 %v62, %v68
  %v71 = vmul.f32 %v63, %v68
  %v73 = vlaneseq
  %v74 = vshrl.u32 %v73, 7
  %v75 = vsub.s32 0, %v74
  %v76 = vrot.slane %v35, %v75
  %v78 = vadd.f32 %v70, %v76
  %v79 = vadd.f32 %v71, %v76
  %v80 = vld [vmem:[%s3] sm:$0xff]
  %v81 = vld [vmem:[%s3 + $0x8] sm:$0xff]
  %v82 = vld [vmem:[%s3 + $0x10] sm:$0xff]
  %v83 = vld [vmem:[%s3 + $0x18] sm:$0xff]
  %v84 = vld [vmem:[%s4] sm:$0x1]
  %v85 = vld [vmem:[%s5] sm:$0xff]
  %v86 = vld [vmem:[%s6] sm:$0x1]
  %v88 = vlaneseq
  %v89 = vshrl.u32 %v88, 7
  %v90 = vsub.s32 0, %v89
  %v91 = vrot.slane %v84, %v90
  %v94 = vsel %vm36, %v78, 0
  %v97 = vsel %vm36, %v79, 0
  %99 = vmatprep.subr.mxu0 0.0
  %100 = vmatpush1.msra.mxu0 %v80
  %101 = vmatprep.subr.mxu0 0.0
  %102 = vmatpush1.msra.mxu0 %v81
  %103 = vmatprep.subr.mxu0 0.0
  %104 = vmatpush1.msra.mxu0 %v82
  %105 = vmatprep.subr.mxu0 0.0
  %106 = vmatpush1.msra.mxu0 %v83
  %107 = vmatprep.subr.mxu0 0.0
  %108 = vmatpush1.msra.mxu0 0.0
  %109 = vmatprep.subr.mxu0 0.0
  %110 = vmatpush1.msra.mxu0 0.0
  %111 = vmatprep.subr.mxu0 0.0
  %112 = vmatpush1.msra.mxu0 0.0
  %113 = vmatprep.subr.mxu0 0.0
  %114 = vmatpush1.msra.mxu0 0.0
  %115 = vmatprep.subr.mxu0 0.0
  %116 = vmatpush1.msra.mxu0 0.0
  %117 = vmatprep.subr.mxu0 0.0
  %118 = vmatpush1.msra.mxu0 0.0
  %119 = vmatprep.subr.mxu0 0.0
  %120 = vmatpush1.msra.mxu0 0.0
  %121 = vmatprep.subr.mxu0 0.0
  %122 = vmatpush1.msra.mxu0 0.0
  %123 = vmatprep.subr.mxu0 0.0
  %124 = vmatpush1.msra.mxu0 0.0
  %125 = vmatprep.subr.mxu0 0.0
  %126 = vmatpush1.msra.mxu0 0.0
  %127 = vmatprep.subr.mxu0 0.0
  %128 = vmatpush1.msra.mxu0 0.0
  %129 = vmatprep.subr.mxu0 0.0
  %130 = vmatpush1.msra.mxu0 0.0
  %131 = vmatprep.subr.mxu0 0.0
  %132 = vmatpush1.msra.mxu0 0.0
  %133 = vmatprep.subr.mxu0 0.0
  %134 = vmatpush1.msra.mxu0 0.0
  %135 = vmatprep.subr.mxu0 0.0
  %136 = vmatpush1.msra.mxu0 0.0
  %137 = vmatprep.subr.mxu0 0.0
  %138 = vmatpush1.msra.mxu0 0.0
  %139 = vmatprep.subr.mxu0 0.0
  %140 = vmatpush1.msra.mxu0 0.0
  %141 = vmatprep.subr.mxu0 0.0
  %142 = vmatpush1.msra.mxu0 0.0
  %143 = vmatprep.subr.mxu0 0.0
  %144 = vmatpush1.msra.mxu0 0.0
  %145 = vmatprep.subr.mxu0 0.0
  %146 = vmatpush1.msra.mxu0 0.0
  %147 = vmatprep.subr.mxu0 0.0
  %148 = vmatpush1.msra.mxu0 0.0
  %149 = vmatprep.subr.mxu0 0.0
  %150 = vmatpush1.msra.mxu0 0.0
  %151 = vmatprep.subr.mxu0 0.0
  %152 = vmatpush1.msra.mxu0 0.0
  %153 = vmatprep.subr.mxu0 0.0
  %154 = vmatpush1.msra.mxu0 0.0
  %155 = vmatprep.subr.mxu0 0.0
  %156 = vmatpush1.msra.mxu0 0.0
  %157 = vmatprep.subr.mxu0 0.0
  %158 = vmatpush1.msra.mxu0 0.0
  %159 = vmatprep.subr.mxu0 0.0
  %160 = vmatpush1.msra.mxu0 0.0
  %161 = vmatprep.subr.mxu0 0.0
  %162 = vmatpush1.msra.mxu0 0.0
  %163 = vmatprep.mubr.f32.mxu0 0.0
  %164 = vmatmul.mubr.f32.gmra.mrb[0].mxu0 %v94
  %v165 = vpop.f32.mrb[0].mxu0
  %v166 = vadd.f32 %v91, %v165
  %v167 = vpop.f32.mrb[0].mxu0
  %168 = vmatprep.mubr.f32.mxu0 0.0
  %169 = vmatmul.mubr.f32.gmra.mrb[0].mxu0 %v97
  %v170 = vpop.f32.mrb[0].mxu0
  %v171 = vadd.f32 %v91, %v170
  %v172 = vpop.f32.mrb[0].mxu0
  %173 = vdwg.mxu0
  %v174 = vmax.f32 %v166, 0.0
  %v175 = vmax.f32 %v171, 0.0
  %v177 = vlaneseq
  %v178 = vshrl.u32 %v177, 7
  %v179 = vsub.s32 0, %v178
  %v180 = vrot.slane %v86, %v179
  %vm182 = vcmask 64512
  %v184 = vsel %vm182, %v174, 0
  %v187 = vsel %vm182, %v175, 0
  %189 = vmatprep.subr.mxu0 0.0
  %190 = vmatpush1.msra.mxu0 %v85
  %191 = vmatprep.subr.mxu0 0.0
  %192 = vmatpush1.msra.mxu0 0.0
  %193 = vmatprep.subr.mxu0 0.0
  %194 = vmatpush1.msra.mxu0 0.0
  %195 = vmatprep.subr.mxu0 0.0
  %196 = vmatpush1.msra.mxu0 0.0
  %197 = vmatprep.subr.mxu0 0.0
  %198 = vmatpush1.msra.mxu0 0.0
  %199 = vmatprep.subr.mxu0 0.0
  %200 = vmatpush1.msra.mxu0 0.0
  %201 = vmatprep.subr.mxu0 0.0
  %202 = vmatpush1.msra.mxu0 0.0
  %203 = vmatprep.subr.mxu0 0.0
  %204 = vmatpush1.msra.mxu0 0.0
  %205 = vmatprep.subr.mxu0 0.0
  %206 = vmatpush1.msra.mxu0 0.0
  %207 = vmatprep.subr.mxu0 0.0
  %208 = vmatpush1.msra.mxu0 0.0
  %209 = vmatprep.subr.mxu0 0.0
  %210 = vmatpush1.msra.mxu0 0.0
  %211 = vmatprep.subr.mxu0 0.0
  %212 = vmatpush1.msra.mxu0 0.0
  %213 = vmatprep.subr.mxu0 0.0
  %214 = vmatpush1.msra.mxu0 0.0
  %215 = vmatprep.subr.mxu0 0.0
  %216 = vmatpush1.msra.mxu0 0.0
  %217 = vmatprep.subr.mxu0 0.0
  %218 = vmatpush1.msra.mxu0 0.0
  %219 = vmatprep.subr.mxu0 0.0
  %220 = vmatpush1.msra.mxu0 0.0
  %221 = vmatprep.subr.mxu0 0.0
  %222 = vmatpush1.msra.mxu0 0.0
  %223 = vmatprep.subr.mxu0 0.0
  %224 = vmatpush1.msra.mxu0 0.0
  %225 = vmatprep.subr.mxu0 0.0
  %226 = vmatpush1.msra.mxu0 0.0
  %227 = vmatprep.subr.mxu0 0.0
  %228 = vmatpush1.msra.mxu0 0.0
  %229 = vmatprep.subr.mxu0 0.0
  %230 = vmatpush1.msra.mxu0 0.0
  %231 = vmatprep.subr.mxu0 0.0
  %232 = vmatpush1.msra.mxu0 0.0
  %233 = vmatprep.subr.mxu0 0.0
  %234 = vmatpush1.msra.mxu0 0.0
  %235 = vmatprep.subr.mxu0 0.0
  %236 = vmatpush1.msra.mxu0 0.0
  %237 = vmatprep.subr.mxu0 0.0
  %238 = vmatpush1.msra.mxu0 0.0
  %239 = vmatprep.subr.mxu0 0.0
  %240 = vmatpush1.msra.mxu0 0.0
  %241 = vmatprep.subr.mxu0 0.0
  %242 = vmatpush1.msra.mxu0 0.0
  %243 = vmatprep.subr.mxu0 0.0
  %244 = vmatpush1.msra.mxu0 0.0
  %245 = vmatprep.subr.mxu0 0.0
  %246 = vmatpush1.msra.mxu0 0.0
  %247 = vmatprep.subr.mxu0 0.0
  %248 = vmatpush1.msra.mxu0 0.0
  %249 = vmatprep.subr.mxu0 0.0
  %250 = vmatpush1.msra.mxu0 0.0
  %251 = vmatprep.subr.mxu0 0.0
  %252 = vmatpush1.msra.mxu0 0.0
  %253 = vmatprep.mubr.f32.mxu0 0.0
  %254 = vmatmul.mubr.f32.gmra.mrb[0].mxu0 %v184
  %v255 = vpop.f32.mrb[0].mxu0
  %v256 = vadd.f32 %v180, %v255
  %v257 = vpop.f32.mrb[0].mxu0
  %258 = vmatprep.mubr.f32.mxu0 0.0
  %259 = vmatmul.mubr.f32.gmra.mrb[0].mxu0 %v187
  %v260 = vpop.f32.mrb[0].mxu0
  %v261 = vadd.f32 %v180, %v260
  %v262 = vpop.f32.mrb[0].mxu0
  %263 = vdwg.mxu0
  %v264 = vld [vmem:[%s7] sm:$0x1]
  %v265 = vld [vmem:[%s8] sm:$0x1]
  %v266 = vsel %vm36, %v256, 0.0
  %267 = vadd.xlane.f32.xlu0 %v266
  %v268 = vpop.xlane.xlu0 %267
  %v269 = vsel %vm36, %v261, 0.0
  %270 = vadd.xlane.f32.xlu0 %v269
  %v271 = vpop.xlane.xlu0 %270
  %v272 = vmul.f32 %v268, %v43
  %v273 = vmul.f32 %v271, %v43
  %v274 = vsub.f32 %v256, %v272
  %v275 = vsub.f32 %v261, %v273
  %v276 = vmul.f32 %v274, %v274
  %v277 = vmul.f32 %v275, %v275
  %v278 = vsel %vm36, %v276, 0.0
  %279 = vadd.xlane.f32.xlu0 %v278
  %v280 = vpop.xlane.xlu0 %279
  %v281 = vsel %vm36, %v277, 0.0
  %282 = vadd.xlane.f32.xlu0 %v281
  %v283 = vpop.xlane.xlu0 %282
  %v284 = vmul.f32 %v280, %v43
  %v285 = vmul.f32 %v283, %v43
  %v286 = vadd.f32 %v284, 1e-05
  %v287 = vadd.f32 %v285, 1e-05
  %v288 = vrsqrt.pop %v286
  %v289 = vrsqrt.pop %v287
  %v290 = vmul.f32 %v274, %v288
  %v291 = vmul.f32 %v275, %v289
  %v293 = vlaneseq
  %v294 = vshrl.u32 %v293, 7
  %v295 = vsub.s32 0, %v294
  %v296 = vrot.slane %v264, %v295
  %v298 = vmul.f32 %v290, %v296
  %v299 = vmul.f32 %v291, %v296
  %v301 = vlaneseq
  %v302 = vshrl.u32 %v301, 7
  %v303 = vsub.s32 0, %v302
  %v304 = vrot.slane %v265, %v303
  %v306 = vadd.f32 %v298, %v304
  %v307 = vadd.f32 %v299, %v304
  %v308 = vadd.f32 %v306, %v32
  %v309 = vadd.f32 %v307, %v33
  %310 = vst.msk [vmem:[%s9] sm:$0xff] %vm36, %v308
  %311 = vst.msk [vmem:[%s9 + $0x8] sm:$0xff] %vm36, %v309
  // Predicated region
  $region38: #{_lambda_.13} parent=0 // pred_check
    _
  $region39: #{_lambda_.13} parent=0 // pred_check_branch
    %313 = sbr.rel (0) target = $region41
  $region40: #{_lambda_.13} parent=0 // pred_region
    _
  $region41: #{_lambda_.13} parent=0 // pred_fallthru
    _
  // Predicated region
  $region42: #{_lambda_.13} parent=0 // pred_check
    _
  $region43: #{_lambda_.13} parent=0 // pred_check_branch
    %315 = sbr.rel (0) target = $region45
  $region44: #{_lambda_.13} parent=0 // pred_region
    _
  $region45: #{_lambda_.13} parent=0 // pred_fallthru
    _

// kernel: _lambda_.11
$region0: #{_lambda_.11}
  #allocation0 [shape = 'u32[]', space=smem, size = 0x4, offset = 0x4, fixed_abs, tag = 'smem constant byte address 0x4 - core index']
  #allocation1 [shape = 'u32[144,128]{1,0:T(1,128)}', space=vmem, size = 0x12000, scoped, tag = 'internal scratch']
  %s0 = inlined_call_operand.vmem [shape: f32[8,8,8], index: 0, kind: input, shape index: {}]
  %s1 = inlined_call_operand.vmem [shape: f32[8,16,8], index: 1, kind: input, shape index: {}]
  %s2 = inlined_call_operand.vmem [shape: f32[8,16,8], index: 2, kind: input, shape index: {}]
  %s3 = inlined_call_operand.vmem [shape: f32[1,1,16], index: 3, kind: input, shape index: {}]
  %s4 = inlined_call_operand.vmem [shape: f32[8,8,8], index: 4, kind: output, shape index: {0}]
  %s5 = inlined_call_operand.vmem [shape: f32[8,8,16], index: 5, kind: output, shape index: {1}]
  %6 = xla_tuple %s4, %s5
  %s7 = sld [smem:[#allocation0]]
  $region34: #{_lambda_.11} parent=0
    _
  %s9 = ssub.s32 1, %s7
  %s10 = scalar_select 0, %s9, %s7
  // Predicated region
  $region2: #{_lambda_.11} parent=0 // pred_check
    _
  $region3: #{_lambda_.11} parent=0 // pred_check_branch
    %12 = sbr.rel (0) target = $region5
  $region4: #{_lambda_.11} parent=0 // pred_region
    _
  $region5: #{_lambda_.11} parent=0 // pred_fallthru
    _
  // Predicated region
  $region6: #{_lambda_.11} parent=0 // pred_check
    _
  $region7: #{_lambda_.11} parent=0 // pred_check_branch
    %14 = sbr.rel (0) target = $region9
  $region8: #{_lambda_.11} parent=0 // pred_region
    _
  $region9: #{_lambda_.11} parent=0 // pred_fallthru
    _
  // Predicated region
  $region10: #{_lambda_.11} parent=0 // pred_check
    _
  $region11: #{_lambda_.11} parent=0 // pred_check_branch
    %16 = sbr.rel (0) target = $region13
  $region12: #{_lambda_.11} parent=0 // pred_region
    _
  $region13: #{_lambda_.11} parent=0 // pred_fallthru
    _
  // Predicated region
  $region14: #{_lambda_.11} parent=0 // pred_check
    _
  $region15: #{_lambda_.11} parent=0 // pred_check_branch
    %18 = sbr.rel (0) target = $region17
  $region16: #{_lambda_.11} parent=0 // pred_region
    _
  $region17: #{_lambda_.11} parent=0 // pred_fallthru
    _
  %v19 = vld [vmem:[%s0] sm:$0xff]
  %v20 = vld [vmem:[%s0 + $0x8] sm:$0xff]
  %v21 = vld [vmem:[%s0 + $0x10] sm:$0xff]
  %v22 = vld [vmem:[%s0 + $0x18] sm:$0xff]
  %v23 = vld [vmem:[%s0 + $0x20] sm:$0xff]
  %v24 = vld [vmem:[%s0 + $0x28] sm:$0xff]
  %v25 = vld [vmem:[%s0 + $0x30] sm:$0xff]
  %v26 = vld [vmem:[%s0 + $0x38] sm:$0xff]
  %v27 = vld [vmem:[%s1] sm:$0xff]
  %v28 = vld [vmem:[%s1 + $0x8] sm:$0xff]
  %v29 = vld [vmem:[%s1 + $0x10] sm:$0xff]
  %v30 = vld [vmem:[%s1 + $0x18] sm:$0xff]
  %v31 = vld [vmem:[%s1 + $0x20] sm:$0xff]
  %v32 = vld [vmem:[%s1 + $0x28] sm:$0xff]
  %v33 = vld [vmem:[%s1 + $0x30] sm:$0xff]
  %v34 = vld [vmem:[%s1 + $0x38] sm:$0xff]
  %v35 = vld [vmem:[%s1 + $0x40] sm:$0xff]
  %v36 = vld [vmem:[%s1 + $0x48] sm:$0xff]
  %v37 = vld [vmem:[%s1 + $0x50] sm:$0xff]
  %v38 = vld [vmem:[%s1 + $0x58] sm:$0xff]
  %v39 = vld [vmem:[%s1 + $0x60] sm:$0xff]
  %v40 = vld [vmem:[%s1 + $0x68] sm:$0xff]
  %v41 = vld [vmem:[%s1 + $0x70] sm:$0xff]
  %v42 = vld [vmem:[%s1 + $0x78] sm:$0xff]
  %v43 = vld [vmem:[%s2] sm:$0xff]
  %v44 = vld [vmem:[%s2 + $0x8] sm:$0xff]
  %v45 = vld [vmem:[%s2 + $0x10] sm:$0xff]
  %v46 = vld [vmem:[%s2 + $0x18] sm:$0xff]
  %v47 = vld [vmem:[%s2 + $0x20] sm:$0xff]
  %v48 = vld [vmem:[%s2 + $0x28] sm:$0xff]
  %v49 = vld [vmem:[%s2 + $0x30] sm:$0xff]
  %v50 = vld [vmem:[%s2 + $0x38] sm:$0xff]
  %v51 = vld [vmem:[%s2 + $0x40] sm:$0xff]
  %v52 = vld [vmem:[%s2 + $0x48] sm:$0xff]
  %v53 = vld [vmem:[%s2 + $0x50] sm:$0xff]
  %v54 = vld [vmem:[%s2 + $0x58] sm:$0xff]
  %v55 = vld [vmem:[%s2 + $0x60] sm:$0xff]
  %v56 = vld [vmem:[%s2 + $0x68] sm:$0xff]
  %v57 = vld [vmem:[%s2 + $0x70] sm:$0xff]
  %v58 = vld [vmem:[%s2 + $0x78] sm:$0xff]
  %vm59 = vcmask 64512
  %v61 = vsel %vm59, %v19, 0
  %v64 = vsel %vm59, %v27, 0
  %v67 = vsel %vm59, %v28, 0
  %69 = vmatprep.subr.mxu0 0.0
  %70 = vmatpush1.xpose.msra.mxu0 %v64
  %71 = vmatprep.subr.mxu0 0.0
  %72 = vmatpush1.xpose.msra.mxu0 %v67
  %73 = vmatprep.subr.mxu0 0.0
  %74 = vmatpush1.xpose.msra.mxu0 0.0
  %75 = vmatprep.subr.mxu0 0.0
  %76 = vmatpush1.xpose.msra.mxu0 0.0
  %77 = vmatprep.subr.mxu0 0.0
  %78 = vmatpush1.xpose.msra.mxu0 0.0
  %79 = vmatprep.subr.mxu0 0.0
  %80 = vmatpush1.xpose.msra.mxu0 0.0
  %81 = vmatprep.subr.mxu0 0.0
  %82 = vmatpush1.xpose.msra.mxu0 0.0
  %83 = vmatprep.subr.mxu0 0.0
  %84 = vmatpush1.xpose.msra.mxu0 0.0
  %85 = vmatprep.subr.mxu0 0.0
  %86 = vmatpush1.xpose.msra.mxu0 0.0
  %87 = vmatprep.subr.mxu0 0.0
  %88 = vmatpush1.xpose.msra.mxu0 0.0
  %89 = vmatprep.subr.mxu0 0.0
  %90 = vmatpush1.xpose.msra.mxu0 0.0
  %91 = vmatprep.subr.mxu0 0.0
  %92 = vmatpush1.xpose.msra.mxu0 0.0
  %93 = vmatprep.subr.mxu0 0.0
  %94 = vmatpush1.xpose.msra.mxu0 0.0
  %95 = vmatprep.subr.mxu0 0.0
  %96 = vmatpush1.xpose.msra.mxu0 0.0
  %97 = vmatprep.subr.mxu0 0.0
  %98 = vmatpush1.xpose.msra.mxu0 0.0
  %99 = vmatprep.subr.mxu0 0.0
  %100 = vmatpush1.xpose.msra.mxu0 0.0
  %101 = vmatprep.subr.mxu0 0.0
  %102 = vmatpush1.xpose.msra.mxu0 0.0
  %103 = vmatprep.subr.mxu0 0.0
  %104 = vmatpush1.xpose.msra.mxu0 0.0
  %105 = vmatprep.subr.mxu0 0.0
  %106 = vmatpush1.xpose.msra.mxu0 0.0
  %107 = vmatprep.subr.mxu0 0.0
  %108 = vmatpush1.xpose.msra.mxu0 0.0
  %109 = vmatprep.subr.mxu0 0.0
  %110 = vmatpush1.xpose.msra.mxu0 0.0
  %111 = vmatprep.subr.mxu0 0.0
  %112 = vmatpush1.xpose.msra.mxu0 0.0
  %113 = vmatprep.subr.mxu0 0.0
  %114 = vmatpush1.xpose.msra.mxu0 0.0
  %115 = vmatprep.subr.mxu0 0.0
  %116 = vmatpush1.xpose.msra.mxu0 0.0
  %117 = vmatprep.subr.mxu0 0.0
  %118 = vmatpush1.xpose.msra.mxu0 0.0
  %119 = vmatprep.subr.mxu0 0.0
  %120 = vmatpush1.xpose.msra.mxu0 0.0
  %121 = vmatprep.subr.mxu0 0.0
  %122 = vmatpush1.xpose.msra.mxu0 0.0
  %123 = vmatprep.subr.mxu0 0.0
  %124 = vmatpush1.xpose.msra.mxu0 0.0
  %125 = vmatprep.subr.mxu0 0.0
  %126 = vmatpush1.xpose.msra.mxu0 0.0
  %127 = vmatprep.subr.mxu0 0.0
  %128 = vmatpush1.xpose.msra.mxu0 0.0
  %129 = vmatprep.subr.mxu0 0.0
  %130 = vmatpush1.xpose.msra.mxu0 0.0
  %131 = vmatprep.subr.mxu0 0.0
  %132 = vmatpush1.xpose.msra.mxu0 0.0
  %133 = vmatprep.mubr.f32.mxu0 0.0
  %134 = vmatmul.mubr.f32.gmra.mrb[0].mxu0 %v61
  %v135 = vpop.f32.mrb[0].mxu0
  %v136 = vadd.f32 0.0, %v135
  %v137 = vpop.f32.mrb[0].mxu0
  %138 = vdwg.mxu0
  %v140 = vsel %vm59, %v20, 0
  %v143 = vsel %vm59, %v29, 0
  %v146 = vsel %vm59, %v30, 0
  %148 = vmatprep.subr.mxu0 0.0
  %149 = vmatpush1.xpose.msra.mxu0 %v143
  %150 = vmatprep.subr.mxu0 0.0
  %151 = vmatpush1.xpose.msra.mxu0 %v146
  %152 = vmatprep.subr.mxu0 0.0
  %153 = vmatpush1.xpose.msra.mxu0 0.0
  %154 = vmatprep.subr.mxu0 0.0
  %155 = vmatpush1.xpose.msra.mxu0 0.0
  %156 = vmatprep.subr.mxu0 0.0
  %157 = vmatpush1.xpose.msra.mxu0 0.0
  %158 = vmatprep.subr.mxu0 0.0
  %159 = vmatpush1.xpose.msra.mxu0 0.0
  %160 = vmatprep.subr.mxu0 0.0
  %161 = vmatpush1.xpose.msra.mxu0 0.0
  %162 = vmatprep.subr.mxu0 0.0
  %163 = vmatpush1.xpose.msra.mxu0 0.0
  %164 = vmatprep.subr.mxu0 0.0
  %165 = vmatpush1.xpose.msra.mxu0 0.0
  %166 = vmatprep.subr.mxu0 0.0
  %167 = vmatpush1.xpose.msra.mxu0 0.0
  %168 = vmatprep.subr.mxu0 0.0
  %169 = vmatpush1.xpose.msra.mxu0 0.0
  %170 = vmatprep.subr.mxu0 0.0
  %171 = vmatpush1.xpose.msra.mxu0 0.0
  %172 = vmatprep.subr.mxu0 0.0
  %173 = vmatpush1.xpose.msra.mxu0 0.0
  %174 = vmatprep.subr.mxu0 0.0
  %175 = vmatpush1.xpose.msra.mxu0 0.0
  %176 = vmatprep.subr.mxu0 0.0
  %177 = vmatpush1.xpose.msra.mxu0 0.0
  %178 = vmatprep.subr.mxu0 0.0
  %179 = vmatpush1.xpose.msra.mxu0 0.0
  %180 = vmatprep.subr.mxu0 0.0
  %181 = vmatpush1.xpose.msra.mxu0 0.0
  %182 = vmatprep.subr.mxu0 0.0
  %183 = vmatpush1.xpose.msra.mxu0 0.0
  %184 = vmatprep.subr.mxu0 0.0
  %185 = vmatpush1.xpose.msra.mxu0 0.0
  %186 = vmatprep.subr.mxu0 0.0
  %187 = vmatpush1.xpose.msra.mxu0 0.0
  %188 = vmatprep.subr.mxu0 0.0
  %189 = vmatpush1.xpose.msra.mxu0 0.0
  %190 = vmatprep.subr.mxu0 0.0
  %191 = vmatpush1.xpose.msra.mxu0 0.0
  %192 = vmatprep.subr.mxu0 0.0
  %193 = vmatpush1.xpose.msra.mxu0 0.0
  %194 = vmatprep.subr.mxu0 0.0
  %195 = vmatpush1.xpose.msra.mxu0 0.0
  %196 = vmatprep.subr.mxu0 0.0
  %197 = vmatpush1.xpose.msra.mxu0 0.0
  %198 = vmatprep.subr.mxu0 0.0
  %199 = vmatpush1.xpose.msra.mxu0 0.0
  %200 = vmatprep.subr.mxu0 0.0
  %201 = vmatpush1.xpose.msra.mxu0 0.0
  %202 = vmatprep.subr.mxu0 0.0
  %203 = vmatpush1.xpose.msra.mxu0 0.0
  %204 = vmatprep.subr.mxu0 0.0
  %205 = vmatpush1.xpose.msra.mxu0 0.0
  %206 = vmatprep.subr.mxu0 0.0
  %207 = vmatpush1.xpose.msra.mxu0 0.0
  %208 = vmatprep.subr.mxu0 0.0
  %209 = vmatpush1.xpose.msra.mxu0 0.0
  %210 = vmatprep.subr.mxu0 0.0
  %211 = vmatpush1.xpose.msra.mxu0 0.0
  %212 = vmatprep.mubr.f32.mxu0 0.0
  %213 = vmatmul.mubr.f32.gmra.mrb[0].mxu0 %v140
  %v214 = vpop.f32.mrb[0].mxu0
  %v215 = vadd.f32 0.0, %v214
  %v216 = vpop.f32.mrb[0].mxu0
  %217 = vdwg.mxu0
  %v219 = vsel %vm59, %v21, 0
  %v222 = vsel %vm59, %v31, 0
  %v225 = vsel %vm59, %v32, 0
  %227 = vmatprep.subr.mxu0 0.0
  %228 = vmatpush1.xpose.msra.mxu0 %v222
  %229 = vmatprep.subr.mxu0 0.0
  %230 = vmatpush1.xpose.msra.mxu0 %v225
  %231 = vmatprep.subr.mxu0 0.0
  %232 = vmatpush1.xpose.msra.mxu0 0.0
  %233 = vmatprep.subr.mxu0 0.0
  %234 = vmatpush1.xpose.msra.mxu0 0.0
  %235 = vmatprep.subr.mxu0 0.0
  %236 = vmatpush1.xpose.msra.mxu0 0.0
  %237 = vmatprep.subr.mxu0 0.0
  %238 = vmatpush1.xpose.msra.mxu0 0.0
  %239 = vmatprep.subr.mxu0 0.0
  %240 = vmatpush1.xpose.msra.mxu0 0.0
  %241 = vmatprep.subr.mxu0 0.0
  %242 = vmatpush1.xpose.msra.mxu0 0.0
  %243 = vmatprep.subr.mxu0 0.0
  %244 = vmatpush1.xpose.msra.mxu0 0.0
  %245 = vmatprep.subr.mxu0 0.0
  %246 = vmatpush1.xpose.msra.mxu0 0.0
  %247 = vmatprep.subr.mxu0 0.0
  %248 = vmatpush1.xpose.msra.mxu0 0.0
  %249 = vmatprep.subr.mxu0 0.0
  %250 = vmatpush1.xpose.msra.mxu0 0.0
  %251 = vmatprep.subr.mxu0 0.0
  %252 = vmatpush1.xpose.msra.mxu0 0.0
  %253 = vmatprep.subr.mxu0 0.0
  %254 = vmatpush1.xpose.msra.mxu0 0.0
  %255 = vmatprep.subr.mxu0 0.0
  %256 = vmatpush1.xpose.msra.mxu0 0.0
  %257 = vmatprep.subr.mxu0 0.0
  %258 = vmatpush1.xpose.msra.mxu0 0.0
  %259 = vmatprep.subr.mxu0 0.0
  %260 = vmatpush1.xpose.msra.mxu0 0.0
  %261 = vmatprep.subr.mxu0 0.0
  %262 = vmatpush1.xpose.msra.mxu0 0.0
  %263 = vmatprep.subr.mxu0 0.0
  %264 = vmatpush1.xpose.msra.mxu0 0.0
  %265 = vmatprep.subr.mxu0 0.0
  %266 = vmatpush1.xpose.msra.mxu0 0.0
  %267 = vmatprep.subr.mxu0 0.0
  %268 = vmatpush1.xpose.msra.mxu0 0.0
  %269 = vmatprep.subr.mxu0 0.0
  %270 = vmatpush1.xpose.msra.mxu0 0.0
  %271 = vmatprep.subr.mxu0 0.0
  %272 = vmatpush1.xpose.msra.mxu0 0.0
  %273 = vmatprep.subr.mxu0 0.0
  %274 = vmatpush1.xpose.msra.mxu0 0.0
  %275 = vmatprep.subr.mxu0 0.0
  %276 = vmatpush1.xpose.msra.mxu0 0.0
  %277 = vmatprep.subr.mxu0 0.0
  %278 = vmatpush1.xpose.msra.mxu0 0.0
  %279 = vmatprep.subr.mxu0 0.0
  %280 = vmatpush1.xpose.msra.mxu0 0.0
  %281 = vmatprep.subr.mxu0 0.0
  %282 = vmatpush1.xpose.msra.mxu0 0.0
  %283 = vmatprep.subr.mxu0 0.0
  %284 = vmatpush1.xpose.msra.mxu0 0.0
  %285 = vmatprep.subr.mxu0 0.0
  %286 = vmatpush1.xpose.msra.mxu0 0.0
  %287 = vmatprep.subr.mxu0 0.0
  %288 = vmatpush1.xpose.msra.mxu0 0.0
  %289 = vmatprep.subr.mxu0 0.0
  %290 = vmatpush1.xpose.msra.mxu0 0.0
  %291 = vmatprep.mubr.f32.mxu0 0.0
  %292 = vmatmul.mubr.f32.gmra.mrb[0].mxu0 %v219
  %v293 = vpop.f32.mrb[0].mxu0
  %v294 = vadd.f32 0.0, %v293
  %v295 = vpop.f32.mrb[0].mxu0
  %296 = vdwg.mxu0
  %v298 = vsel %vm59, %v22, 0
  %v301 = vsel %vm59, %v33, 0
  %v304 = vsel %vm59, %v34, 0
  %306 = vmatprep.subr.mxu0 0.0
  %307 = vmatpush1.xpose.msra.mxu0 %v301
  %308 = vmatprep.subr.mxu0 0.0
  %309 = vmatpush1.xpose.msra.mxu0 %v304
  %310 = vmatprep.subr.mxu0 0.0
  %311 = vmatpush1.xpose.msra.mxu0 0.0
  %312 = vmatprep.subr.mxu0 0.0
  %313 = vmatpush1.xpose.msra.mxu0 0.0
  %314 = vmatprep.subr.mxu0 0.0
  %315 = vmatpush1.xpose.msra.mxu0 0.0
  %316 = vmatprep.subr.mxu0 0.0
  %317 = vmatpush1.xpose.msra.mxu0 0.0
  %318 = vmatprep.subr.mxu0 0.0
  %319 = vmatpush1.xpose.msra.mxu0 0.0
  %320 = vmatprep.subr.mxu0 0.0
  %321 = vmatpush1.xpose.msra.mxu0 0.0
  %322 = vmatprep.subr.mxu0 0.0
  %323 = vmatpush1.xpose.msra.mxu0 0.0
  %324 = vmatprep.subr.mxu0 0.0
  %325 = vmatpush1.xpose.msra.mxu0 0.0
  %326 = vmatprep.subr.mxu0 0.0
  %327 = vmatpush1.xpose.msra.mxu0 0.0
  %328 = vmatprep.subr.mxu0 0.0
  %329 = vmatpush1.xpose.msra.mxu0 0.0
  %330 = vmatprep.subr.mxu0 0.0
  %331 = vmatpush1.xpose.msra.mxu0 0.0
  %332 = vmatprep.subr.mxu0 0.0
  %333 = vmatpush1.xpose.msra.mxu0 0.0
  %334 = vmatprep.subr.mxu0 0.0
  %335 = vmatpush1.xpose.msra.mxu0 0.0
  %336 = vmatprep.subr.mxu0 0.0
  %337 = vmatpush1.xpose.msra.mxu0 0.0
  %338 = vmatprep.subr.mxu0 0.0
  %339 = vmatpush1.xpose.msra.mxu0 0.0
  %340 = vmatprep.subr.mxu0 0.0
  %341 = vmatpush1.xpose.msra.mxu0 0.0
  %342 = vmatprep.subr.mxu0 0.0
  %343 = vmatpush1.xpose.msra.mxu0 0.0
  %344 = vmatprep.subr.mxu0 0.0
  %345 = vmatpush1.xpose.msra.mxu0 0.0
  %346 = vmatprep.subr.mxu0 0.0
  %347 = vmatpush1.xpose.msra.mxu0 0.0
  %348 = vmatprep.subr.mxu0 0.0
  %349 = vmatpush1.xpose.msra.mxu0 0.0
  %350 = vmatprep.subr.mxu0 0.0
  %351 = vmatpush1.xpose.msra.mxu0 0.0
  %352 = vmatprep.subr.mxu0 0.0
  %353 = vmatpush1.xpose.msra.mxu0 0.0
  %354 = vmatprep.subr.mxu0 0.0
  %355 = vmatpush1.xpose.msra.mxu0 0.0
  %356 = vmatprep.subr.mxu0 0.0
  %357 = vmatpush1.xpose.msra.mxu0 0.0
  %358 = vmatprep.subr.mxu0 0.0
  %359 = vmatpush1.xpose.msra.mxu0 0.0
  %360 = vmatprep.subr.mxu0 0.0
  %361 = vmatpush1.xpose.msra.mxu0 0.0
  %362 = vmatprep.subr.mxu0 0.0
  %363 = vmatpush1.xpose.msra.mxu0 0.0
  %364 = vmatprep.subr.mxu0 0.0
  %365 = vmatpush1.xpose.msra.mxu0 0.0
  %366 = vmatprep.subr.mxu0 0.0
  %367 = vmatpush1.xpose.msra.mxu0 0.0
  %368 = vmatprep.subr.mxu0 0.0
  %369 = vmatpush1.xpose.msra.mxu0 0.0
  %370 = vmatprep.mubr.f32.mxu0 0.0
  %371 = vmatmul.mubr.f32.gmra.mrb[0].mxu0 %v298
  %v372 = vpop.f32.mrb[0].mxu0
  %v373 = vadd.f32 0.0, %v372
  %v374 = vpop.f32.mrb[0].mxu0
  %375 = vdwg.mxu0
  %v377 = vsel %vm59, %v23, 0
  %v380 = vsel %vm59, %v35, 0
  %v383 = vsel %vm59, %v36, 0
  %385 = vmatprep.subr.mxu0 0.0
  %386 = vmatpush1.xpose.msra.mxu0 %v380
  %387 = vmatprep.subr.mxu0 0.0
  %388 = vmatpush1.xpose.msra.mxu0 %v383
  %389 = vmatprep.subr.mxu0 0.0
  %390 = vmatpush1.xpose.msra.mxu0 0.0
  %391 = vmatprep.subr.mxu0 0.0
  %392 = vmatpush1.xpose.msra.mxu0 0.0
  %393 = vmatprep.subr.mxu0 0.0
  %394 = vmatpush1.xpose.msra.mxu0 0.0
  %395 = vmatprep.subr.mxu0 0.0
  %396 = vmatpush1.xpose.msra.mxu0 0.0
  %397 = vmatprep.subr.mxu0 0.0
  %398 = vmatpush1.xpose.msra.mxu0 0.0
  %399 = vmatprep.subr.mxu0 0.0
  %400 = vmatpush1.xpose.msra.mxu0 0.0
  %401 = vmatprep.subr.mxu0 0.0
  %402 = vmatpush1.xpose.msra.mxu0 0.0
  %403 = vmatprep.subr.mxu0 0.0
  %404 = vmatpush1.xpose.msra.mxu0 0.0
  %405 = vmatprep.subr.mxu0 0.0
  %406 = vmatpush1.xpose.msra.mxu0 0.0
  %407 = vmatprep.subr.mxu0 0.0
  %408 = vmatpush1.xpose.msra.mxu0 0.0
  %409 = vmatprep.subr.mxu0 0.0
  %410 = vmatpush1.xpose.msra.mxu0 0.0
  %411 = vmatprep.subr.mxu0 0.0
  %412 = vmatpush1.xpose.msra.mxu0 0.0
  %413 = vmatprep.subr.mxu0 0.0
  %414 = vmatpush1.xpose.msra.mxu0 0.0
  %415 = vmatprep.subr.mxu0 0.0
  %416 = vmatpush1.xpose.msra.mxu0 0.0
  %417 = vmatprep.subr.mxu0 0.0
  %418 = vmatpush1.xpose.msra.mxu0 0.0
  %419 = vmatprep.subr.mxu0 0.0
  %420 = vmatpush1.xpose.msra.mxu0 0.0
  %421 = vmatprep.subr.mxu0 0.0
  %422 = vmatpush1.xpose.msra.mxu0 0.0
  %423 = vmatprep.subr.mxu0 0.0
  %424 = vmatpush1.xpose.msra.mxu0 0.0
  %425 = vmatprep.subr.mxu0 0.0
  %426 = vmatpush1.xpose.msra.mxu0 0.0
  %427 = vmatprep.subr.mxu0 0.0
  %428 = vmatpush1.xpose.msra.mxu0 0.0
  %429 = vmatprep.subr.mxu0 0.0
  %430 = vmatpush1.xpose.msra.mxu0 0.0
  %431 = vmatprep.subr.mxu0 0.0
  %432 = vmatpush1.xpose.msra.mxu0 0.0
  %433 = vmatprep.subr.mxu0 0.0
  %434 = vmatpush1.xpose.msra.mxu0 0.0
  %435 = vmatprep.subr.mxu0 0.0
  %436 = vmatpush1.xpose.msra.mxu0 0.0
  %437 = vmatprep.subr.mxu0 0.0
  %438 = vmatpush1.xpose.msra.mxu0 0.0
  %439 = vmatprep.subr.mxu0 0.0
  %440 = vmatpush1.xpose.msra.mxu0 0.0
  %441 = vmatprep.subr.mxu0 0.0
  %442 = vmatpush1.xpose.msra.mxu0 0.0
  %443 = vmatprep.subr.mxu0 0.0
  %444 = vmatpush1.xpose.msra.mxu0 0.0
  %445 = vmatprep.subr.mxu0 0.0
  %446 = vmatpush1.xpose.msra.mxu0 0.0
  %447 = vmatprep.subr.mxu0 0.0
  %448 = vmatpush1.xpose.msra.mxu0 0.0
  %449 = vmatprep.mubr.f32.mxu0 0.0
  %450 = vmatmul.mubr.f32.gmra.mrb[0].mxu0 %v377
  %v451 = vpop.f32.mrb[0].mxu0
  %v452 = vadd.f32 0.0, %v451
  %v453 = vpop.f32.mrb[0].mxu0
  %454 = vdwg.mxu0
  %v456 = vsel %vm59, %v24, 0
  %v459 = vsel %vm59, %v37, 0
  %v462 = vsel %vm59, %v38, 0
  %464 = vmatprep.subr.mxu0 0.0
  %465 = vmatpush1.xpose.msra.mxu0 %v459
  %466 = vmatprep.subr.mxu0 0.0
  %467 = vmatpush1.xpose.msra.mxu0 %v462
  %468 = vmatprep.subr.mxu0 0.0
  %469 = vmatpush1.xpose.msra.mxu0 0.0
  %470 = vmatprep.subr.mxu0 0.0
  %471 = vmatpush1.xpose.msra.mxu0 0.0
  %472 = vmatprep.subr.mxu0 0.0
  %473 = vmatpush1.xpose.msra.mxu0 0.0
  %474 = vmatprep.subr.mxu0 0.0
  %475 = vmatpush1.xpose.msra.mxu0 0.0
  %476 = vmatprep.subr.mxu0 0.0
  %477 = vmatpush1.xpose.msra.mxu0 0.0
  %478 = vmatprep.subr.mxu0 0.0
  %479 = vmatpush1.xpose.msra.mxu0 0.0
  %480 = vmatprep.subr.mxu0 0.0
  %481 = vmatpush1.xpose.msra.mxu0 0.0
  %482 = vmatprep.subr.mxu0 0.0
  %483 = vmatpush1.xpose.msra.mxu0 0.0
  %484 = vmatprep.subr.mxu0 0.0
  %485 = vmatpush1.xpose.msra.mxu0 0.0
  %486 = vmatprep.subr.mxu0 0.0
  %487 = vmatpush1.xpose.msra.mxu0 0.0
  %488 = vmatprep.subr.mxu0 0.0
  %489 = vmatpush1.xpose.msra.mxu0 0.0
  %490 = vmatprep.subr.mxu0 0.0
  %491 = vmatpush1.xpose.msra.mxu0 0.0
  %492 = vmatprep.subr.mxu0 0.0
  %493 = vmatpush1.xpose.msra.mxu0 0.0
  %494 = vmatprep.subr.mxu0 0.0
  %495 = vmatpush1.xpose.msra.mxu0 0.0
  %496 = vmatprep.subr.mxu0 0.0
  %497 = vmatpush1.xpose.msra.mxu0 0.0
  %498 = vmatprep.subr.mxu0 0.0
  %499 = vmatpush1.xpose.msra.mxu0 0.0
  %500 = vmatprep.subr.mxu0 0.0
  %501 = vmatpush1.xpose.msra.mxu0 0.0
  %502 = vmatprep.subr.mxu0 0.0
  %503 = vmatpush1.xpose.msra.mxu0 0.0
  %504 = vmatprep.subr.mxu0 0.0
  %505 = vmatpush1.xpose.msra.mxu0 0.0
  %506 = vmatprep.subr.mxu0 0.0
  %507 = vmatpush1.xpose.msra.mxu0 0.0
  %508 = vmatprep.subr.mxu0 0.0
  %509 = vmatpush1.xpose.msra.mxu0 0.0
  %510 = vmatprep.subr.mxu0 0.0
  %511 = vmatpush1.xpose.msra.mxu0 0.0
  %512 = vmatprep.subr.mxu0 0.0
  %513 = vmatpush1.xpose.msra.mxu0 0.0
  %514 = vmatprep.subr.mxu0 0.0
  %515 = vmatpush1.xpose.msra.mxu0 0.0
  %516 = vmatprep.subr.mxu0 0.0
  %517 = vmatpush1.xpose.msra.mxu0 0.0
  %518 = vmatprep.subr.mxu0 0.0
  %519 = vmatpush1.xpose.msra.mxu0 0.0
  %520 = vmatprep.subr.mxu0 0.0
  %521 = vmatpush1.xpose.msra.mxu0 0.0
  %522 = vmatprep.subr.mxu0 0.0
  %523 = vmatpush1.xpose.msra.mxu0 0.0
  %524 = vmatprep.subr.mxu0 0.0
  %525 = vmatpush1.xpose.msra.mxu0 0.0
  %526 = vmatprep.subr.mxu0 0.0
  %527 = vmatpush1.xpose.msra.mxu0 0.0
  %528 = vmatprep.mubr.f32.mxu0 0.0
  %529 = vmatmul.mubr.f32.gmra.mrb[0].mxu0 %v456
  %v530 = vpop.f32.mrb[0].mxu0
  %v531 = vadd.f32 0.0, %v530
  %v532 = vpop.f32.mrb[0].mxu0
  %533 = vdwg.mxu0
  %v535 = vsel %vm59, %v25, 0
  %v538 = vsel %vm59, %v39, 0
  %v541 = vsel %vm59, %v40, 0
  %543 = vmatprep.subr.mxu0 0.0
  %544 = vmatpush1.xpose.msra.mxu0 %v538
  %545 = vmatprep.subr.mxu0 0.0
  %546 = vmatpush1.xpose.msra.mxu0 %v541
  %547 = vmatprep.subr.mxu0 0.0
  %548 = vmatpush1.xpose.msra.mxu0 0.0
  %549 = vmatprep.subr.mxu0 0.0
  %550 = vmatpush1.xpose.msra.mxu0 0.0
  %551 = vmatprep.subr.mxu0 0.0
  %552 = vmatpush1.xpose.msra.mxu0 0.0
  %553 = vmatprep.subr.mxu0 0.0
  %554 = vmatpush1.xpose.msra.mxu0 0.0
  %555 = vmatprep.subr.mxu0 0.0
  %556 = vmatpush1.xpose.msra.mxu0 0.0
  %557 = vmatprep.subr.mxu0 0.0
  %558 = vmatpush1.xpose.msra.mxu0 0.0
  %559 = vmatprep.subr.mxu0 0.0
  %560 = vmatpush1.xpose.msra.mxu0 0.0
  %561 = vmatprep.subr.mxu0 0.0
  %562 = vmatpush1.xpose.msra.mxu0 0.0
  %563 = vmatprep.subr.mxu0 0.0
  %564 = vmatpush1.xpose.msra.mxu0 0.0
  %565 = vmatprep.subr.mxu0 0.0
  %566 = vmatpush1.xpose.msra.mxu0 0.0
  %567 = vmatprep.subr.mxu0 0.0
  %568 = vmatpush1.xpose.msra.mxu0 0.0
  %569 = vmatprep.subr.mxu0 0.0
  %570 = vmatpush1.xpose.msra.mxu0 0.0
  %571 = vmatprep.subr.mxu0 0.0
  %572 = vmatpush1.xpose.msra.mxu0 0.0
  %573 = vmatprep.subr.mxu0 0.0
  %574 = vmatpush1.xpose.msra.mxu0 0.0
  %575 = vmatprep.subr.mxu0 0.0
  %576 = vmatpush1.xpose.msra.mxu0 0.0
  %577 = vmatprep.subr.mxu0 0.0
  %578 = vmatpush1.xpose.msra.mxu0 0.0
  %579 = vmatprep.subr.mxu0 0.0
  %580 = vmatpush1.xpose.msra.mxu0 0.0
  %581 = vmatprep.subr.mxu0 0.0
  %582 = vmatpush1.xpose.msra.mxu0 0.0
  %583 = vmatprep.subr.mxu0 0.0
  %584 = vmatpush1.xpose.msra.mxu0 0.0
  %585 = vmatprep.subr.mxu0 0.0
  %586 = vmatpush1.xpose.msra.mxu0 0.0
  %587 = vmatprep.subr.mxu0 0.0
  %588 = vmatpush1.xpose.msra.mxu0 0.0
  %589 = vmatprep.subr.mxu0 0.0
  %590 = vmatpush1.xpose.msra.mxu0 0.0
  %591 = vmatprep.subr.mxu0 0.0
  %592 = vmatpush1.xpose.msra.mxu0 0.0
  %593 = vmatprep.subr.mxu0 0.0
  %594 = vmatpush1.xpose.msra.mxu0 0.0
  %595 = vmatprep.subr.mxu0 0.0
  %596 = vmatpush1.xpose.msra.mxu0 0.0
  %597 = vmatprep.subr.mxu0 0.0
  %598 = vmatpush1.xpose.msra.mxu0 0.0
  %599 = vmatprep.subr.mxu0 0.0
  %600 = vmatpush1.xpose.msra.mxu0 0.0
  %601 = vmatprep.subr.mxu0 0.0
  %602 = vmatpush1.xpose.msra.mxu0 0.0
  %603 = vmatprep.subr.mxu0 0.0
  %604 = vmatpush1.xpose.msra.mxu0 0.0
  %605 = vmatprep.subr.mxu0 0.0
  %606 = vmatpush1.xpose.msra.mxu0 0.0
  %607 = vmatprep.mubr.f32.mxu0 0.0
  %608 = vmatmul.mubr.f32.gmra.mrb[0].mxu0 %v535
  %v609 = vpop.f32.mrb[0].mxu0
  %v610 = vadd.f32 0.0, %v609
  %v611 = vpop.f32.mrb[0].mxu0
  %612 = vdwg.mxu0
  %v614 = vsel %vm59, %v26, 0
  %v617 = vsel %vm59, %v41, 0
  %v620 = vsel %vm59, %v42, 0
  %622 = vmatprep.subr.mxu0 0.0
  %623 = vmatpush1.xpose.msra.mxu0 %v617
  %624 = vmatprep.subr.mxu0 0.0
  %625 = vmatpush1.xpose.msra.mxu0 %v620
  %626 = vmatprep.subr.mxu0 0.0
  %627 = vmatpush1.xpose.msra.mxu0 0.0
  %628 = vmatprep.subr.mxu0 0.0
  %629 = vmatpush1.xpose.msra.mxu0 0.0
  %630 = vmatprep.subr.mxu0 0.0
  %631 = vmatpush1.xpose.msra.mxu0 0.0
  %632 = vmatprep.subr.mxu0 0.0
  %633 = vmatpush1.xpose.msra.mxu0 0.0
  %634 = vmatprep.subr.mxu0 0.0
  %635 = vmatpush1.xpose.msra.mxu0 0.0
  %636 = vmatprep.subr.mxu0 0.0
  %637 = vmatpush1.xpose.msra.mxu0 0.0
  %638 = vmatprep.subr.mxu0 0.0
  %639 = vmatpush1.xpose.msra.mxu0 0.0
  %640 = vmatprep.subr.mxu0 0.0
  %641 = vmatpush1.xpose.msra.mxu0 0.0
  %642 = vmatprep.subr.mxu0 0.0
  %643 = vmatpush1.xpose.msra.mxu0 0.0
  %644 = vmatprep.subr.mxu0 0.0
  %645 = vmatpush1.xpose.msra.mxu0 0.0
  %646 = vmatprep.subr.mxu0 0.0
  %647 = vmatpush1.xpose.msra.mxu0 0.0
  %648 = vmatprep.subr.mxu0 0.0
  %649 = vmatpush1.xpose.msra.mxu0 0.0
  %650 = vmatprep.subr.mxu0 0.0
  %651 = vmatpush1.xpose.msra.mxu0 0.0
  %652 = vmatprep.subr.mxu0 0.0
  %653 = vmatpush1.xpose.msra.mxu0 0.0
  %654 = vmatprep.subr.mxu0 0.0
  %655 = vmatpush1.xpose.msra.mxu0 0.0
  %656 = vmatprep.subr.mxu0 0.0
  %657 = vmatpush1.xpose.msra.mxu0 0.0
  %658 = vmatprep.subr.mxu0 0.0
  %659 = vmatpush1.xpose.msra.mxu0 0.0
  %660 = vmatprep.subr.mxu0 0.0
  %661 = vmatpush1.xpose.msra.mxu0 0.0
  %662 = vmatprep.subr.mxu0 0.0
  %663 = vmatpush1.xpose.msra.mxu0 0.0
  %664 = vmatprep.subr.mxu0 0.0
  %665 = vmatpush1.xpose.msra.mxu0 0.0
  %666 = vmatprep.subr.mxu0 0.0
  %667 = vmatpush1.xpose.msra.mxu0 0.0
  %668 = vmatprep.subr.mxu0 0.0
  %669 = vmatpush1.xpose.msra.mxu0 0.0
  %670 = vmatprep.subr.mxu0 0.0
  %671 = vmatpush1.xpose.msra.mxu0 0.0
  %672 = vmatprep.subr.mxu0 0.0
  %673 = vmatpush1.xpose.msra.mxu0 0.0
  %674 = vmatprep.subr.mxu0 0.0
  %675 = vmatpush1.xpose.msra.mxu0 0.0
  %676 = vmatprep.subr.mxu0 0.0
  %677 = vmatpush1.xpose.msra.mxu0 0.0
  %678 = vmatprep.subr.mxu0 0.0
  %679 = vmatpush1.xpose.msra.mxu0 0.0
  %680 = vmatprep.subr.mxu0 0.0
  %681 = vmatpush1.xpose.msra.mxu0 0.0
  %682 = vmatprep.subr.mxu0 0.0
  %683 = vmatpush1.xpose.msra.mxu0 0.0
  %684 = vmatprep.subr.mxu0 0.0
  %685 = vmatpush1.xpose.msra.mxu0 0.0
  %686 = vmatprep.mubr.f32.mxu0 0.0
  %687 = vmatmul.mubr.f32.gmra.mrb[0].mxu0 %v614
  %v688 = vpop.f32.mrb[0].mxu0
  %v689 = vadd.f32 0.0, %v688
  %v690 = vpop.f32.mrb[0].mxu0
  %691 = vdwg.mxu0
  %v692 = vmul.f32 %v136, 0.35355338
  %v693 = vmul.f32 %v215, 0.35355338
  %v694 = vmul.f32 %v294, 0.35355338
  %v695 = vmul.f32 %v373, 0.35355338
  %v696 = vmul.f32 %v452, 0.35355338
  %v697 = vmul.f32 %v531, 0.35355338
  %v698 = vmul.f32 %v610, 0.35355338
  %v699 = vmul.f32 %v689, 0.35355338
  %v700 = vld [vmem:[%s3] sm:$0x1]
  %v702 = vlaneseq
  %v703 = vshrl.u32 %v702, 7
  %v704 = vsub.s32 0, %v703
  %v705 = vrot.slane %v700, %v704
  %v707 = vadd.f32 %v692, %v705
  %v708 = vadd.f32 %v693, %v705
  %v709 = vadd.f32 %v694, %v705
  %v710 = vadd.f32 %v695, %v705
  %v711 = vadd.f32 %v696, %v705
  %v712 = vadd.f32 %v697, %v705
  %v713 = vadd.f32 %v698, %v705
  %v714 = vadd.f32 %v699, %v705
  %vm715 = vcmask 130048
  %v716 = vsel %vm715, %v707, -inf
  %717 = vmax.xlane.f32.xlu0 %v716
  %v718 = vpop.xlane.xlu0 %717
  %v719 = vsel %vm715, %v708, -inf
  %720 = vmax.xlane.f32.xlu0 %v719
  %v721 = vpop.xlane.xlu0 %720
  %v722 = vsel %vm715, %v709, -inf
  %723 = vmax.xlane.f32.xlu0 %v722
  %v724 = vpop.xlane.xlu0 %723
  %v725 = vsel %vm715, %v710, -inf
  %726 = vmax.xlane.f32.xlu0 %v725
  %v727 = vpop.xlane.xlu0 %726
  %v728 = vsel %vm715, %v711, -inf
  %729 = vmax.xlane.f32.xlu0 %v728
  %v730 = vpop.xlane.xlu0 %729
  %v731 = vsel %vm715, %v712, -inf
  %732 = vmax.xlane.f32.xlu0 %v731
  %v733 = vpop.xlane.xlu0 %732
  %v734 = vsel %vm715, %v713, -inf
  %735 = vmax.xlane.f32.xlu0 %v734
  %v736 = vpop.xlane.xlu0 %735
  %v737 = vsel %vm715, %v714, -inf
  %738 = vmax.xlane.f32.xlu0 %v737
  %v739 = vpop.xlane.xlu0 %738
  %v740 = vsub.f32 %v707, %v718
  %v741 = vsub.f32 %v708, %v721
  %v742 = vsub.f32 %v709, %v724
  %v743 = vsub.f32 %v710, %v727
  %v744 = vsub.f32 %v711, %v730
  %v745 = vsub.f32 %v712, %v733
  %v746 = vsub.f32 %v713, %v736
  %v747 = vsub.f32 %v714, %v739
  %v748 = vmul.f32 %v740, 1.442695
  %v749 = vpow.pop %v748
  %v750 = vmul.f32 %v741, 1.442695
  %v751 = vpow.pop %v750
  %v752 = vmul.f32 %v742, 1.442695
  %v753 = vpow.pop %v752
  %v754 = vmul.f32 %v743, 1.442695
  %v755 = vpow.pop %v754
  %v756 = vmul.f32 %v744, 1.442695
  %v757 = vpow.pop %v756
  %v758 = vmul.f32 %v745, 1.442695
  %v759 = vpow.pop %v758
  %v760 = vmul.f32 %v746, 1.442695
  %v761 = vpow.pop %v760
  %v762 = vmul.f32 %v747, 1.442695
  %v763 = vpow.pop %v762
  %v764 = vsel %vm715, %v749, 0.0
  %765 = vadd.xlane.f32.xlu0 %v764
  %v766 = vpop.xlane.xlu0 %765
  %v767 = vsel %vm715, %v751, 0.0
  %768 = vadd.xlane.f32.xlu0 %v767
  %v769 = vpop.xlane.xlu0 %768
  %v770 = vsel %vm715, %v753, 0.0
  %771 = vadd.xlane.f32.xlu0 %v770
  %v772 = vpop.xlane.xlu0 %771
  %v773 = vsel %vm715, %v755, 0.0
  %774 = vadd.xlane.f32.xlu0 %v773
  %v775 = vpop.xlane.xlu0 %774
  %v776 = vsel %vm715, %v757, 0.0
  %777 = vadd.xlane.f32.xlu0 %v776
  %v778 = vpop.xlane.xlu0 %777
  %v779 = vsel %vm715, %v759, 0.0
  %780 = vadd.xlane.f32.xlu0 %v779
  %v781 = vpop.xlane.xlu0 %780
  %v782 = vsel %vm715, %v761, 0.0
  %783 = vadd.xlane.f32.xlu0 %v782
  %v784 = vpop.xlane.xlu0 %783
  %v785 = vsel %vm715, %v763, 0.0
  %786 = vadd.xlane.f32.xlu0 %v785
  %v787 = vpop.xlane.xlu0 %786
  %v788 = vrcp.pop %v766
  %v789 = vmul.f32 %v749, %v788
  %v790 = vrcp.pop %v769
  %v791 = vmul.f32 %v751, %v790
  %v792 = vrcp.pop %v772
  %v793 = vmul.f32 %v753, %v792
  %v794 = vrcp.pop %v775
  %v795 = vmul.f32 %v755, %v794
  %v796 = vrcp.pop %v778
  %v797 = vmul.f32 %v757, %v796
  %v798 = vrcp.pop %v781
  %v799 = vmul.f32 %v759, %v798
  %v800 = vrcp.pop %v784
  %v801 = vmul.f32 %v761, %v800
  %v802 = vrcp.pop %v787
  %v803 = vmul.f32 %v763, %v802
  %v805 = vsel %vm715, %v789, 0
  %807 = vmatprep.subr.mxu0 0.0
  %808 = vmatpush1.msra.mxu0 %v43
  %809 = vmatprep.subr.mxu0 0.0
  %810 = vmatpush1.msra.mxu0 %v44
  %811 = vmatprep.subr.mxu0 0.0
  %812 = vmatpush1.msra.mxu0 0.0
  %813 = vmatprep.subr.mxu0 0.0
  %814 = vmatpush1.msra.mxu0 0.0
  %815 = vmatprep.subr.mxu0 0.0
  %816 = vmatpush1.msra.mxu0 0.0
  %817 = vmatprep.subr.mxu0 0.0
  %818 = vmatpush1.msra.mxu0 0.0
  %819 = vmatprep.subr.mxu0 0.0
  %820 = vmatpush1.msra.mxu0 0.0
  %821 = vmatprep.subr.mxu0 0.0
  %822 = vmatpush1.msra.mxu0 0.0
  %823 = vmatprep.subr.mxu0 0.0
  %824 = vmatpush1.msra.mxu0 0.0
  %825 = vmatprep.subr.mxu0 0.0
  %826 = vmatpush1.msra.mxu0 0.0
  %827 = vmatprep.subr.mxu0 0.0
  %828 = vmatpush1.msra.mxu0 0.0
  %829 = vmatprep.subr.mxu0 0.0
  %830 = vmatpush1.msra.mxu0 0.0
  %831 = vmatprep.subr.mxu0 0.0
  %832 = vmatpush1.msra.mxu0 0.0
  %833 = vmatprep.subr.mxu0 0.0
  %834 = vmatpush1.msra.mxu0 0.0
  %835 = vmatprep.subr.mxu0 0.0
  %836 = vmatpush1.msra.mxu0 0.0
  %837 = vmatprep.subr.mxu0 0.0
  %838 = vmatpush1.msra.mxu0 0.0
  %839 = vmatprep.subr.mxu0 0.0
  %840 = vmatpush1.msra.mxu0 0.0
  %841 = vmatprep.subr.mxu0 0.0
  %842 = vmatpush1.msra.mxu0 0.0
  %843 = vmatprep.subr.mxu0 0.0
  %844 = vmatpush1.msra.mxu0 0.0
  %845 = vmatprep.subr.mxu0 0.0
  %846 = vmatpush1.msra.mxu0 0.0
  %847 = vmatprep.subr.mxu0 0.0
  %848 = vmatpush1.msra.mxu0 0.0
  %849 = vmatprep.subr.mxu0 0.0
  %850 = vmatpush1.msra.mxu0 0.0
  %851 = vmatprep.subr.mxu0 0.0
  %852 = vmatpush1.msra.mxu0 0.0
  %853 = vmatprep.subr.mxu0 0.0
  %854 = vmatpush1.msra.mxu0 0.0
  %855 = vmatprep.subr.mxu0 0.0
  %856 = vmatpush1.msra.mxu0 0.0
  %857 = vmatprep.subr.mxu0 0.0
  %858 = vmatpush1.msra.mxu0 0.0
  %859 = vmatprep.subr.mxu0 0.0
  %860 = vmatpush1.msra.mxu0 0.0
  %861 = vmatprep.subr.mxu0 0.0
  %862 = vmatpush1.msra.mxu0 0.0
  %863 = vmatprep.subr.mxu0 0.0
  %864 = vmatpush1.msra.mxu0 0.0
  %865 = vmatprep.subr.mxu0 0.0
  %866 = vmatpush1.msra.mxu0 0.0
  %867 = vmatprep.subr.mxu0 0.0
  %868 = vmatpush1.msra.mxu0 0.0
  %869 = vmatprep.subr.mxu0 0.0
  %870 = vmatpush1.msra.mxu0 0.0
  %871 = vmatprep.mubr.f32.mxu0 0.0
  %872 = vmatmul.mubr.f32.gmra.mrb[0].mxu0 %v805
  %v873 = vpop.f32.mrb[0].mxu0
  %v874 = vadd.f32 0.0, %v873
  %v875 = vpop.f32.mrb[0].mxu0
  %876 = vdwg.mxu0
  %v878 = vsel %vm715, %v791, 0
  %880 = vmatprep.subr.mxu0 0.0
  %881 = vmatpush1.msra.mxu0 %v45
  %882 = vmatprep.subr.mxu0 0.0
  %883 = vmatpush1.msra.mxu0 %v46
  %884 = vmatprep.subr.mxu0 0.0
  %885 = vmatpush1.msra.mxu0 0.0
  %886 = vmatprep.subr.mxu0 0.0
  %887 = vmatpush1.msra.mxu0 0.0
  %888 = vmatprep.subr.mxu0 0.0
  %889 = vmatpush1.msra.mxu0 0.0
  %890 = vmatprep.subr.mxu0 0.0
  %891 = vmatpush1.msra.mxu0 0.0
  %892 = vmatprep.subr.mxu0 0.0
  %893 = vmatpush1.msra.mxu0 0.0
  %894 = vmatprep.subr.mxu0 0.0
  %895 = vmatpush1.msra.mxu0 0.0
  %896 = vmatprep.subr.mxu0 0.0
  %897 = vmatpush1.msra.mxu0 0.0
  %898 = vmatprep.subr.mxu0 0.0
  %899 = vmatpush1.msra.mxu0 0.0
  %900 = vmatprep.subr.mxu0 0.0
  %901 = vmatpush1.msra.mxu0 0.0
  %902 = vmatprep.subr.mxu0 0.0
  %903 = vmatpush1.msra.mxu0 0.0
  %904 = vmatprep.subr.mxu0 0.0
  %905 = vmatpush1.msra.mxu0 0.0
  %906 = vmatprep.subr.mxu0 0.0
  %907 = vmatpush1.msra.mxu0 0.0
  %908 = vmatprep.subr.mxu0 0.0
  %909 = vmatpush1.msra.mxu0 0.0
  %910 = vmatprep.subr.mxu0 0.0
  %911 = vmatpush1.msra.mxu0 0.0
  %912 = vmatprep.subr.mxu0 0.0
  %913 = vmatpush1.msra.mxu0 0.0
  %914 = vmatprep.subr.mxu0 0.0
  %915 = vmatpush1.msra.mxu0 0.0
  %916 = vmatprep.subr.mxu0 0.0
  %917 = vmatpush1.msra.mxu0 0.0
  %918 = vmatprep.subr.mxu0 0.0
  %919 = vmatpush1.msra.mxu0 0.0
  %920 = vmatprep.subr.mxu0 0.0
  %921 = vmatpush1.msra.mxu0 0.0
  %922 = vmatprep.subr.mxu0 0.0
  %923 = vmatpush1.msra.mxu0 0.0
  %924 = vmatprep.subr.mxu0 0.0
  %925 = vmatpush1.msra.mxu0 0.0
  %926 = vmatprep.subr.mxu0 0.0
  %927 = vmatpush1.msra.mxu0 0.0
  %928 = vmatprep.subr.mxu0 0.0
  %929 = vmatpush1.msra.mxu0 0.0
  %930 = vmatprep.subr.mxu0 0.0
  %931 = vmatpush1.msra.mxu0 0.0
  %932 = vmatprep.subr.mxu0 0.0
  %933 = vmatpush1.msra.mxu0 0.0
  %934 = vmatprep.subr.mxu0 0.0
  %935 = vmatpush1.msra.mxu0 0.0
  %936 = vmatprep.subr.mxu0 0.0
  %937 = vmatpush1.msra.mxu0 0.0
  %938 = vmatprep.subr.mxu0 0.0
  %939 = vmatpush1.msra.mxu0 0.0
  %940 = vmatprep.subr.mxu0 0.0
  %941 = vmatpush1.msra.mxu0 0.0
  %942 = vmatprep.subr.mxu0 0.0
  %943 = vmatpush1.msra.mxu0 0.0
  %944 = vmatprep.mubr.f32.mxu0 0.0
  %945 = vmatmul.mubr.f32.gmra.mrb[0].mxu0 %v878
  %v946 = vpop.f32.mrb[0].mxu0
  %v947 = vadd.f32 0.0, %v946
  %v948 = vpop.f32.mrb[0].mxu0
  %949 = vdwg.mxu0
  %v951 = vsel %vm715, %v793, 0
  %953 = vmatprep.subr.mxu0 0.0
  %954 = vmatpush1.msra.mxu0 %v47
  %955 = vmatprep.subr.mxu0 0.0
  %956 = vmatpush1.msra.mxu0 %v48
  %957 = vmatprep.subr.mxu0 0.0
  %958 = vmatpush1.msra.mxu0 0.0
  %959 = vmatprep.subr.mxu0 0.0
  %960 = vmatpush1.msra.mxu0 0.0
  %961 = vmatprep.subr.mxu0 0.0
  %962 = vmatpush1.msra.mxu0 0.0
  %963 = vmatprep.subr.mxu0 0.0
  %964 = vmatpush1.msra.mxu0 0.0
  %965 = vmatprep.subr.mxu0 0.0
  %966 = vmatpush1.msra.mxu0 0.0
  %967 = vmatprep.subr.mxu0 0.0
  %968 = vmatpush1.msra.mxu0 0.0
  %969 = vmatprep.subr.mxu0 0.0
  %970 = vmatpush1.msra.mxu0 0.0
  %971 = vmatprep.subr.mxu0 0.0
  %972 = vmatpush1.msra.mxu0 0.0
  %973 = vmatprep.subr.mxu0 0.0
  %974 = vmatpush1.msra.mxu0 0.0
  %975 = vmatprep.subr.mxu0 0.0
  %976 = vmatpush1.msra.mxu0 0.0
  %977 = vmatprep.subr.mxu0 0.0
  %978 = vmatpush1.msra.mxu0 0.0
  %979 = vmatprep.subr.mxu0 0.0
  %980 = vmatpush1.msra.mxu0 0.0
  %981 = vmatprep.subr.mxu0 0.0
  %982 = vmatpush1.msra.mxu0 0.0
  %983 = vmatprep.subr.mxu0 0.0
  %984 = vmatpush1.msra.mxu0 0.0
  %985 = vmatprep.subr.mxu0 0.0
  %986 = vmatpush1.msra.mxu0 0.0
  %987 = vmatprep.subr.mxu0 0.0
  %988 = vmatpush1.msra.mxu0 0.0
  %989 = vmatprep.subr.mxu0 0.0
  %990 = vmatpush1.msra.mxu0 0.0
  %991 = vmatprep.subr.mxu0 0.0
  %992 = vmatpush1.msra.mxu0 0.0
  %993 = vmatprep.subr.mxu0 0.0
  %994 = vmatpush1.msra.mxu0 0.0
  %995 = vmatprep.subr.mxu0 0.0
  %996 = vmatpush1.msra.mxu0 0.0
  %997 = vmatprep.subr.mxu0 0.0
  %998 = vmatpush1.msra.mxu0 0.0
  %999 = vmatprep.subr.mxu0 0.0
  %1000 = vmatpush1.msra.mxu0 0.0
  %1001 = vmatprep.subr.mxu0 0.0
  %1002 = vmatpush1.msra.mxu0 0.0
  %1003 = vmatprep.subr.mxu0 0.0
  %1004 = vmatpush1.msra.mxu0 0.0
  %1005 = vmatprep.subr.mxu0 0.0
  %1006 = vmatpush1.msra.mxu0 0.0
  %1007 = vmatprep.subr.mxu0 0.0
  %1008 = vmatpush1.msra.mxu0 0.0
  %1009 = vmatprep.subr.mxu0 0.0
  %1010 = vmatpush1.msra.mxu0 0.0
  %1011 = vmatprep.subr.mxu0 0.0
  %1012 = vmatpush1.msra.mxu0 0.0
  %1013 = vmatprep.subr.mxu0 0.0
  %1014 = vmatpush1.msra.mxu0 0.0
  %1015 = vmatprep.subr.mxu0 0.0
  %1016 = vmatpush1.msra.mxu0 0.0
  %1017 = vmatprep.mubr.f32.mxu0 0.0
  %1018 = vmatmul.mubr.f32.gmra.mrb[0].mxu0 %v951
  %v1019 = vpop.f32.mrb[0].mxu0
  %v1020 = vadd.f32 0.0, %v1019
  %v1021 = vpop.f32.mrb[0].mxu0
  %1022 = vdwg.mxu0
  %v1024 = vsel %vm715, %v795, 0
  %1026 = vmatprep.subr.mxu0 0.0
  %1027 = vmatpush1.msra.mxu0 %v49
  %1028 = vmatprep.subr.mxu0 0.0
  %1029 = vmatpush1.msra.mxu0 %v50
  %1030 = vmatprep.subr.mxu0 0.0
  %1031 = vmatpush1.msra.mxu0 0.0
  %1032 = vmatprep.subr.mxu0 0.0
  %1033 = vmatpush1.msra.mxu0 0.0
  %1034 = vmatprep.subr.mxu0 0.0
  %1035 = vmatpush1.msra.mxu0 0.0
  %1036 = vmatprep.subr.mxu0 0.0
  %1037 = vmatpush1.msra.mxu0 0.0
  %1038 = vmatprep.subr.mxu0 0.0
  %1039 = vmatpush1.msra.mxu0 0.0
  %1040 = vmatprep.subr.mxu0 0.0
  %1041 = vmatpush1.msra.mxu0 0.0
  %1042 = vmatprep.subr.mxu0 0.0
  %1043 = vmatpush1.msra.mxu0 0.0
  %1044 = vmatprep.subr.mxu0 0.0
  %1045 = vmatpush1.msra.mxu0 0.0
  %1046 = vmatprep.subr.mxu0 0.0
  %1047 = vmatpush1.msra.mxu0 0.0
  %1048 = vmatprep.subr.mxu0 0.0
  %1049 = vmatpush1.msra.mxu0 0.0
  %1050 = vmatprep.subr.mxu0 0.0
  %1051 = vmatpush1.msra.mxu0 0.0
  %1052 = vmatprep.subr.mxu0 0.0
  %1053 = vmatpush1.msra.mxu0 0.0
  %1054 = vmatprep.subr.mxu0 0.0
  %1055 = vmatpush1.msra.mxu0 0.0
  %1056 = vmatprep.subr.mxu0 0.0
  %1057 = vmatpush1.msra.mxu0 0.0
  %1058 = vmatprep.subr.mxu0 0.0
  %1059 = vmatpush1.msra.mxu0 0.0
  %1060 = vmatprep.subr.mxu0 0.0
  %1061 = vmatpush1.msra.mxu0 0.0
  %1062 = vmatprep.subr.mxu0 0.0
  %1063 = vmatpush1.msra.mxu0 0.0
  %1064 = vmatprep.subr.mxu0 0.0
  %1065 = vmatpush1.msra.mxu0 0.0
  %1066 = vmatprep.subr.mxu0 0.0
  %1067 = vmatpush1.msra.mxu0 0.0
  %1068 = vmatprep.subr.mxu0 0.0
  %1069 = vmatpush1.msra.mxu0 0.0
  %1070 = vmatprep.subr.mxu0 0.0
  %1071 = vmatpush1.msra.mxu0 0.0
  %1072 = vmatprep.subr.mxu0 0.0
  %1073 = vmatpush1.msra.mxu0 0.0
  %1074 = vmatprep.subr.mxu0 0.0
  %1075 = vmatpush1.msra.mxu0 0.0
  %1076 = vmatprep.subr.mxu0 0.0
  %1077 = vmatpush1.msra.mxu0 0.0
  %1078 = vmatprep.subr.mxu0 0.0
  %1079 = vmatpush1.msra.mxu0 0.0
  %1080 = vmatprep.subr.mxu0 0.0
  %1081 = vmatpush1.msra.mxu0 0.0
  %1082 = vmatprep.subr.mxu0 0.0
  %1083 = vmatpush1.msra.mxu0 0.0
  %1084 = vmatprep.subr.mxu0 0.0
  %1085 = vmatpush1.msra.mxu0 0.0
  %1086 = vmatprep.subr.mxu0 0.0
  %1087 = vmatpush1.msra.mxu0 0.0
  %1088 = vmatprep.subr.mxu0 0.0
  %1089 = vmatpush1.msra.mxu0 0.0
  %1090 = vmatprep.mubr.f32.mxu0 0.0
  %1091 = vmatmul.mubr.f32.gmra.mrb[0].mxu0 %v1024
  %v1092 = vpop.f32.mrb[0].mxu0
  %v1093 = vadd.f32 0.0, %v1092
  %v1094 = vpop.f32.mrb[0].mxu0
  %1095 = vdwg.mxu0
  %v1097 = vsel %vm715, %v797, 0
  %1099 = vmatprep.subr.mxu0 0.0
  %1100 = vmatpush1.msra.mxu0 %v51
  %1101 = vmatprep.subr.mxu0 0.0
  %1102 = vmatpush1.msra.mxu0 %v52
  %1103 = vmatprep.subr.mxu0 0.0
  %1104 = vmatpush1.msra.mxu0 0.0
  %1105 = vmatprep.subr.mxu0 0.0
  %1106 = vmatpush1.msra.mxu0 0.0
  %1107 = vmatprep.subr.mxu0 0.0
  %1108 = vmatpush1.msra.mxu0 0.0
  %1109 = vmatprep.subr.mxu0 0.0
  %1110 = vmatpush1.msra.mxu0 0.0
  %1111 = vmatprep.subr.mxu0 0.0
  %1112 = vmatpush1.msra.mxu0 0.0
  %1113 = vmatprep.subr.mxu0 0.0
  %1114 = vmatpush1.msra.mxu0 0.0
  %1115 = vmatprep.subr.mxu0 0.0
  %1116 = vmatpush1.msra.mxu0 0.0
  %1117 = vmatprep.subr.mxu0 0.0
  %1118 = vmatpush1.msra.mxu0 0.0
  %1119 = vmatprep.subr.mxu0 0.0
  %1120 = vmatpush1.msra.mxu0 0.0
  %1121 = vmatprep.subr.mxu0 0.0
  %1122 = vmatpush1.msra.mxu0 0.0
  %1123 = vmatprep.subr.mxu0 0.0
  %1124 = vmatpush1.msra.mxu0 0.0
  %1125 = vmatprep.subr.mxu0 0.0
  %1126 = vmatpush1.msra.mxu0 0.0
  %1127 = vmatprep.subr.mxu0 0.0
  %1128 = vmatpush1.msra.mxu0 0.0
  %1129 = vmatprep.subr.mxu0 0.0
  %1130 = vmatpush1.msra.mxu0 0.0
  %1131 = vmatprep.subr.mxu0 0.0
  %1132 = vmatpush1.msra.mxu0 0.0
  %1133 = vmatprep.subr.mxu0 0.0
  %1134 = vmatpush1.msra.mxu0 0.0
  %1135 = vmatprep.subr.mxu0 0.0
  %1136 = vmatpush1.msra.mxu0 0.0
  %1137 = vmatprep.subr.mxu0 0.0
  %1138 = vmatpush1.msra.mxu0 0.0
  %1139 = vmatprep.subr.mxu0 0.0
  %1140 = vmatpush1.msra.mxu0 0.0
  %1141 = vmatprep.subr.mxu0 0.0
  %1142 = vmatpush1.msra.mxu0 0.0
  %1143 = vmatprep.subr.mxu0 0.0
  %1144 = vmatpush1.msra.mxu0 0.0
  %1145 = vmatprep.subr.mxu0 0.0
  %1146 = vmatpush1.msra.mxu0 0.0
  %1147 = vmatprep.subr.mxu0 0.0
  %1148 = vmatpush1.msra.mxu0 0.0
  %1149 = vmatprep.subr.mxu0 0.0
  %1150 = vmatpush1.msra.mxu0 0.0
  %1151 = vmatprep.subr.mxu0 0.0
  %1152 = vmatpush1.msra.mxu0 0.0
  %1153 = vmatprep.subr.mxu0 0.0
  %1154 = vmatpush1.msra.mxu0 0.0
  %1155 = vmatprep.subr.mxu0 0.0
  %1156 = vmatpush1.msra.mxu0 0.0
  %1157 = vmatprep.subr.mxu0 0.0
  %1158 = vmatpush1.msra.mxu0 0.0
  %1159 = vmatprep.subr.mxu0 0.0
  %1160 = vmatpush1.msra.mxu0 0.0
  %1161 = vmatprep.subr.mxu0 0.0
  %1162 = vmatpush1.msra.mxu0 0.0
  %1163 = vmatprep.mubr.f32.mxu0 0.0
  %1164 = vmatmul.mubr.f32.gmra.mrb[0].mxu0 %v1097
  %v1165 = vpop.f32.mrb[0].mxu0
  %v1166 = vadd.f32 0.0, %v1165
  %v1167 = vpop.f32.mrb[0].mxu0
  %1168 = vdwg.mxu0
  %v1170 = vsel %vm715, %v799, 0
  %1172 = vmatprep.subr.mxu0 0.0
  %1173 = vmatpush1.msra.mxu0 %v53
  %1174 = vmatprep.subr.mxu0 0.0
  %1175 = vmatpush1.msra.mxu0 %v54
  %1176 = vmatprep.subr.mxu0 0.0
  %1177 = vmatpush1.msra.mxu0 0.0
  %1178 = vmatprep.subr.mxu0 0.0
  %1179 = vmatpush1.msra.mxu0 0.0
  %1180 = vmatprep.subr.mxu0 0.0
  %1181 = vmatpush1.msra.mxu0 0.0
  %1182 = vmatprep.subr.mxu0 0.0
  %1183 = vmatpush1.msra.mxu0 0.0
  %1184 = vmatprep.subr.mxu0 0.0
  %1185 = vmatpush1.msra.mxu0 0.0
  %1186 = vmatprep.subr.mxu0 0.0
  %1187 = vmatpush1.msra.mxu0 0.0
  %1188 = vmatprep.subr.mxu0 0.0
  %1189 = vmatpush1.msra.mxu0 0.0
  %1190 = vmatprep.subr.mxu0 0.0
  %1191 = vmatpush1.msra.mxu0 0.0
  %1192 = vmatprep.subr.mxu0 0.0
  %1193 = vmatpush1.msra.mxu0 0.0
  %1194 = vmatprep.subr.mxu0 0.0
  %1195 = vmatpush1.msra.mxu0 0.0
  %1196 = vmatprep.subr.mxu0 0.0
  %1197 = vmatpush1.msra.mxu0 0.0
  %1198 = vmatprep.subr.mxu0 0.0
  %1199 = vmatpush1.msra.mxu0 0.0
  %1200 = vmatprep.subr.mxu0 0.0
  %1201 = vmatpush1.msra.mxu0 0.0
  %1202 = vmatprep.subr.mxu0 0.0
  %1203 = vmatpush1.msra.mxu0 0.0
  %1204 = vmatprep.subr.mxu0 0.0
  %1205 = vmatpush1.msra.mxu0 0.0
  %1206 = vmatprep.subr.mxu0 0.0
  %1207 = vmatpush1.msra.mxu0 0.0
  %1208 = vmatprep.subr.mxu0 0.0
  %1209 = vmatpush1.msra.mxu0 0.0
  %1210 = vmatprep.subr.mxu0 0.0
  %1211 = vmatpush1.msra.mxu0 0.0
  %1212 = vmatprep.subr.mxu0 0.0
  %1213 = vmatpush1.msra.mxu0 0.0
  %1214 = vmatprep.subr.mxu0 0.0
  %1215 = vmatpush1.msra.mxu0 0.0
  %1216 = vmatprep.subr.mxu0 0.0
  %1217 = vmatpush1.msra.mxu0 0.0
  %1218 = vmatprep.subr.mxu0 0.0
  %1219 = vmatpush1.msra.mxu0 0.0
  %1220 = vmatprep.subr.mxu0 0.0
  %1221 = vmatpush1.msra.mxu0 0.0
  %1222 = vmatprep.subr.mxu0 0.0
  %1223 = vmatpush1.msra.mxu0 0.0
  %1224 = vmatprep.subr.mxu0 0.0
  %1225 = vmatpush1.msra.mxu0 0.0
  %1226 = vmatprep.subr.mxu0 0.0
  %1227 = vmatpush1.msra.mxu0 0.0
  %1228 = vmatprep.subr.mxu0 0.0
  %1229 = vmatpush1.msra.mxu0 0.0
  %1230 = vmatprep.subr.mxu0 0.0
  %1231 = vmatpush1.msra.mxu0 0.0
  %1232 = vmatprep.subr.mxu0 0.0
  %1233 = vmatpush1.msra.mxu0 0.0
  %1234 = vmatprep.subr.mxu0 0.0
  %1235 = vmatpush1.msra.mxu0 0.0
  %1236 = vmatprep.mubr.f32.mxu0 0.0
  %1237 = vmatmul.mubr.f32.gmra.mrb[0].mxu0 %v1170
  %v1238 = vpop.f32.mrb[0].mxu0
  %v1239 = vadd.f32 0.0, %v1238
  %v1240 = vpop.f32.mrb[0].mxu0
  %1241 = vdwg.mxu0
  %v1243 = vsel %vm715, %v801, 0
  %1245 = vmatprep.subr.mxu0 0.0
  %1246 = vmatpush1.msra.mxu0 %v55
  %1247 = vmatprep.subr.mxu0 0.0
  %1248 = vmatpush1.msra.mxu0 %v56
  %1249 = vmatprep.subr.mxu0 0.0
  %1250 = vmatpush1.msra.mxu0 0.0
  %1251 = vmatprep.subr.mxu0 0.0
  %1252 = vmatpush1.msra.mxu0 0.0
  %1253 = vmatprep.subr.mxu0 0.0
  %1254 = vmatpush1.msra.mxu0 0.0
  %1255 = vmatprep.subr.mxu0 0.0
  %1256 = vmatpush1.msra.mxu0 0.0
  %1257 = vmatprep.subr.mxu0 0.0
  %1258 = vmatpush1.msra.mxu0 0.0
  %1259 = vmatprep.subr.mxu0 0.0
  %1260 = vmatpush1.msra.mxu0 0.0
  %1261 = vmatprep.subr.mxu0 0.0
  %1262 = vmatpush1.msra.mxu0 0.0
  %1263 = vmatprep.subr.mxu0 0.0
  %1264 = vmatpush1.msra.mxu0 0.0
  %1265 = vmatprep.subr.mxu0 0.0
  %1266 = vmatpush1.msra.mxu0 0.0
  %1267 = vmatprep.subr.mxu0 0.0
  %1268 = vmatpush1.msra.mxu0 0.0
  %1269 = vmatprep.subr.mxu0 0.0
  %1270 = vmatpush1.msra.mxu0 0.0
  %1271 = vmatprep.subr.mxu0 0.0
  %1272 = vmatpush1.msra.mxu0 0.0
  %1273 = vmatprep.subr.mxu0 0.0
  %1274 = vmatpush1.msra.mxu0 0.0
  %1275 = vmatprep.subr.mxu0 0.0
  %1276 = vmatpush1.msra.mxu0 0.0
  %1277 = vmatprep.subr.mxu0 0.0
  %1278 = vmatpush1.msra.mxu0 0.0
  %1279 = vmatprep.subr.mxu0 0.0
  %1280 = vmatpush1.msra.mxu0 0.0
  %1281 = vmatprep.subr.mxu0 0.0
  %1282 = vmatpush1.msra.mxu0 0.0
  %1283 = vmatprep.subr.mxu0 0.0
  %1284 = vmatpush1.msra.mxu0 0.0
  %1285 = vmatprep.subr.mxu0 0.0
  %1286 = vmatpush1.msra.mxu0 0.0
  %1287 = vmatprep.subr.mxu0 0.0
  %1288 = vmatpush1.msra.mxu0 0.0
  %1289 = vmatprep.subr.mxu0 0.0
  %1290 = vmatpush1.msra.mxu0 0.0
  %1291 = vmatprep.subr.mxu0 0.0
  %1292 = vmatpush1.msra.mxu0 0.0
  %1293 = vmatprep.subr.mxu0 0.0
  %1294 = vmatpush1.msra.mxu0 0.0
  %1295 = vmatprep.subr.mxu0 0.0
  %1296 = vmatpush1.msra.mxu0 0.0
  %1297 = vmatprep.subr.mxu0 0.0
  %1298 = vmatpush1.msra.mxu0 0.0
  %1299 = vmatprep.subr.mxu0 0.0
  %1300 = vmatpush1.msra.mxu0 0.0
  %1301 = vmatprep.subr.mxu0 0.0
  %1302 = vmatpush1.msra.mxu0 0.0
  %1303 = vmatprep.subr.mxu0 0.0
  %1304 = vmatpush1.msra.mxu0 0.0
  %1305 = vmatprep.subr.mxu0 0.0
  %1306 = vmatpush1.msra.mxu0 0.0
  %1307 = vmatprep.subr.mxu0 0.0
  %1308 = vmatpush1.msra.mxu0 0.0
  %1309 = vmatprep.mubr.f32.mxu0 0.0
  %1310 = vmatmul.mubr.f32.gmra.mrb[0].mxu0 %v1243
  %v1311 = vpop.f32.mrb[0].mxu0
  %v1312 = vadd.f32 0.0, %v1311
  %v1313 = vpop.f32.mrb[0].mxu0
  %1314 = vdwg.mxu0
  %v1316 = vsel %vm715, %v803, 0
  %1318 = vmatprep.subr.mxu0 0.0
  %1319 = vmatpush1.msra.mxu0 %v57
  %1320 = vmatprep.subr.mxu0 0.0
  %1321 = vmatpush1.msra.mxu0 %v58
  %1322 = vmatprep.subr.mxu0 0.0
  %1323 = vmatpush1.msra.mxu0 0.0
  %1324 = vmatprep.subr.mxu0 0.0
  %1325 = vmatpush1.msra.mxu0 0.0
  %1326 = vmatprep.subr.mxu0 0.0
  %1327 = vmatpush1.msra.mxu0 0.0
  %1328 = vmatprep.subr.mxu0 0.0
  %1329 = vmatpush1.msra.mxu0 0.0
  %1330 = vmatprep.subr.mxu0 0.0
  %1331 = vmatpush1.msra.mxu0 0.0
  %1332 = vmatprep.subr.mxu0 0.0
  %1333 = vmatpush1.msra.mxu0 0.0
  %1334 = vmatprep.subr.mxu0 0.0
  %1335 = vmatpush1.msra.mxu0 0.0
  %1336 = vmatprep.subr.mxu0 0.0
  %1337 = vmatpush1.msra.mxu0 0.0
  %1338 = vmatprep.subr.mxu0 0.0
  %1339 = vmatpush1.msra.mxu0 0.0
  %1340 = vmatprep.subr.mxu0 0.0
  %1341 = vmatpush1.msra.mxu0 0.0
  %1342 = vmatprep.subr.mxu0 0.0
  %1343 = vmatpush1.msra.mxu0 0.0
  %1344 = vmatprep.subr.mxu0 0.0
  %1345 = vmatpush1.msra.mxu0 0.0
  %1346 = vmatprep.subr.mxu0 0.0
  %1347 = vmatpush1.msra.mxu0 0.0
  %1348 = vmatprep.subr.mxu0 0.0
  %1349 = vmatpush1.msra.mxu0 0.0
  %1350 = vmatprep.subr.mxu0 0.0
  %1351 = vmatpush1.msra.mxu0 0.0
  %1352 = vmatprep.subr.mxu0 0.0
  %1353 = vmatpush1.msra.mxu0 0.0
  %1354 = vmatprep.subr.mxu0 0.0
  %1355 = vmatpush1.msra.mxu0 0.0
  %1356 = vmatprep.subr.mxu0 0.0
  %1357 = vmatpush1.msra.mxu0 0.0
  %1358 = vmatprep.subr.mxu0 0.0
  %1359 = vmatpush1.msra.mxu0 0.0
  %1360 = vmatprep.subr.mxu0 0.0
  %1361 = vmatpush1.msra.mxu0 0.0
  %1362 = vmatprep.subr.mxu0 0.0
  %1363 = vmatpush1.msra.mxu0 0.0
  %1364 = vmatprep.subr.mxu0 0.0
  %1365 = vmatpush1.msra.mxu0 0.0
  %1366 = vmatprep.subr.mxu0 0.0
  %1367 = vmatpush1.msra.mxu0 0.0
  %1368 = vmatprep.subr.mxu0 0.0
  %1369 = vmatpush1.msra.mxu0 0.0
  %1370 = vmatprep.subr.mxu0 0.0
  %1371 = vmatpush1.msra.mxu0 0.0
  %1372 = vmatprep.subr.mxu0 0.0
  %1373 = vmatpush1.msra.mxu0 0.0
  %1374 = vmatprep.subr.mxu0 0.0
  %1375 = vmatpush1.msra.mxu0 0.0
  %1376 = vmatprep.subr.mxu0 0.0
  %1377 = vmatpush1.msra.mxu0 0.0
  %1378 = vmatprep.subr.mxu0 0.0
  %1379 = vmatpush1.msra.mxu0 0.0
  %1380 = vmatprep.subr.mxu0 0.0
  %1381 = vmatpush1.msra.mxu0 0.0
  %1382 = vmatprep.mubr.f32.mxu0 0.0
  %1383 = vmatmul.mubr.f32.gmra.mrb[0].mxu0 %v1316
  %v1384 = vpop.f32.mrb[0].mxu0
  %v1385 = vadd.f32 0.0, %v1384
  %v1386 = vpop.f32.mrb[0].mxu0
  %1387 = vdwg.mxu0
  %1388 = vst.msk [vmem:[%s4] sm:$0xff] %vm59, %v874
  %1389 = vst.msk [vmem:[%s4 + $0x8] sm:$0xff] %vm59, %v947
  %1390 = vst.msk [vmem:[%s4 + $0x10] sm:$0xff] %vm59, %v1020
  %1391 = vst.msk [vmem:[%s4 + $0x18] sm:$0xff] %vm59, %v1093
  %1392 = vst.msk [vmem:[%s4 + $0x20] sm:$0xff] %vm59, %v1166
  %1393 = vst.msk [vmem:[%s4 + $0x28] sm:$0xff] %vm59, %v1239
  %1394 = vst.msk [vmem:[%s4 + $0x30] sm:$0xff] %vm59, %v1312
  %1395 = vst.msk [vmem:[%s4 + $0x38] sm:$0xff] %vm59, %v1385
  %1396 = vst.msk [vmem:[%s5] sm:$0xff] %vm715, %v789
  %1397 = vst.msk [vmem:[%s5 + $0x8] sm:$0xff] %vm715, %v791
  %1398 = vst.msk [vmem:[%s5 + $0x10] sm:$0xff] %vm715, %v793
  %1399 = vst.msk [vmem:[%s5 + $0x18] sm:$0xff] %vm715, %v795
  %1400 = vst.msk [vmem:[%s5 + $0x20] sm:$0xff] %vm715, %v797
  %1401 = vst.msk [vmem:[%s5 + $0x28] sm:$0xff] %vm715, %v799
  %1402 = vst.msk [vmem:[%s5 + $0x30] sm:$0xff] %vm715, %v801
  %1403 = vst.msk [vmem:[%s5 + $0x38] sm:$0xff] %vm715, %v803
  // Predicated region
  $region18: #{_lambda_.11} parent=0 // pred_check
    _
  $region19: #{_lambda_.11} parent=0 // pred_check_branch
    %1405 = sbr.rel (0) target = $region21
  $region20: #{_lambda_.11} parent=0 // pred_region
    _
  $region21: #{_lambda_.11} parent=0 // pred_fallthru
    _
  // Predicated region
  $region22: #{_lambda_.11} parent=0 // pred_check
    _
  $region23: #{_lambda_.11} parent=0 // pred_check_branch
    %1407 = sbr.rel (0) target = $region25
  $region24: #{_lambda_.11} parent=0 // pred_region
    _
  $region25: #{_lambda_.11} parent=0 // pred_fallthru
    _
  // Predicated region
  $region26: #{_lambda_.11} parent=0 // pred_check
    _
  $region27: #{_lambda_.11} parent=0 // pred_check_branch
    %1409 = sbr.rel (0) target = $region29
  $region28: #{_lambda_.11} parent=0 // pred_region
    _
  $region29: #{_lambda_.11} parent=0 // pred_fallthru
    _
  // Predicated region
  $region30: #{_lambda_.11} parent=0 // pred_check
    _
  $region31: #{_lambda_.11} parent=0 // pred_check_branch
    %1411 = sbr.rel (0) target = $region33
  $region32: #{_lambda_.11} parent=0 // pred_region
    _
  $region33: #{_lambda_.11} parent=0 // pred_fallthru
    _

// kernel: _lambda_.15
$region0: #{_lambda_.15}
  #allocation0 [shape = 'u32[]', space=smem, size = 0x4, offset = 0x4, fixed_abs, tag = 'smem constant byte address 0x4 - core index']
  #allocation1 [shape = 'u32[144,128]{1,0:T(1,128)}', space=vmem, size = 0x12000, scoped, tag = 'internal scratch']
  %s0 = inlined_call_operand.vmem [shape: f32[16,32], index: 0, kind: input, shape index: {}]
  %s1 = inlined_call_operand.vmem [shape: f32[32,64], index: 1, kind: input, shape index: {}]
  %s2 = inlined_call_operand.vmem [shape: f32[1,64], index: 2, kind: input, shape index: {}]
  %s3 = inlined_call_operand.vmem [shape: f32[16,64], index: 3, kind: output, shape index: {}]
  %s4 = sld [smem:[#allocation0]]
  $region22: #{_lambda_.15} parent=0
    _
  %s6 = ssub.s32 1, %s4
  %s7 = scalar_select 0, %s6, %s4
  // Predicated region
  $region2: #{_lambda_.15} parent=0 // pred_check
    _
  $region3: #{_lambda_.15} parent=0 // pred_check_branch
    %9 = sbr.rel (0) target = $region5
  $region4: #{_lambda_.15} parent=0 // pred_region
    _
  $region5: #{_lambda_.15} parent=0 // pred_fallthru
    _
  // Predicated region
  $region6: #{_lambda_.15} parent=0 // pred_check
    _
  $region7: #{_lambda_.15} parent=0 // pred_check_branch
    %11 = sbr.rel (0) target = $region9
  $region8: #{_lambda_.15} parent=0 // pred_region
    _
  $region9: #{_lambda_.15} parent=0 // pred_fallthru
    _
  // Predicated region
  $region10: #{_lambda_.15} parent=0 // pred_check
    _
  $region11: #{_lambda_.15} parent=0 // pred_check_branch
    %13 = sbr.rel (0) target = $region13
  $region12: #{_lambda_.15} parent=0 // pred_region
    _
  $region13: #{_lambda_.15} parent=0 // pred_fallthru
    _
  %v14 = vld [vmem:[%s0] sm:$0xff]
  %v15 = vld [vmem:[%s0 + $0x8] sm:$0xff]
  %v16 = vld [vmem:[%s1] sm:$0xff]
  %v17 = vld [vmem:[%s1 + $0x8] sm:$0xff]
  %v18 = vld [vmem:[%s1 + $0x10] sm:$0xff]
  %v19 = vld [vmem:[%s1 + $0x18] sm:$0xff]
  %v20 = vld [vmem:[%s2] sm:$0x1]
  %v22 = vlaneseq
  %v23 = vshrl.u32 %v22, 7
  %v24 = vsub.s32 0, %v23
  %v25 = vrot.slane %v20, %v24
  %vm27 = vcmask 261120
  %v29 = vsel %vm27, %v14, 0
  %v32 = vsel %vm27, %v15, 0
  %34 = vmatprep.subr.mxu0 0.0
  %35 = vmatpush1.msra.mxu0 %v16
  %36 = vmatprep.subr.mxu0 0.0
  %37 = vmatpush1.msra.mxu0 %v17
  %38 = vmatprep.subr.mxu0 0.0
  %39 = vmatpush1.msra.mxu0 %v18
  %40 = vmatprep.subr.mxu0 0.0
  %41 = vmatpush1.msra.mxu0 %v19
  %42 = vmatprep.subr.mxu0 0.0
  %43 = vmatpush1.msra.mxu0 0.0
  %44 = vmatprep.subr.mxu0 0.0
  %45 = vmatpush1.msra.mxu0 0.0
  %46 = vmatprep.subr.mxu0 0.0
  %47 = vmatpush1.msra.mxu0 0.0
  %48 = vmatprep.subr.mxu0 0.0
  %49 = vmatpush1.msra.mxu0 0.0
  %50 = vmatprep.subr.mxu0 0.0
  %51 = vmatpush1.msra.mxu0 0.0
  %52 = vmatprep.subr.mxu0 0.0
  %53 = vmatpush1.msra.mxu0 0.0
  %54 = vmatprep.subr.mxu0 0.0
  %55 = vmatpush1.msra.mxu0 0.0
  %56 = vmatprep.subr.mxu0 0.0
  %57 = vmatpush1.msra.mxu0 0.0
  %58 = vmatprep.subr.mxu0 0.0
  %59 = vmatpush1.msra.mxu0 0.0
  %60 = vmatprep.subr.mxu0 0.0
  %61 = vmatpush1.msra.mxu0 0.0
  %62 = vmatprep.subr.mxu0 0.0
  %63 = vmatpush1.msra.mxu0 0.0
  %64 = vmatprep.subr.mxu0 0.0
  %65 = vmatpush1.msra.mxu0 0.0
  %66 = vmatprep.subr.mxu0 0.0
  %67 = vmatpush1.msra.mxu0 0.0
  %68 = vmatprep.subr.mxu0 0.0
  %69 = vmatpush1.msra.mxu0 0.0
  %70 = vmatprep.subr.mxu0 0.0
  %71 = vmatpush1.msra.mxu0 0.0
  %72 = vmatprep.subr.mxu0 0.0
  %73 = vmatpush1.msra.mxu0 0.0
  %74 = vmatprep.subr.mxu0 0.0
  %75 = vmatpush1.msra.mxu0 0.0
  %76 = vmatprep.subr.mxu0 0.0
  %77 = vmatpush1.msra.mxu0 0.0
  %78 = vmatprep.subr.mxu0 0.0
  %79 = vmatpush1.msra.mxu0 0.0
  %80 = vmatprep.subr.mxu0 0.0
  %81 = vmatpush1.msra.mxu0 0.0
  %82 = vmatprep.subr.mxu0 0.0
  %83 = vmatpush1.msra.mxu0 0.0
  %84 = vmatprep.subr.mxu0 0.0
  %85 = vmatpush1.msra.mxu0 0.0
  %86 = vmatprep.subr.mxu0 0.0
  %87 = vmatpush1.msra.mxu0 0.0
  %88 = vmatprep.subr.mxu0 0.0
  %89 = vmatpush1.msra.mxu0 0.0
  %90 = vmatprep.subr.mxu0 0.0
  %91 = vmatpush1.msra.mxu0 0.0
  %92 = vmatprep.subr.mxu0 0.0
  %93 = vmatpush1.msra.mxu0 0.0
  %94 = vmatprep.subr.mxu0 0.0
  %95 = vmatpush1.msra.mxu0 0.0
  %96 = vmatprep.subr.mxu0 0.0
  %97 = vmatpush1.msra.mxu0 0.0
  %98 = vmatprep.mubr.f32.mxu0 0.0
  %99 = vmatmul.mubr.f32.gmra.mrb[0].mxu0 %v29
  %v100 = vpop.f32.mrb[0].mxu0
  %v101 = vadd.f32 %v25, %v100
  %v102 = vpop.f32.mrb[0].mxu0
  %103 = vmatprep.mubr.f32.mxu0 0.0
  %104 = vmatmul.mubr.f32.gmra.mrb[0].mxu0 %v32
  %v105 = vpop.f32.mrb[0].mxu0
  %v106 = vadd.f32 %v25, %v105
  %v107 = vpop.f32.mrb[0].mxu0
  %108 = vdwg.mxu0
  %vm109 = vcmask 523264
  %110 = vst.msk [vmem:[%s3] sm:$0xff] %vm109, %v101
  %111 = vst.msk [vmem:[%s3 + $0x8] sm:$0xff] %vm109, %v106
  // Predicated region
  $region14: #{_lambda_.15} parent=0 // pred_check
    _
  $region15: #{_lambda_.15} parent=0 // pred_check_branch
    %113 = sbr.rel (0) target = $region17
  $region16: #{_lambda_.15} parent=0 // pred_region
    _
  $region17: #{_lambda_.15} parent=0 // pred_fallthru
    _
  // Predicated region
  $region18: #{_lambda_.15} parent=0 // pred_check
    _
  $region19: #{_lambda_.15} parent=0 // pred_check_branch
    %115 = sbr.rel (0) target = $region21
  $region20: #{_lambda_.15} parent=0 // pred_region
    _
  $region21: #{_lambda_.15} parent=0 // pred_fallthru
    _

// kernel: _lambda_.16
$region0: #{_lambda_.16}
  #allocation0 [shape = 'u32[]', space=smem, size = 0x4, offset = 0x4, fixed_abs, tag = 'smem constant byte address 0x4 - core index']
  #allocation1 [shape = 'u32[144,128]{1,0:T(1,128)}', space=vmem, size = 0x12000, scoped, tag = 'internal scratch']
  %s0 = inlined_call_operand.vmem [shape: f32[16,64], index: 0, kind: input, shape index: {}]
  %s1 = inlined_call_operand.vmem [shape: f32[64,32], index: 1, kind: input, shape index: {}]
  %s2 = inlined_call_operand.vmem [shape: f32[1,32], index: 2, kind: input, shape index: {}]
  %s3 = inlined_call_operand.vmem [shape: f32[16,32], index: 3, kind: output, shape index: {}]
  %s4 = sld [smem:[#allocation0]]
  $region22: #{_lambda_.16} parent=0
    _
  %s6 = ssub.s32 1, %s4
  %s7 = scalar_select 0, %s6, %s4
  // Predicated region
  $region2: #{_lambda_.16} parent=0 // pred_check
    _
  $region3: #{_lambda_.16} parent=0 // pred_check_branch
    %9 = sbr.rel (0) target = $region5
  $region4: #{_lambda_.16} parent=0 // pred_region
    _
  $region5: #{_lambda_.16} parent=0 // pred_fallthru
    _
  // Predicated region
  $region6: #{_lambda_.16} parent=0 // pred_check
    _
  $region7: #{_lambda_.16} parent=0 // pred_check_branch
    %11 = sbr.rel (0) target = $region9
  $region8: #{_lambda_.16} parent=0 // pred_region
    _
  $region9: #{_lambda_.16} parent=0 // pred_fallthru
    _
  // Predicated region
  $region10: #{_lambda_.16} parent=0 // pred_check
    _
  $region11: #{_lambda_.16} parent=0 // pred_check_branch
    %13 = sbr.rel (0) target = $region13
  $region12: #{_lambda_.16} parent=0 // pred_region
    _
  $region13: #{_lambda_.16} parent=0 // pred_fallthru
    _
  %v14 = vld [vmem:[%s0] sm:$0xff]
  %v15 = vld [vmem:[%s0 + $0x8] sm:$0xff]
  %v16 = vld [vmem:[%s1] sm:$0xff]
  %v17 = vld [vmem:[%s1 + $0x8] sm:$0xff]
  %v18 = vld [vmem:[%s1 + $0x10] sm:$0xff]
  %v19 = vld [vmem:[%s1 + $0x18] sm:$0xff]
  %v20 = vld [vmem:[%s1 + $0x20] sm:$0xff]
  %v21 = vld [vmem:[%s1 + $0x28] sm:$0xff]
  %v22 = vld [vmem:[%s1 + $0x30] sm:$0xff]
  %v23 = vld [vmem:[%s1 + $0x38] sm:$0xff]
  %v24 = vld [vmem:[%s2] sm:$0x1]
  %v26 = vlaneseq
  %v27 = vshrl.u32 %v26, 7
  %v28 = vsub.s32 0, %v27
  %v29 = vrot.slane %v24, %v28
  %vm31 = vcmask 523264
  %v33 = vsel %vm31, %v14, 0
  %v36 = vsel %vm31, %v15, 0
  %38 = vmatprep.subr.mxu0 0.0
  %39 = vmatpush1.msra.mxu0 %v16
  %40 = vmatprep.subr.mxu0 0.0
  %41 = vmatpush1.msra.mxu0 %v17
  %42 = vmatprep.subr.mxu0 0.0
  %43 = vmatpush1.msra.mxu0 %v18
  %44 = vmatprep.subr.mxu0 0.0
  %45 = vmatpush1.msra.mxu0 %v19
  %46 = vmatprep.subr.mxu0 0.0
  %47 = vmatpush1.msra.mxu0 %v20
  %48 = vmatprep.subr.mxu0 0.0
  %49 = vmatpush1.msra.mxu0 %v21
  %50 = vmatprep.subr.mxu0 0.0
  %51 = vmatpush1.msra.mxu0 %v22
  %52 = vmatprep.subr.mxu0 0.0
  %53 = vmatpush1.msra.mxu0 %v23
  %54 = vmatprep.subr.mxu0 0.0
  %55 = vmatpush1.msra.mxu0 0.0
  %56 = vmatprep.subr.mxu0 0.0
  %57 = vmatpush1.msra.mxu0 0.0
  %58 = vmatprep.subr.mxu0 0.0
  %59 = vmatpush1.msra.mxu0 0.0
  %60 = vmatprep.subr.mxu0 0.0
  %61 = vmatpush1.msra.mxu0 0.0
  %62 = vmatprep.subr.mxu0 0.0
  %63 = vmatpush1.msra.mxu0 0.0
  %64 = vmatprep.subr.mxu0 0.0
  %65 = vmatpush1.msra.mxu0 0.0
  %66 = vmatprep.subr.mxu0 0.0
  %67 = vmatpush1.msra.mxu0 0.0
  %68 = vmatprep.subr.mxu0 0.0
  %69 = vmatpush1.msra.mxu0 0.0
  %70 = vmatprep.subr.mxu0 0.0
  %71 = vmatpush1.msra.mxu0 0.0
  %72 = vmatprep.subr.mxu0 0.0
  %73 = vmatpush1.msra.mxu0 0.0
  %74 = vmatprep.subr.mxu0 0.0
  %75 = vmatpush1.msra.mxu0 0.0
  %76 = vmatprep.subr.mxu0 0.0
  %77 = vmatpush1.msra.mxu0 0.0
  %78 = vmatprep.subr.mxu0 0.0
  %79 = vmatpush1.msra.mxu0 0.0
  %80 = vmatprep.subr.mxu0 0.0
  %81 = vmatpush1.msra.mxu0 0.0
  %82 = vmatprep.subr.mxu0 0.0
  %83 = vmatpush1.msra.mxu0 0.0
  %84 = vmatprep.subr.mxu0 0.0
  %85 = vmatpush1.msra.mxu0 0.0
  %86 = vmatprep.subr.mxu0 0.0
  %87 = vmatpush1.msra.mxu0 0.0
  %88 = vmatprep.subr.mxu0 0.0
  %89 = vmatpush1.msra.mxu0 0.0
  %90 = vmatprep.subr.mxu0 0.0
  %91 = vmatpush1.msra.mxu0 0.0
  %92 = vmatprep.subr.mxu0 0.0
  %93 = vmatpush1.msra.mxu0 0.0
  %94 = vmatprep.subr.mxu0 0.0
  %95 = vmatpush1.msra.mxu0 0.0
  %96 = vmatprep.subr.mxu0 0.0
  %97 = vmatpush1.msra.mxu0 0.0
  %98 = vmatprep.subr.mxu0 0.0
  %99 = vmatpush1.msra.mxu0 0.0
  %100 = vmatprep.subr.mxu0 0.0
  %101 = vmatpush1.msra.mxu0 0.0
  %102 = vmatprep.mubr.f32.mxu0 0.0
  %103 = vmatmul.mubr.f32.gmra.mrb[0].mxu0 %v33
  %v104 = vpop.f32.mrb[0].mxu0
  %v105 = vadd.f32 %v29, %v104
  %v106 = vpop.f32.mrb[0].mxu0
  %107 = vmatprep.mubr.f32.mxu0 0.0
  %108 = vmatmul.mubr.f32.gmra.mrb[0].mxu0 %v36
  %v109 = vpop.f32.mrb[0].mxu0
  %v110 = vadd.f32 %v29, %v109
  %v111 = vpop.f32.mrb[0].mxu0
  %112 = vdwg.mxu0
  %vm113 = vcmask 261120
  %114 = vst.msk [vmem:[%s3] sm:$0xff] %vm113, %v105
  %115 = vst.msk [vmem:[%s3 + $0x8] sm:$0xff] %vm113, %v110
  // Predicated region
  $region14: #{_lambda_.16} parent=0 // pred_check
    _
  $region15: #{_lambda_.16} parent=0 // pred_check_branch
    %117 = sbr.rel (0) target = $region17
  $region16: #{_lambda_.16} parent=0 // pred_region
    _
  $region17: #{_lambda_.16} parent=0 // pred_fallthru
    _
  // Predicated region
  $region18: #{_lambda_.16} parent=0 // pred_check
    _
  $region19: #{_lambda_.16} parent=0 // pred_check_branch
    %119 = sbr.rel (0) target = $region21
  $region20: #{_lambda_.16} parent=0 // pred_region
    _
  $region21: #{_lambda_.16} parent=0 // pred_fallthru
    _

</llo_original>
